<compile_context>
chip_gen: v5e
topology: v5e:2x2
jax: 0.10.0
libtpu: 0.0.40
codegen_flags: <defaults>
</compile_context>

<pallas_src>
import math
import jax
import jax.numpy as jnp
from jax.experimental import pallas as pl

# ---------------- configuration (small, consistent with the module) ----------
INPUT_DIM = 128
N_LAYERS = 4
ENC_SPACE_DIM = 32
LATENT_DIM = 8
BATCH = 16
MIN_K, MAX_K, NITER = 3, 4, 5
NK = MAX_K - MIN_K + 1

SELU_ALPHA = 1.6732632423543772848170429916717
SELU_SCALE = 1.0507009873554804934193349852946


def _selu(x):
    return SELU_SCALE * jnp.where(x > 0, x, SELU_ALPHA * (jnp.exp(x) - 1.0))


# ---------------- fully fused forward kernel ---------------------------------
def make_fused_kernel(n_enc_hidden, n_dec_hidden, batch):
    n_in = 1 + n_enc_hidden + 2 + 2 + n_dec_hidden + 2
    B = batch
    L = LATENT_DIM

    def kernel(*args):
        in_refs = args[:n_in]
        recon_ref, lat_ref, cl_ref, cen_ref, score_ref = args[n_in:]
        it = iter(in_refs)

        x = next(it)[...].astype(jnp.float32)

        # --- encoder SNN (Linear no-bias + SELU) * n, then Linear + bias, Tanh
        h = x
        for _ in range(n_enc_hidden):
            h = _selu(jnp.dot(h, next(it)[...], preferred_element_type=jnp.float32))
        w, b = next(it)[...], next(it)[...]
        h = jnp.tanh(jnp.dot(h, w, preferred_element_type=jnp.float32) + b)

        # --- fused latent heads: one matmul producing [mu | logvar] ---
        w_mv, b_mv = next(it)[...], next(it)[...]
        lat = jnp.dot(h, w_mv, preferred_element_type=jnp.float32) + b_mv
        lat_ref[...] = lat                       # single (B, 2L) store
        mu = lat[:, :L]

        # eval-mode reparameterise: z = mu
        d = mu
        for _ in range(n_dec_hidden):
            d = _selu(jnp.dot(d, next(it)[...], preferred_element_type=jnp.float32))
        w, b = next(it)[...], next(it)[...]
        recon_ref[...] = jax.nn.sigmoid(
            jnp.dot(d, w, preferred_element_type=jnp.float32) + b)

        # --- in-kernel iterative Lloyd K-means on mu (VPU only, no MXU) ------
        # deterministic init: first MAX_K points (random_centroid_init=False)
        c_init = mu[:MAX_K, :]                   # (MAX_K, L)

        def assign(c, K):
            # exact (mu - c)^2 distances -> no cancellation
            best_d = jnp.full((B, 1), jnp.inf, jnp.float32)
            best_k = jnp.zeros((B, 1), jnp.int32)
            for k in range(K):
                diff = mu - c[k:k + 1, :]
                dk = jnp.sum(diff * diff, axis=-1, keepdims=True)   # (B, 1)
                better = dk < best_d
                best_d = jnp.where(better, dk, best_d)
                best_k = jnp.where(better, k, best_k)
            return best_k, best_d

        cl_cols, score_cols = [], []
        for ki, K in enumerate(range(MIN_K, MAX_K + 1)):
            c = c_init
            for _ in range(NITER):
                best_k, _ = assign(c, K)
                rows = []
                for k in range(K):
                    mask = (best_k == k).astype(jnp.float32)          # (B, 1)
                    cnt = jnp.sum(mask, axis=0, keepdims=True)        # (1, 1)
                    s = jnp.sum(mask * mu, axis=0, keepdims=True)     # (1, L)
                    rows.append(jnp.where(cnt > 0.0,
                                          s / jnp.maximum(cnt, 1.0),
                                          c[k:k + 1, :]))
                for k in range(K, MAX_K):                             # keep padding rows
                    rows.append(c[k:k + 1, :])
                c = jnp.concatenate(rows, axis=0)                     # (MAX_K, L)

            best_k, best_d = assign(c, K)
            cl_cols.append(best_k)                                    # (B, 1) int32
            # TODO(synk): DC_IterativeKMeans source not provided; using
            # -mean(min squared distance) as the cluster-quality score.
            score_cols.append(-jnp.sum(best_d, axis=0, keepdims=True) / B)  # (1,1)
            cen_ref[ki] = c                                           # (MAX_K, L)

        cl_ref[...] = jnp.concatenate(cl_cols, axis=1)                # (B, NK)
        score_ref[...] = jnp.concatenate(score_cols, axis=1)          # (1, NK)

    return kernel


def build_forward(n_enc_hidden, n_dec_hidden):
    kernel = make_fused_kernel(n_enc_hidden, n_dec_hidden, BATCH)
    out_shape = [
        jax.ShapeDtypeStruct((BATCH, INPUT_DIM), jnp.float32),       # recon
        jax.ShapeDtypeStruct((BATCH, 2 * LATENT_DIM), jnp.float32),  # mu | logvar
        jax.ShapeDtypeStruct((BATCH, NK), jnp.int32),                # labels per K
        jax.ShapeDtypeStruct((NK, MAX_K, LATENT_DIM), jnp.float32),  # centroids per K
        jax.ShapeDtypeStruct((1, NK), jnp.float32),                  # scores
    ]
    call = pl.pallas_call(kernel, out_shape=out_shape)   # no grid: one step, all in VMEM

    @jax.jit
    def forward(x, params):
        recon, lat, cl_all, c_all, scores = call(x, *params)
        mu = lat[:, :LATENT_DIM]
        logvar = lat[:, LATENT_DIM:]
        z = mu                                        # eval-mode reparameterise
        s_scores = scores[0]                          # (NK,)
        best_idx = jnp.argmax(s_scores)               # device-side, no host sync
        best_K = MIN_K + best_idx
        best_cl = jnp.take(cl_all, best_idx, axis=1)  # (B,)
        # TODO(synk): best_c is padded to MAX_K rows (static shape under jit);
        # unused rows keep their deterministic init values.
        best_c = jnp.take(c_all, best_idx, axis=0)    # (MAX_K, L)
        best_score = jnp.take(s_scores, best_idx)
        return recon, z, mu, logvar, best_cl, best_c, best_score, best_K, s_scores

    return forward


# ---------------- deterministic parameter init --------------------------------
def init_linear(key, in_dim, out_dim, bias):
    # TODO(synk): matches SNN.reset_parameters (normal/sqrt(out), uniform bias);
    # fc_mu/fc_var use PyTorch's default init in the reference module.
    k1, k2 = jax.random.split(key)
    w = jax.random.normal(k1, (out_dim, in_dim), jnp.float32) / math.sqrt(out_dim)
    wt = w.T                                   # (in, out) for the kernel
    if bias:
        bound = 1.0 / math.sqrt(in_dim)
        b = jax.random.uniform(k2, (1, out_dim), jnp.float32, -bound, bound)
        return [wt, b]
    return [wt]


def build_params(key):
    # hidden dims exactly as in the PyTorch module (pow_2_* = False)
    enc_hidden = [INPUT_DIM // n for n in range(2, N_LAYERS + 1)
                  if INPUT_DIM // n > ENC_SPACE_DIM]
    dec_hidden = [INPUT_DIM // n for n in range(N_LAYERS, 1, -1)
                  if INPUT_DIM // n < INPUT_DIM]

    params = []
    keys = jax.random.split(key, 32)
    ki = 0

    # encoder SNN: Linear(no bias)+SELU per hidden, then Linear(+bias)
    dims = [INPUT_DIM] + enc_hidden
    for i in range(len(enc_hidden)):
        params += init_linear(keys[ki], dims[i], dims[i + 1], bias=False); ki += 1
    params += init_linear(keys[ki], enc_hidden[-1], ENC_SPACE_DIM, bias=True); ki += 1

    # fc_mu and fc_var, fused into a single (ENC, 2L) weight / (1, 2L) bias
    wmu, bmu = init_linear(keys[ki], ENC_SPACE_DIM, LATENT_DIM, bias=True); ki += 1
    wv, bv = init_linear(keys[ki], ENC_SPACE_DIM, LATENT_DIM, bias=True); ki += 1
    params += [jnp.concatenate([wmu, wv], axis=1),
               jnp.concatenate([bmu, bv], axis=1)]

    # decoder SNN
    dims = [LATENT_DIM] + dec_hidden
    for i in range(len(dec_hidden)):
        params += init_linear(keys[ki], dims[i], dims[i + 1], bias=False); ki += 1
    params += init_linear(keys[ki], dec_hidden[-1], INPUT_DIM, bias=True); ki += 1

    return params, len(enc_hidden), len(dec_hidden)


# ---------------- main ---------------------------------------------------------
if __name__ == "__main__":
    key = jax.random.PRNGKey(0)
    kx, kp = jax.random.split(key)
    x = jax.random.uniform(kx, (BATCH, INPUT_DIM), jnp.float32)

    params, n_enc_hidden, n_dec_hidden = build_params(kp)
    forward = build_forward(n_enc_hidden, n_dec_hidden)

    outs = forward(x, params)
    recon, z, mu, logvar, best_cl, best_c, best_score, best_K, s_scores = outs
    jax.block_until_ready(outs)

    assert recon.shape == (BATCH, INPUT_DIM)
    assert z.shape == (BATCH, LATENT_DIM)
    assert mu.shape == (BATCH, LATENT_DIM)
    assert logvar.shape == (BATCH, LATENT_DIM)
    assert best_cl.shape == (BATCH,)
    assert best_c.shape == (MAX_K, LATENT_DIM)
    assert s_scores.shape == (NK,)
    print("KERNEL_OK")
</pallas_src>

<mosaic_0001>
module attributes {stable_mosaic.version = 11 : i64} {
  func.func @kernel(%arg0: memref<16x128xf32, #tpu.memory_space<vmem>>, %arg1: memref<128x64xf32, #tpu.memory_space<vmem>>, %arg2: memref<64x42xf32, #tpu.memory_space<vmem>>, %arg3: memref<42x32xf32, #tpu.memory_space<vmem>>, %arg4: memref<1x32xf32, #tpu.memory_space<vmem>>, %arg5: memref<32x16xf32, #tpu.memory_space<vmem>>, %arg6: memref<1x16xf32, #tpu.memory_space<vmem>>, %arg7: memref<8x32xf32, #tpu.memory_space<vmem>>, %arg8: memref<32x42xf32, #tpu.memory_space<vmem>>, %arg9: memref<42x64xf32, #tpu.memory_space<vmem>>, %arg10: memref<64x128xf32, #tpu.memory_space<vmem>>, %arg11: memref<1x128xf32, #tpu.memory_space<vmem>>, %arg12: memref<16x128xf32, #tpu.memory_space<vmem>>, %arg13: memref<16x16xf32, #tpu.memory_space<vmem>>, %arg14: memref<16x2xi32, #tpu.memory_space<vmem>>, %arg15: memref<2x4x8xf32, #tpu.memory_space<vmem>>, %arg16: memref<1x2xf32, #tpu.memory_space<vmem>>) attributes {dimension_semantics = [], scalar_prefetch = 0 : i64, scratch_operands = 0 : i64, tpu.core_type = #tpu.core_type<tc>} {
    %c0 = arith.constant 0 : index
    %c0_0 = arith.constant 0 : index
    %0 = vector.load %arg0[%c0, %c0_0] : memref<16x128xf32, #tpu.memory_space<vmem>>, vector<16x128xf32>
    %c0_1 = arith.constant 0 : index
    %c0_2 = arith.constant 0 : index
    %1 = vector.load %arg1[%c0_1, %c0_2] : memref<128x64xf32, #tpu.memory_space<vmem>>, vector<128x64xf32>
    %cst = arith.constant dense<0.000000e+00> : vector<16x64xf32>
    %2 = tpu.matmul %0, %1, %cst {dimension_numbers = #tpu.dot_dimension_numbers<[1], [0], [0], [1], [0, 0, 1, 1], [], []>} : vector<16x128xf32>, vector<128x64xf32>, vector<16x64xf32> -> vector<16x64xf32>
    %cst_3 = arith.constant 0.000000e+00 : f32
    %3 = vector.broadcast %cst_3 : f32 to vector<16x64xf32>
    %4 = arith.cmpf ogt, %2, %3 : vector<16x64xf32>
    %5 = math.exp %2 : vector<16x64xf32>
    %cst_4 = arith.constant 1.000000e+00 : f32
    %6 = vector.broadcast %cst_4 : f32 to vector<16x64xf32>
    %7 = arith.subf %5, %6 : vector<16x64xf32>
    %cst_5 = arith.constant 1.67326319 : f32
    %8 = vector.broadcast %cst_5 : f32 to vector<16x64xf32>
    %9 = arith.mulf %8, %7 : vector<16x64xf32>
    %10 = arith.select %4, %2, %9 : vector<16x64xi1>, vector<16x64xf32>
    %cst_6 = arith.constant 1.05070102 : f32
    %11 = vector.broadcast %cst_6 : f32 to vector<16x64xf32>
    %12 = arith.mulf %11, %10 : vector<16x64xf32>
    %c0_7 = arith.constant 0 : index
    %c0_8 = arith.constant 0 : index
    %13 = vector.load %arg2[%c0_7, %c0_8] : memref<64x42xf32, #tpu.memory_space<vmem>>, vector<64x42xf32>
    %cst_9 = arith.constant dense<0.000000e+00> : vector<16x42xf32>
    %14 = tpu.matmul %12, %13, %cst_9 {dimension_numbers = #tpu.dot_dimension_numbers<[1], [0], [0], [1], [0, 0, 1, 1], [], []>} : vector<16x64xf32>, vector<64x42xf32>, vector<16x42xf32> -> vector<16x42xf32>
    %cst_10 = arith.constant 0.000000e+00 : f32
    %15 = vector.broadcast %cst_10 : f32 to vector<16x42xf32>
    %16 = arith.cmpf ogt, %14, %15 : vector<16x42xf32>
    %17 = math.exp %14 : vector<16x42xf32>
    %cst_11 = arith.constant 1.000000e+00 : f32
    %18 = vector.broadcast %cst_11 : f32 to vector<16x42xf32>
    %19 = arith.subf %17, %18 : vector<16x42xf32>
    %cst_12 = arith.constant 1.67326319 : f32
    %20 = vector.broadcast %cst_12 : f32 to vector<16x42xf32>
    %21 = arith.mulf %20, %19 : vector<16x42xf32>
    %22 = arith.select %16, %14, %21 : vector<16x42xi1>, vector<16x42xf32>
    %cst_13 = arith.constant 1.05070102 : f32
    %23 = vector.broadcast %cst_13 : f32 to vector<16x42xf32>
    %24 = arith.mulf %23, %22 : vector<16x42xf32>
    %c0_14 = arith.constant 0 : index
    %c0_15 = arith.constant 0 : index
    %25 = vector.load %arg3[%c0_14, %c0_15] : memref<42x32xf32, #tpu.memory_space<vmem>>, vector<42x32xf32>
    %c0_16 = arith.constant 0 : index
    %c0_17 = arith.constant 0 : index
    %26 = vector.load %arg4[%c0_16, %c0_17] : memref<1x32xf32, #tpu.memory_space<vmem>>, vector<1x32xf32>
    %cst_18 = arith.constant dense<0.000000e+00> : vector<16x32xf32>
    %27 = tpu.matmul %24, %25, %cst_18 {dimension_numbers = #tpu.dot_dimension_numbers<[1], [0], [0], [1], [0, 0, 1, 1], [], []>} : vector<16x42xf32>, vector<42x32xf32>, vector<16x32xf32> -> vector<16x32xf32>
    %28 = vector.broadcast %26 : vector<1x32xf32> to vector<16x32xf32>
    %29 = arith.addf %27, %28 : vector<16x32xf32>
    %30 = math.tanh %29 : vector<16x32xf32>
    %c0_19 = arith.constant 0 : index
    %c0_20 = arith.constant 0 : index
    %31 = vector.load %arg5[%c0_19, %c0_20] : memref<32x16xf32, #tpu.memory_space<vmem>>, vector<32x16xf32>
    %c0_21 = arith.constant 0 : index
    %c0_22 = arith.constant 0 : index
    %32 = vector.load %arg6[%c0_21, %c0_22] : memref<1x16xf32, #tpu.memory_space<vmem>>, vector<1x16xf32>
    %cst_23 = arith.constant dense<0.000000e+00> : vector<16x16xf32>
    %33 = tpu.matmul %30, %31, %cst_23 {dimension_numbers = #tpu.dot_dimension_numbers<[1], [0], [0], [1], [0, 0, 1, 1], [], []>} : vector<16x32xf32>, vector<32x16xf32>, vector<16x16xf32> -> vector<16x16xf32>
    %34 = vector.broadcast %32 : vector<1x16xf32> to vector<16x16xf32>
    %35 = arith.addf %33, %34 : vector<16x16xf32>
    %c0_24 = arith.constant 0 : index
    %c0_25 = arith.constant 0 : index
    %36 = vector.load %arg13[%c0_24, %c0_25] : memref<16x16xf32, #tpu.memory_space<vmem>>, vector<16x16xf32>
    tpu.vector_store %arg13[%c0_24, %c0_25], %35 {strides = array<i32>} : memref<16x16xf32, #tpu.memory_space<vmem>>, vector<16x16xf32>,
    %37 = vector.extract_strided_slice %35 {offsets = [0, 0], sizes = [16, 8], strides = [1, 1]} : vector<16x16xf32> to vector<16x8xf32>
    %c0_26 = arith.constant 0 : index
    %c0_27 = arith.constant 0 : index
    %38 = vector.load %arg7[%c0_26, %c0_27] : memref<8x32xf32, #tpu.memory_space<vmem>>, vector<8x32xf32>
    %cst_28 = arith.constant dense<0.000000e+00> : vector<16x32xf32>
    %39 = tpu.matmul %37, %38, %cst_28 {dimension_numbers = #tpu.dot_dimension_numbers<[1], [0], [0], [1], [0, 0, 1, 1], [], []>} : vector<16x8xf32>, vector<8x32xf32>, vector<16x32xf32> -> vector<16x32xf32>
    %cst_29 = arith.constant 0.000000e+00 : f32
    %40 = vector.broadcast %cst_29 : f32 to vector<16x32xf32>
    %41 = arith.cmpf ogt, %39, %40 : vector<16x32xf32>
    %42 = math.exp %39 : vector<16x32xf32>
    %cst_30 = arith.constant 1.000000e+00 : f32
    %43 = vector.broadcast %cst_30 : f32 to vector<16x32xf32>
    %44 = arith.subf %42, %43 : vector<16x32xf32>
    %cst_31 = arith.constant 1.67326319 : f32
    %45 = vector.broadcast %cst_31 : f32 to vector<16x32xf32>
    %46 = arith.mulf %45, %44 : vector<16x32xf32>
    %47 = arith.select %41, %39, %46 : vector<16x32xi1>, vector<16x32xf32>
    %cst_32 = arith.constant 1.05070102 : f32
    %48 = vector.broadcast %cst_32 : f32 to vector<16x32xf32>
    %49 = arith.mulf %48, %47 : vector<16x32xf32>
    %c0_33 = arith.constant 0 : index
    %c0_34 = arith.constant 0 : index
    %50 = vector.load %arg8[%c0_33, %c0_34] : memref<32x42xf32, #tpu.memory_space<vmem>>, vector<32x42xf32>
    %cst_35 = arith.constant dense<0.000000e+00> : vector<16x42xf32>
    %51 = tpu.matmul %49, %50, %cst_35 {dimension_numbers = #tpu.dot_dimension_numbers<[1], [0], [0], [1], [0, 0, 1, 1], [], []>} : vector<16x32xf32>, vector<32x42xf32>, vector<16x42xf32> -> vector<16x42xf32>
    %cst_36 = arith.constant 0.000000e+00 : f32
    %52 = vector.broadcast %cst_36 : f32 to vector<16x42xf32>
    %53 = arith.cmpf ogt, %51, %52 : vector<16x42xf32>
    %54 = math.exp %51 : vector<16x42xf32>
    %cst_37 = arith.constant 1.000000e+00 : f32
    %55 = vector.broadcast %cst_37 : f32 to vector<16x42xf32>
    %56 = arith.subf %54, %55 : vector<16x42xf32>
    %cst_38 = arith.constant 1.67326319 : f32
    %57 = vector.broadcast %cst_38 : f32 to vector<16x42xf32>
    %58 = arith.mulf %57, %56 : vector<16x42xf32>
    %59 = arith.select %53, %51, %58 : vector<16x42xi1>, vector<16x42xf32>
    %cst_39 = arith.constant 1.05070102 : f32
    %60 = vector.broadcast %cst_39 : f32 to vector<16x42xf32>
    %61 = arith.mulf %60, %59 : vector<16x42xf32>
    %c0_40 = arith.constant 0 : index
    %c0_41 = arith.constant 0 : index
    %62 = vector.load %arg9[%c0_40, %c0_41] : memref<42x64xf32, #tpu.memory_space<vmem>>, vector<42x64xf32>
    %cst_42 = arith.constant dense<0.000000e+00> : vector<16x64xf32>
    %63 = tpu.matmul %61, %62, %cst_42 {dimension_numbers = #tpu.dot_dimension_numbers<[1], [0], [0], [1], [0, 0, 1, 1], [], []>} : vector<16x42xf32>, vector<42x64xf32>, vector<16x64xf32> -> vector<16x64xf32>
    %cst_43 = arith.constant 0.000000e+00 : f32
    %64 = vector.broadcast %cst_43 : f32 to vector<16x64xf32>
    %65 = arith.cmpf ogt, %63, %64 : vector<16x64xf32>
    %66 = math.exp %63 : vector<16x64xf32>
    %cst_44 = arith.constant 1.000000e+00 : f32
    %67 = vector.broadcast %cst_44 : f32 to vector<16x64xf32>
    %68 = arith.subf %66, %67 : vector<16x64xf32>
    %cst_45 = arith.constant 1.67326319 : f32
    %69 = vector.broadcast %cst_45 : f32 to vector<16x64xf32>
    %70 = arith.mulf %69, %68 : vector<16x64xf32>
    %71 = arith.select %65, %63, %70 : vector<16x64xi1>, vector<16x64xf32>
    %cst_46 = arith.constant 1.05070102 : f32
    %72 = vector.broadcast %cst_46 : f32 to vector<16x64xf32>
    %73 = arith.mulf %72, %71 : vector<16x64xf32>
    %c0_47 = arith.constant 0 : index
    %c0_48 = arith.constant 0 : index
    %74 = vector.load %arg10[%c0_47, %c0_48] : memref<64x128xf32, #tpu.memory_space<vmem>>, vector<64x128xf32>
    %c0_49 = arith.constant 0 : index
    %c0_50 = arith.constant 0 : index
    %75 = vector.load %arg11[%c0_49, %c0_50] : memref<1x128xf32, #tpu.memory_space<vmem>>, vector<1x128xf32>
    %cst_51 = arith.constant dense<0.000000e+00> : vector<16x128xf32>
    %76 = tpu.matmul %73, %74, %cst_51 {dimension_numbers = #tpu.dot_dimension_numbers<[1], [0], [0], [1], [0, 0, 1, 1], [], []>} : vector<16x64xf32>, vector<64x128xf32>, vector<16x128xf32> -> vector<16x128xf32>
    %77 = vector.broadcast %75 : vector<1x128xf32> to vector<16x128xf32>
    %78 = arith.addf %76, %77 : vector<16x128xf32>
    %79 = arith.negf %78 : vector<16x128xf32>
    %80 = math.exp %79 : vector<16x128xf32>
    %cst_52 = arith.constant 1.000000e+00 : f32
    %81 = vector.broadcast %cst_52 : f32 to vector<16x128xf32>
    %82 = arith.addf %81, %80 : vector<16x128xf32>
    %83 = arith.divf %81, %82 : vector<16x128xf32>
    %c0_53 = arith.constant 0 : index
    %c0_54 = arith.constant 0 : index
    %84 = vector.load %arg12[%c0_53, %c0_54] : memref<16x128xf32, #tpu.memory_space<vmem>>, vector<16x128xf32>
    tpu.vector_store %arg12[%c0_53, %c0_54], %83 {strides = array<i32>} : memref<16x128xf32, #tpu.memory_space<vmem>>, vector<16x128xf32>,
    %85 = vector.extract_strided_slice %37 {offsets = [0, 0], sizes = [4, 8], strides = [1, 1]} : vector<16x8xf32> to vector<4x8xf32>
    %cst_55 = arith.constant 0x7F800000 : f32
    %86 = vector.broadcast %cst_55 : f32 to vector<16x1xf32>
    %c0_i32 = arith.constant 0 : i32
    %87 = vector.broadcast %c0_i32 : i32 to vector<16x1xi32>
    %88 = vector.extract_strided_slice %85 {offsets = [0, 0], sizes = [1, 8], strides = [1, 1]} : vector<4x8xf32> to vector<1x8xf32>
    %89 = vector.broadcast %88 : vector<1x8xf32> to vector<16x8xf32>
    %90 = arith.subf %37, %89 : vector<16x8xf32>
    %91 = arith.mulf %90, %90 : vector<16x8xf32>
    %cst_56 = arith.constant dense<0.000000e+00> : vector<16xf32>
    %92 = vector.multi_reduction <add>, %91, %cst_56 [1] : vector<16x8xf32> to vector<16xf32>
    %93 = vector.shape_cast %92 : vector<16xf32> to vector<16x1xf32>
    %94 = arith.cmpf olt, %93, %86 : vector<16x1xf32>
    %95 = arith.select %94, %93, %86 : vector<16x1xi1>, vector<16x1xf32>
    %c0_i32_57 = arith.constant 0 : i32
    %96 = vector.broadcast %c0_i32_57 : i32 to vector<16x1xi32>
    %97 = arith.select %94, %96, %87 : vector<16x1xi1>, vector<16x1xi32>
    %98 = vector.extract_strided_slice %85 {offsets = [1, 0], sizes = [1, 8], strides = [1, 1]} : vector<4x8xf32> to vector<1x8xf32>
    %99 = vector.broadcast %98 : vector<1x8xf32> to vector<16x8xf32>
    %100 = arith.subf %37, %99 : vector<16x8xf32>
    %101 = arith.mulf %100, %100 : vector<16x8xf32>
    %cst_58 = arith.constant dense<0.000000e+00> : vector<16xf32>
    %102 = vector.multi_reduction <add>, %101, %cst_58 [1] : vector<16x8xf32> to vector<16xf32>
    %103 = vector.shape_cast %102 : vector<16xf32> to vector<16x1xf32>
    %104 = arith.cmpf olt, %103, %95 : vector<16x1xf32>
    %105 = arith.select %104, %103, %95 : vector<16x1xi1>, vector<16x1xf32>
    %c1_i32 = arith.constant 1 : i32
    %106 = vector.broadcast %c1_i32 : i32 to vector<16x1xi32>
    %107 = arith.select %104, %106, %97 : vector<16x1xi1>, vector<16x1xi32>
    %108 = vector.extract_strided_slice %85 {offsets = [2, 0], sizes = [1, 8], strides = [1, 1]} : vector<4x8xf32> to vector<1x8xf32>
    %109 = vector.broadcast %108 : vector<1x8xf32> to vector<16x8xf32>
    %110 = arith.subf %37, %109 : vector<16x8xf32>
    %111 = arith.mulf %110, %110 : vector<16x8xf32>
    %cst_59 = arith.constant dense<0.000000e+00> : vector<16xf32>
    %112 = vector.multi_reduction <add>, %111, %cst_59 [1] : vector<16x8xf32> to vector<16xf32>
    %113 = vector.shape_cast %112 : vector<16xf32> to vector<16x1xf32>
    %114 = arith.cmpf olt, %113, %105 : vector<16x1xf32>
    %c2_i32 = arith.constant 2 : i32
    %115 = vector.broadcast %c2_i32 : i32 to vector<16x1xi32>
    %116 = arith.select %114, %115, %107 : vector<16x1xi1>, vector<16x1xi32>
    %c0_i32_60 = arith.constant 0 : i32
    %117 = vector.broadcast %c0_i32_60 : i32 to vector<16x1xi32>
    %118 = arith.cmpi eq, %116, %117 : vector<16x1xi32>
    %119 = arith.extui %118 : vector<16x1xi1> to vector<16x1xi32>
    %120 = arith.sitofp %119 : vector<16x1xi32> to vector<16x1xf32>
    %cst_61 = arith.constant dense<0.000000e+00> : vector<1xf32>
    %121 = vector.multi_reduction <add>, %120, %cst_61 [0] : vector<16x1xf32> to vector<1xf32>
    %122 = vector.shape_cast %121 : vector<1xf32> to vector<1x1xf32>
    %123 = vector.broadcast %120 : vector<16x1xf32> to vector<16x8xf32>
    %124 = arith.mulf %123, %37 : vector<16x8xf32>
    %cst_62 = arith.constant dense<0.000000e+00> : vector<8xf32>
    %125 = vector.multi_reduction <add>, %124, %cst_62 [0] : vector<16x8xf32> to vector<8xf32>
    %126 = vector.shape_cast %125 : vector<8xf32> to vector<1x8xf32>
    %cst_63 = arith.constant 0.000000e+00 : f32
    %127 = vector.broadcast %cst_63 : f32 to vector<1x1xf32>
    %128 = arith.cmpf ogt, %122, %127 : vector<1x1xf32>
    %cst_64 = arith.constant 1.000000e+00 : f32
    %129 = vector.broadcast %cst_64 : f32 to vector<1x1xf32>
    %130 = arith.maximumf %122, %129 : vector<1x1xf32>
    %131 = vector.broadcast %130 : vector<1x1xf32> to vector<1x8xf32>
    %132 = arith.divf %126, %131 : vector<1x8xf32>
    %133 = vector.extract_strided_slice %85 {offsets = [0, 0], sizes = [1, 8], strides = [1, 1]} : vector<4x8xf32> to vector<1x8xf32>
    %134 = vector.shape_cast %128 : vector<1x1xi1> to vector<1x1xi1>
    %135 = vector.broadcast %134 : vector<1x1xi1> to vector<1x8xi1>
    %136 = arith.select %135, %132, %133 : vector<1x8xi1>, vector<1x8xf32>
    %c1_i32_65 = arith.constant 1 : i32
    %137 = vector.broadcast %c1_i32_65 : i32 to vector<16x1xi32>
    %138 = arith.cmpi eq, %116, %137 : vector<16x1xi32>
    %139 = arith.extui %138 : vector<16x1xi1> to vector<16x1xi32>
    %140 = arith.sitofp %139 : vector<16x1xi32> to vector<16x1xf32>
    %cst_66 = arith.constant dense<0.000000e+00> : vector<1xf32>
    %141 = vector.multi_reduction <add>, %140, %cst_66 [0] : vector<16x1xf32> to vector<1xf32>
    %142 = vector.shape_cast %141 : vector<1xf32> to vector<1x1xf32>
    %143 = vector.broadcast %140 : vector<16x1xf32> to vector<16x8xf32>
    %144 = arith.mulf %143, %37 : vector<16x8xf32>
    %cst_67 = arith.constant dense<0.000000e+00> : vector<8xf32>
    %145 = vector.multi_reduction <add>, %144, %cst_67 [0] : vector<16x8xf32> to vector<8xf32>
    %146 = vector.shape_cast %145 : vector<8xf32> to vector<1x8xf32>
    %cst_68 = arith.constant 0.000000e+00 : f32
    %147 = vector.broadcast %cst_68 : f32 to vector<1x1xf32>
    %148 = arith.cmpf ogt, %142, %147 : vector<1x1xf32>
    %cst_69 = arith.constant 1.000000e+00 : f32
    %149 = vector.broadcast %cst_69 : f32 to vector<1x1xf32>
    %150 = arith.maximumf %142, %149 : vector<1x1xf32>
    %151 = vector.broadcast %150 : vector<1x1xf32> to vector<1x8xf32>
    %152 = arith.divf %146, %151 : vector<1x8xf32>
    %153 = vector.extract_strided_slice %85 {offsets = [1, 0], sizes = [1, 8], strides = [1, 1]} : vector<4x8xf32> to vector<1x8xf32>
    %154 = vector.shape_cast %148 : vector<1x1xi1> to vector<1x1xi1>
    %155 = vector.broadcast %154 : vector<1x1xi1> to vector<1x8xi1>
    %156 = arith.select %155, %152, %153 : vector<1x8xi1>, vector<1x8xf32>
    %c2_i32_70 = arith.constant 2 : i32
    %157 = vector.broadcast %c2_i32_70 : i32 to vector<16x1xi32>
    %158 = arith.cmpi eq, %116, %157 : vector<16x1xi32>
    %159 = arith.extui %158 : vector<16x1xi1> to vector<16x1xi32>
    %160 = arith.sitofp %159 : vector<16x1xi32> to vector<16x1xf32>
    %cst_71 = arith.constant dense<0.000000e+00> : vector<1xf32>
    %161 = vector.multi_reduction <add>, %160, %cst_71 [0] : vector<16x1xf32> to vector<1xf32>
    %162 = vector.shape_cast %161 : vector<1xf32> to vector<1x1xf32>
    %163 = vector.broadcast %160 : vector<16x1xf32> to vector<16x8xf32>
    %164 = arith.mulf %163, %37 : vector<16x8xf32>
    %cst_72 = arith.constant dense<0.000000e+00> : vector<8xf32>
    %165 = vector.multi_reduction <add>, %164, %cst_72 [0] : vector<16x8xf32> to vector<8xf32>
    %166 = vector.shape_cast %165 : vector<8xf32> to vector<1x8xf32>
    %cst_73 = arith.constant 0.000000e+00 : f32
    %167 = vector.broadcast %cst_73 : f32 to vector<1x1xf32>
    %168 = arith.cmpf ogt, %162, %167 : vector<1x1xf32>
    %cst_74 = arith.constant 1.000000e+00 : f32
    %169 = vector.broadcast %cst_74 : f32 to vector<1x1xf32>
    %170 = arith.maximumf %162, %169 : vector<1x1xf32>
    %171 = vector.broadcast %170 : vector<1x1xf32> to vector<1x8xf32>
    %172 = arith.divf %166, %171 : vector<1x8xf32>
    %173 = vector.extract_strided_slice %85 {offsets = [2, 0], sizes = [1, 8], strides = [1, 1]} : vector<4x8xf32> to vector<1x8xf32>
    %174 = vector.shape_cast %168 : vector<1x1xi1> to vector<1x1xi1>
    %175 = vector.broadcast %174 : vector<1x1xi1> to vector<1x8xi1>
    %176 = arith.select %175, %172, %173 : vector<1x8xi1>, vector<1x8xf32>
    %177 = vector.extract_strided_slice %85 {offsets = [3, 0], sizes = [1, 8], strides = [1, 1]} : vector<4x8xf32> to vector<1x8xf32>
    %178 = tpu.concatenate %136, %156, %176, %177 in 0 : vector<1x8xf32>, vector<1x8xf32>, vector<1x8xf32>, vector<1x8xf32> -> vector<4x8xf32>
    %cst_75 = arith.constant 0x7F800000 : f32
    %179 = vector.broadcast %cst_75 : f32 to vector<16x1xf32>
    %c0_i32_76 = arith.constant 0 : i32
    %180 = vector.broadcast %c0_i32_76 : i32 to vector<16x1xi32>
    %181 = vector.extract_strided_slice %178 {offsets = [0, 0], sizes = [1, 8], strides = [1, 1]} : vector<4x8xf32> to vector<1x8xf32>
    %182 = vector.broadcast %181 : vector<1x8xf32> to vector<16x8xf32>
    %183 = arith.subf %37, %182 : vector<16x8xf32>
    %184 = arith.mulf %183, %183 : vector<16x8xf32>
    %cst_77 = arith.constant dense<0.000000e+00> : vector<16xf32>
    %185 = vector.multi_reduction <add>, %184, %cst_77 [1] : vector<16x8xf32> to vector<16xf32>
    %186 = vector.shape_cast %185 : vector<16xf32> to vector<16x1xf32>
    %187 = arith.cmpf olt, %186, %179 : vector<16x1xf32>
    %188 = arith.select %187, %186, %179 : vector<16x1xi1>, vector<16x1xf32>
    %c0_i32_78 = arith.constant 0 : i32
    %189 = vector.broadcast %c0_i32_78 : i32 to vector<16x1xi32>
    %190 = arith.select %187, %189, %180 : vector<16x1xi1>, vector<16x1xi32>
    %191 = vector.extract_strided_slice %178 {offsets = [1, 0], sizes = [1, 8], strides = [1, 1]} : vector<4x8xf32> to vector<1x8xf32>
    %192 = vector.broadcast %191 : vector<1x8xf32> to vector<16x8xf32>
    %193 = arith.subf %37, %192 : vector<16x8xf32>
    %194 = arith.mulf %193, %193 : vector<16x8xf32>
    %cst_79 = arith.constant dense<0.000000e+00> : vector<16xf32>
    %195 = vector.multi_reduction <add>, %194, %cst_79 [1] : vector<16x8xf32> to vector<16xf32>
    %196 = vector.shape_cast %195 : vector<16xf32> to vector<16x1xf32>
    %197 = arith.cmpf olt, %196, %188 : vector<16x1xf32>
    %198 = arith.select %197, %196, %188 : vector<16x1xi1>, vector<16x1xf32>
    %c1_i32_80 = arith.constant 1 : i32
    %199 = vector.broadcast %c1_i32_80 : i32 to vector<16x1xi32>
    %200 = arith.select %197, %199, %190 : vector<16x1xi1>, vector<16x1xi32>
    %201 = vector.extract_strided_slice %178 {offsets = [2, 0], sizes = [1, 8], strides = [1, 1]} : vector<4x8xf32> to vector<1x8xf32>
    %202 = vector.broadcast %201 : vector<1x8xf32> to vector<16x8xf32>
    %203 = arith.subf %37, %202 : vector<16x8xf32>
    %204 = arith.mulf %203, %203 : vector<16x8xf32>
    %cst_81 = arith.constant dense<0.000000e+00> : vector<16xf32>
    %205 = vector.multi_reduction <add>, %204, %cst_81 [1] : vector<16x8xf32> to vector<16xf32>
    %206 = vector.shape_cast %205 : vector<16xf32> to vector<16x1xf32>
    %207 = arith.cmpf olt, %206, %198 : vector<16x1xf32>
    %c2_i32_82 = arith.constant 2 : i32
    %208 = vector.broadcast %c2_i32_82 : i32 to vector<16x1xi32>
    %209 = arith.select %207, %208, %200 : vector<16x1xi1>, vector<16x1xi32>
    %c0_i32_83 = arith.constant 0 : i32
    %210 = vector.broadcast %c0_i32_83 : i32 to vector<16x1xi32>
    %211 = arith.cmpi eq, %209, %210 : vector<16x1xi32>
    %212 = arith.extui %211 : vector<16x1xi1> to vector<16x1xi32>
    %213 = arith.sitofp %212 : vector<16x1xi32> to vector<16x1xf32>
    %cst_84 = arith.constant dense<0.000000e+00> : vector<1xf32>
    %214 = vector.multi_reduction <add>, %213, %cst_84 [0] : vector<16x1xf32> to vector<1xf32>
    %215 = vector.shape_cast %214 : vector<1xf32> to vector<1x1xf32>
    %216 = vector.broadcast %213 : vector<16x1xf32> to vector<16x8xf32>
    %217 = arith.mulf %216, %37 : vector<16x8xf32>
    %cst_85 = arith.constant dense<0.000000e+00> : vector<8xf32>
    %218 = vector.multi_reduction <add>, %217, %cst_85 [0] : vector<16x8xf32> to vector<8xf32>
    %219 = vector.shape_cast %218 : vector<8xf32> to vector<1x8xf32>
    %cst_86 = arith.constant 0.000000e+00 : f32
    %220 = vector.broadcast %cst_86 : f32 to vector<1x1xf32>
    %221 = arith.cmpf ogt, %215, %220 : vector<1x1xf32>
    %cst_87 = arith.constant 1.000000e+00 : f32
    %222 = vector.broadcast %cst_87 : f32 to vector<1x1xf32>
    %223 = arith.maximumf %215, %222 : vector<1x1xf32>
    %224 = vector.broadcast %223 : vector<1x1xf32> to vector<1x8xf32>
    %225 = arith.divf %219, %224 : vector<1x8xf32>
    %226 = vector.extract_strided_slice %178 {offsets = [0, 0], sizes = [1, 8], strides = [1, 1]} : vector<4x8xf32> to vector<1x8xf32>
    %227 = vector.shape_cast %221 : vector<1x1xi1> to vector<1x1xi1>
    %228 = vector.broadcast %227 : vector<1x1xi1> to vector<1x8xi1>
    %229 = arith.select %228, %225, %226 : vector<1x8xi1>, vector<1x8xf32>
    %c1_i32_88 = arith.constant 1 : i32
    %230 = vector.broadcast %c1_i32_88 : i32 to vector<16x1xi32>
    %231 = arith.cmpi eq, %209, %230 : vector<16x1xi32>
    %232 = arith.extui %231 : vector<16x1xi1> to vector<16x1xi32>
    %233 = arith.sitofp %232 : vector<16x1xi32> to vector<16x1xf32>
    %cst_89 = arith.constant dense<0.000000e+00> : vector<1xf32>
    %234 = vector.multi_reduction <add>, %233, %cst_89 [0] : vector<16x1xf32> to vector<1xf32>
    %235 = vector.shape_cast %234 : vector<1xf32> to vector<1x1xf32>
    %236 = vector.broadcast %233 : vector<16x1xf32> to vector<16x8xf32>
    %237 = arith.mulf %236, %37 : vector<16x8xf32>
    %cst_90 = arith.constant dense<0.000000e+00> : vector<8xf32>
    %238 = vector.multi_reduction <add>, %237, %cst_90 [0] : vector<16x8xf32> to vector<8xf32>
    %239 = vector.shape_cast %238 : vector<8xf32> to vector<1x8xf32>
    %cst_91 = arith.constant 0.000000e+00 : f32
    %240 = vector.broadcast %cst_91 : f32 to vector<1x1xf32>
    %241 = arith.cmpf ogt, %235, %240 : vector<1x1xf32>
    %cst_92 = arith.constant 1.000000e+00 : f32
    %242 = vector.broadcast %cst_92 : f32 to vector<1x1xf32>
    %243 = arith.maximumf %235, %242 : vector<1x1xf32>
    %244 = vector.broadcast %243 : vector<1x1xf32> to vector<1x8xf32>
    %245 = arith.divf %239, %244 : vector<1x8xf32>
    %246 = vector.extract_strided_slice %178 {offsets = [1, 0], sizes = [1, 8], strides = [1, 1]} : vector<4x8xf32> to vector<1x8xf32>
    %247 = vector.shape_cast %241 : vector<1x1xi1> to vector<1x1xi1>
    %248 = vector.broadcast %247 : vector<1x1xi1> to vector<1x8xi1>
    %249 = arith.select %248, %245, %246 : vector<1x8xi1>, vector<1x8xf32>
    %c2_i32_93 = arith.constant 2 : i32
    %250 = vector.broadcast %c2_i32_93 : i32 to vector<16x1xi32>
    %251 = arith.cmpi eq, %209, %250 : vector<16x1xi32>
    %252 = arith.extui %251 : vector<16x1xi1> to vector<16x1xi32>
    %253 = arith.sitofp %252 : vector<16x1xi32> to vector<16x1xf32>
    %cst_94 = arith.constant dense<0.000000e+00> : vector<1xf32>
    %254 = vector.multi_reduction <add>, %253, %cst_94 [0] : vector<16x1xf32> to vector<1xf32>
    %255 = vector.shape_cast %254 : vector<1xf32> to vector<1x1xf32>
    %256 = vector.broadcast %253 : vector<16x1xf32> to vector<16x8xf32>
    %257 = arith.mulf %256, %37 : vector<16x8xf32>
    %cst_95 = arith.constant dense<0.000000e+00> : vector<8xf32>
    %258 = vector.multi_reduction <add>, %257, %cst_95 [0] : vector<16x8xf32> to vector<8xf32>
    %259 = vector.shape_cast %258 : vector<8xf32> to vector<1x8xf32>
    %cst_96 = arith.constant 0.000000e+00 : f32
    %260 = vector.broadcast %cst_96 : f32 to vector<1x1xf32>
    %261 = arith.cmpf ogt, %255, %260 : vector<1x1xf32>
    %cst_97 = arith.constant 1.000000e+00 : f32
    %262 = vector.broadcast %cst_97 : f32 to vector<1x1xf32>
    %263 = arith.maximumf %255, %262 : vector<1x1xf32>
    %264 = vector.broadcast %263 : vector<1x1xf32> to vector<1x8xf32>
    %265 = arith.divf %259, %264 : vector<1x8xf32>
    %266 = vector.extract_strided_slice %178 {offsets = [2, 0], sizes = [1, 8], strides = [1, 1]} : vector<4x8xf32> to vector<1x8xf32>
    %267 = vector.shape_cast %261 : vector<1x1xi1> to vector<1x1xi1>
    %268 = vector.broadcast %267 : vector<1x1xi1> to vector<1x8xi1>
    %269 = arith.select %268, %265, %266 : vector<1x8xi1>, vector<1x8xf32>
    %270 = vector.extract_strided_slice %178 {offsets = [3, 0], sizes = [1, 8], strides = [1, 1]} : vector<4x8xf32> to vector<1x8xf32>
    %271 = tpu.concatenate %229, %249, %269, %270 in 0 : vector<1x8xf32>, vector<1x8xf32>, vector<1x8xf32>, vector<1x8xf32> -> vector<4x8xf32>
    %cst_98 = arith.constant 0x7F800000 : f32
    %272 = vector.broadcast %cst_98 : f32 to vector<16x1xf32>
    %c0_i32_99 = arith.constant 0 : i32
    %273 = vector.broadcast %c0_i32_99 : i32 to vector<16x1xi32>
    %274 = vector.extract_strided_slice %271 {offsets = [0, 0], sizes = [1, 8], strides = [1, 1]} : vector<4x8xf32> to vector<1x8xf32>
    %275 = vector.broadcast %274 : vector<1x8xf32> to vector<16x8xf32>
    %276 = arith.subf %37, %275 : vector<16x8xf32>
    %277 = arith.mulf %276, %276 : vector<16x8xf32>
    %cst_100 = arith.constant dense<0.000000e+00> : vector<16xf32>
    %278 = vector.multi_reduction <add>, %277, %cst_100 [1] : vector<16x8xf32> to vector<16xf32>
    %279 = vector.shape_cast %278 : vector<16xf32> to vector<16x1xf32>
    %280 = arith.cmpf olt, %279, %272 : vector<16x1xf32>
    %281 = arith.select %280, %279, %272 : vector<16x1xi1>, vector<16x1xf32>
    %c0_i32_101 = arith.constant 0 : i32
    %282 = vector.broadcast %c0_i32_101 : i32 to vector<16x1xi32>
    %283 = arith.select %280, %282, %273 : vector<16x1xi1>, vector<16x1xi32>
    %284 = vector.extract_strided_slice %271 {offsets = [1, 0], sizes = [1, 8], strides = [1, 1]} : vector<4x8xf32> to vector<1x8xf32>
    %285 = vector.broadcast %284 : vector<1x8xf32> to vector<16x8xf32>
    %286 = arith.subf %37, %285 : vector<16x8xf32>
    %287 = arith.mulf %286, %286 : vector<16x8xf32>
    %cst_102 = arith.constant dense<0.000000e+00> : vector<16xf32>
    %288 = vector.multi_reduction <add>, %287, %cst_102 [1] : vector<16x8xf32> to vector<16xf32>
    %289 = vector.shape_cast %288 : vector<16xf32> to vector<16x1xf32>
    %290 = arith.cmpf olt, %289, %281 : vector<16x1xf32>
    %291 = arith.select %290, %289, %281 : vector<16x1xi1>, vector<16x1xf32>
    %c1_i32_103 = arith.constant 1 : i32
    %292 = vector.broadcast %c1_i32_103 : i32 to vector<16x1xi32>
    %293 = arith.select %290, %292, %283 : vector<16x1xi1>, vector<16x1xi32>
    %294 = vector.extract_strided_slice %271 {offsets = [2, 0], sizes = [1, 8], strides = [1, 1]} : vector<4x8xf32> to vector<1x8xf32>
    %295 = vector.broadcast %294 : vector<1x8xf32> to vector<16x8xf32>
    %296 = arith.subf %37, %295 : vector<16x8xf32>
    %297 = arith.mulf %296, %296 : vector<16x8xf32>
    %cst_104 = arith.constant dense<0.000000e+00> : vector<16xf32>
    %298 = vector.multi_reduction <add>, %297, %cst_104 [1] : vector<16x8xf32> to vector<16xf32>
    %299 = vector.shape_cast %298 : vector<16xf32> to vector<16x1xf32>
    %300 = arith.cmpf olt, %299, %291 : vector<16x1xf32>
    %c2_i32_105 = arith.constant 2 : i32
    %301 = vector.broadcast %c2_i32_105 : i32 to vector<16x1xi32>
    %302 = arith.select %300, %301, %293 : vector<16x1xi1>, vector<16x1xi32>
    %c0_i32_106 = arith.constant 0 : i32
    %303 = vector.broadcast %c0_i32_106 : i32 to vector<16x1xi32>
    %304 = arith.cmpi eq, %302, %303 : vector<16x1xi32>
    %305 = arith.extui %304 : vector<16x1xi1> to vector<16x1xi32>
    %306 = arith.sitofp %305 : vector<16x1xi32> to vector<16x1xf32>
    %cst_107 = arith.constant dense<0.000000e+00> : vector<1xf32>
    %307 = vector.multi_reduction <add>, %306, %cst_107 [0] : vector<16x1xf32> to vector<1xf32>
    %308 = vector.shape_cast %307 : vector<1xf32> to vector<1x1xf32>
    %309 = vector.broadcast %306 : vector<16x1xf32> to vector<16x8xf32>
    %310 = arith.mulf %309, %37 : vector<16x8xf32>
    %cst_108 = arith.constant dense<0.000000e+00> : vector<8xf32>
    %311 = vector.multi_reduction <add>, %310, %cst_108 [0] : vector<16x8xf32> to vector<8xf32>
    %312 = vector.shape_cast %311 : vector<8xf32> to vector<1x8xf32>
    %cst_109 = arith.constant 0.000000e+00 : f32
    %313 = vector.broadcast %cst_109 : f32 to vector<1x1xf32>
    %314 = arith.cmpf ogt, %308, %313 : vector<1x1xf32>
    %cst_110 = arith.constant 1.000000e+00 : f32
    %315 = vector.broadcast %cst_110 : f32 to vector<1x1xf32>
    %316 = arith.maximumf %308, %315 : vector<1x1xf32>
    %317 = vector.broadcast %316 : vector<1x1xf32> to vector<1x8xf32>
    %318 = arith.divf %312, %317 : vector<1x8xf32>
    %319 = vector.extract_strided_slice %271 {offsets = [0, 0], sizes = [1, 8], strides = [1, 1]} : vector<4x8xf32> to vector<1x8xf32>
    %320 = vector.shape_cast %314 : vector<1x1xi1> to vector<1x1xi1>
    %321 = vector.broadcast %320 : vector<1x1xi1> to vector<1x8xi1>
    %322 = arith.select %321, %318, %319 : vector<1x8xi1>, vector<1x8xf32>
    %c1_i32_111 = arith.constant 1 : i32
    %323 = vector.broadcast %c1_i32_111 : i32 to vector<16x1xi32>
    %324 = arith.cmpi eq, %302, %323 : vector<16x1xi32>
    %325 = arith.extui %324 : vector<16x1xi1> to vector<16x1xi32>
    %326 = arith.sitofp %325 : vector<16x1xi32> to vector<16x1xf32>
    %cst_112 = arith.constant dense<0.000000e+00> : vector<1xf32>
    %327 = vector.multi_reduction <add>, %326, %cst_112 [0] : vector<16x1xf32> to vector<1xf32>
    %328 = vector.shape_cast %327 : vector<1xf32> to vector<1x1xf32>
    %329 = vector.broadcast %326 : vector<16x1xf32> to vector<16x8xf32>
    %330 = arith.mulf %329, %37 : vector<16x8xf32>
    %cst_113 = arith.constant dense<0.000000e+00> : vector<8xf32>
    %331 = vector.multi_reduction <add>, %330, %cst_113 [0] : vector<16x8xf32> to vector<8xf32>
    %332 = vector.shape_cast %331 : vector<8xf32> to vector<1x8xf32>
    %cst_114 = arith.constant 0.000000e+00 : f32
    %333 = vector.broadcast %cst_114 : f32 to vector<1x1xf32>
    %334 = arith.cmpf ogt, %328, %333 : vector<1x1xf32>
    %cst_115 = arith.constant 1.000000e+00 : f32
    %335 = vector.broadcast %cst_115 : f32 to vector<1x1xf32>
    %336 = arith.maximumf %328, %335 : vector<1x1xf32>
    %337 = vector.broadcast %336 : vector<1x1xf32> to vector<1x8xf32>
    %338 = arith.divf %332, %337 : vector<1x8xf32>
    %339 = vector.extract_strided_slice %271 {offsets = [1, 0], sizes = [1, 8], strides = [1, 1]} : vector<4x8xf32> to vector<1x8xf32>
    %340 = vector.shape_cast %334 : vector<1x1xi1> to vector<1x1xi1>
    %341 = vector.broadcast %340 : vector<1x1xi1> to vector<1x8xi1>
    %342 = arith.select %341, %338, %339 : vector<1x8xi1>, vector<1x8xf32>
    %c2_i32_116 = arith.constant 2 : i32
    %343 = vector.broadcast %c2_i32_116 : i32 to vector<16x1xi32>
    %344 = arith.cmpi eq, %302, %343 : vector<16x1xi32>
    %345 = arith.extui %344 : vector<16x1xi1> to vector<16x1xi32>
    %346 = arith.sitofp %345 : vector<16x1xi32> to vector<16x1xf32>
    %cst_117 = arith.constant dense<0.000000e+00> : vector<1xf32>
    %347 = vector.multi_reduction <add>, %346, %cst_117 [0] : vector<16x1xf32> to vector<1xf32>
    %348 = vector.shape_cast %347 : vector<1xf32> to vector<1x1xf32>
    %349 = vector.broadcast %346 : vector<16x1xf32> to vector<16x8xf32>
    %350 = arith.mulf %349, %37 : vector<16x8xf32>
    %cst_118 = arith.constant dense<0.000000e+00> : vector<8xf32>
    %351 = vector.multi_reduction <add>, %350, %cst_118 [0] : vector<16x8xf32> to vector<8xf32>
    %352 = vector.shape_cast %351 : vector<8xf32> to vector<1x8xf32>
    %cst_119 = arith.constant 0.000000e+00 : f32
    %353 = vector.broadcast %cst_119 : f32 to vector<1x1xf32>
    %354 = arith.cmpf ogt, %348, %353 : vector<1x1xf32>
    %cst_120 = arith.constant 1.000000e+00 : f32
    %355 = vector.broadcast %cst_120 : f32 to vector<1x1xf32>
    %356 = arith.maximumf %348, %355 : vector<1x1xf32>
    %357 = vector.broadcast %356 : vector<1x1xf32> to vector<1x8xf32>
    %358 = arith.divf %352, %357 : vector<1x8xf32>
    %359 = vector.extract_strided_slice %271 {offsets = [2, 0], sizes = [1, 8], strides = [1, 1]} : vector<4x8xf32> to vector<1x8xf32>
    %360 = vector.shape_cast %354 : vector<1x1xi1> to vector<1x1xi1>
    %361 = vector.broadcast %360 : vector<1x1xi1> to vector<1x8xi1>
    %362 = arith.select %361, %358, %359 : vector<1x8xi1>, vector<1x8xf32>
    %363 = vector.extract_strided_slice %271 {offsets = [3, 0], sizes = [1, 8], strides = [1, 1]} : vector<4x8xf32> to vector<1x8xf32>
    %364 = tpu.concatenate %322, %342, %362, %363 in 0 : vector<1x8xf32>, vector<1x8xf32>, vector<1x8xf32>, vector<1x8xf32> -> vector<4x8xf32>
    %cst_121 = arith.constant 0x7F800000 : f32
    %365 = vector.broadcast %cst_121 : f32 to vector<16x1xf32>
    %c0_i32_122 = arith.constant 0 : i32
    %366 = vector.broadcast %c0_i32_122 : i32 to vector<16x1xi32>
    %367 = vector.extract_strided_slice %364 {offsets = [0, 0], sizes = [1, 8], strides = [1, 1]} : vector<4x8xf32> to vector<1x8xf32>
    %368 = vector.broadcast %367 : vector<1x8xf32> to vector<16x8xf32>
    %369 = arith.subf %37, %368 : vector<16x8xf32>
    %370 = arith.mulf %369, %369 : vector<16x8xf32>
    %cst_123 = arith.constant dense<0.000000e+00> : vector<16xf32>
    %371 = vector.multi_reduction <add>, %370, %cst_123 [1] : vector<16x8xf32> to vector<16xf32>
    %372 = vector.shape_cast %371 : vector<16xf32> to vector<16x1xf32>
    %373 = arith.cmpf olt, %372, %365 : vector<16x1xf32>
    %374 = arith.select %373, %372, %365 : vector<16x1xi1>, vector<16x1xf32>
    %c0_i32_124 = arith.constant 0 : i32
    %375 = vector.broadcast %c0_i32_124 : i32 to vector<16x1xi32>
    %376 = arith.select %373, %375, %366 : vector<16x1xi1>, vector<16x1xi32>
    %377 = vector.extract_strided_slice %364 {offsets = [1, 0], sizes = [1, 8], strides = [1, 1]} : vector<4x8xf32> to vector<1x8xf32>
    %378 = vector.broadcast %377 : vector<1x8xf32> to vector<16x8xf32>
    %379 = arith.subf %37, %378 : vector<16x8xf32>
    %380 = arith.mulf %379, %379 : vector<16x8xf32>
    %cst_125 = arith.constant dense<0.000000e+00> : vector<16xf32>
    %381 = vector.multi_reduction <add>, %380, %cst_125 [1] : vector<16x8xf32> to vector<16xf32>
    %382 = vector.shape_cast %381 : vector<16xf32> to vector<16x1xf32>
    %383 = arith.cmpf olt, %382, %374 : vector<16x1xf32>
    %384 = arith.select %383, %382, %374 : vector<16x1xi1>, vector<16x1xf32>
    %c1_i32_126 = arith.constant 1 : i32
    %385 = vector.broadcast %c1_i32_126 : i32 to vector<16x1xi32>
    %386 = arith.select %383, %385, %376 : vector<16x1xi1>, vector<16x1xi32>
    %387 = vector.extract_strided_slice %364 {offsets = [2, 0], sizes = [1, 8], strides = [1, 1]} : vector<4x8xf32> to vector<1x8xf32>
    %388 = vector.broadcast %387 : vector<1x8xf32> to vector<16x8xf32>
    %389 = arith.subf %37, %388 : vector<16x8xf32>
    %390 = arith.mulf %389, %389 : vector<16x8xf32>
    %cst_127 = arith.constant dense<0.000000e+00> : vector<16xf32>
    %391 = vector.multi_reduction <add>, %390, %cst_127 [1] : vector<16x8xf32> to vector<16xf32>
    %392 = vector.shape_cast %391 : vector<16xf32> to vector<16x1xf32>
    %393 = arith.cmpf olt, %392, %384 : vector<16x1xf32>
    %c2_i32_128 = arith.constant 2 : i32
    %394 = vector.broadcast %c2_i32_128 : i32 to vector<16x1xi32>
    %395 = arith.select %393, %394, %386 : vector<16x1xi1>, vector<16x1xi32>
    %c0_i32_129 = arith.constant 0 : i32
    %396 = vector.broadcast %c0_i32_129 : i32 to vector<16x1xi32>
    %397 = arith.cmpi eq, %395, %396 : vector<16x1xi32>
    %398 = arith.extui %397 : vector<16x1xi1> to vector<16x1xi32>
    %399 = arith.sitofp %398 : vector<16x1xi32> to vector<16x1xf32>
    %cst_130 = arith.constant dense<0.000000e+00> : vector<1xf32>
    %400 = vector.multi_reduction <add>, %399, %cst_130 [0] : vector<16x1xf32> to vector<1xf32>
    %401 = vector.shape_cast %400 : vector<1xf32> to vector<1x1xf32>
    %402 = vector.broadcast %399 : vector<16x1xf32> to vector<16x8xf32>
    %403 = arith.mulf %402, %37 : vector<16x8xf32>
    %cst_131 = arith.constant dense<0.000000e+00> : vector<8xf32>
    %404 = vector.multi_reduction <add>, %403, %cst_131 [0] : vector<16x8xf32> to vector<8xf32>
    %405 = vector.shape_cast %404 : vector<8xf32> to vector<1x8xf32>
    %cst_132 = arith.constant 0.000000e+00 : f32
    %406 = vector.broadcast %cst_132 : f32 to vector<1x1xf32>
    %407 = arith.cmpf ogt, %401, %406 : vector<1x1xf32>
    %cst_133 = arith.constant 1.000000e+00 : f32
    %408 = vector.broadcast %cst_133 : f32 to vector<1x1xf32>
    %409 = arith.maximumf %401, %408 : vector<1x1xf32>
    %410 = vector.broadcast %409 : vector<1x1xf32> to vector<1x8xf32>
    %411 = arith.divf %405, %410 : vector<1x8xf32>
    %412 = vector.extract_strided_slice %364 {offsets = [0, 0], sizes = [1, 8], strides = [1, 1]} : vector<4x8xf32> to vector<1x8xf32>
    %413 = vector.shape_cast %407 : vector<1x1xi1> to vector<1x1xi1>
    %414 = vector.broadcast %413 : vector<1x1xi1> to vector<1x8xi1>
    %415 = arith.select %414, %411, %412 : vector<1x8xi1>, vector<1x8xf32>
    %c1_i32_134 = arith.constant 1 : i32
    %416 = vector.broadcast %c1_i32_134 : i32 to vector<16x1xi32>
    %417 = arith.cmpi eq, %395, %416 : vector<16x1xi32>
    %418 = arith.extui %417 : vector<16x1xi1> to vector<16x1xi32>
    %419 = arith.sitofp %418 : vector<16x1xi32> to vector<16x1xf32>
    %cst_135 = arith.constant dense<0.000000e+00> : vector<1xf32>
    %420 = vector.multi_reduction <add>, %419, %cst_135 [0] : vector<16x1xf32> to vector<1xf32>
    %421 = vector.shape_cast %420 : vector<1xf32> to vector<1x1xf32>
    %422 = vector.broadcast %419 : vector<16x1xf32> to vector<16x8xf32>
    %423 = arith.mulf %422, %37 : vector<16x8xf32>
    %cst_136 = arith.constant dense<0.000000e+00> : vector<8xf32>
    %424 = vector.multi_reduction <add>, %423, %cst_136 [0] : vector<16x8xf32> to vector<8xf32>
    %425 = vector.shape_cast %424 : vector<8xf32> to vector<1x8xf32>
    %cst_137 = arith.constant 0.000000e+00 : f32
    %426 = vector.broadcast %cst_137 : f32 to vector<1x1xf32>
    %427 = arith.cmpf ogt, %421, %426 : vector<1x1xf32>
    %cst_138 = arith.constant 1.000000e+00 : f32
    %428 = vector.broadcast %cst_138 : f32 to vector<1x1xf32>
    %429 = arith.maximumf %421, %428 : vector<1x1xf32>
    %430 = vector.broadcast %429 : vector<1x1xf32> to vector<1x8xf32>
    %431 = arith.divf %425, %430 : vector<1x8xf32>
    %432 = vector.extract_strided_slice %364 {offsets = [1, 0], sizes = [1, 8], strides = [1, 1]} : vector<4x8xf32> to vector<1x8xf32>
    %433 = vector.shape_cast %427 : vector<1x1xi1> to vector<1x1xi1>
    %434 = vector.broadcast %433 : vector<1x1xi1> to vector<1x8xi1>
    %435 = arith.select %434, %431, %432 : vector<1x8xi1>, vector<1x8xf32>
    %c2_i32_139 = arith.constant 2 : i32
    %436 = vector.broadcast %c2_i32_139 : i32 to vector<16x1xi32>
    %437 = arith.cmpi eq, %395, %436 : vector<16x1xi32>
    %438 = arith.extui %437 : vector<16x1xi1> to vector<16x1xi32>
    %439 = arith.sitofp %438 : vector<16x1xi32> to vector<16x1xf32>
    %cst_140 = arith.constant dense<0.000000e+00> : vector<1xf32>
    %440 = vector.multi_reduction <add>, %439, %cst_140 [0] : vector<16x1xf32> to vector<1xf32>
    %441 = vector.shape_cast %440 : vector<1xf32> to vector<1x1xf32>
    %442 = vector.broadcast %439 : vector<16x1xf32> to vector<16x8xf32>
    %443 = arith.mulf %442, %37 : vector<16x8xf32>
    %cst_141 = arith.constant dense<0.000000e+00> : vector<8xf32>
    %444 = vector.multi_reduction <add>, %443, %cst_141 [0] : vector<16x8xf32> to vector<8xf32>
    %445 = vector.shape_cast %444 : vector<8xf32> to vector<1x8xf32>
    %cst_142 = arith.constant 0.000000e+00 : f32
    %446 = vector.broadcast %cst_142 : f32 to vector<1x1xf32>
    %447 = arith.cmpf ogt, %441, %446 : vector<1x1xf32>
    %cst_143 = arith.constant 1.000000e+00 : f32
    %448 = vector.broadcast %cst_143 : f32 to vector<1x1xf32>
    %449 = arith.maximumf %441, %448 : vector<1x1xf32>
    %450 = vector.broadcast %449 : vector<1x1xf32> to vector<1x8xf32>
    %451 = arith.divf %445, %450 : vector<1x8xf32>
    %452 = vector.extract_strided_slice %364 {offsets = [2, 0], sizes = [1, 8], strides = [1, 1]} : vector<4x8xf32> to vector<1x8xf32>
    %453 = vector.shape_cast %447 : vector<1x1xi1> to vector<1x1xi1>
    %454 = vector.broadcast %453 : vector<1x1xi1> to vector<1x8xi1>
    %455 = arith.select %454, %451, %452 : vector<1x8xi1>, vector<1x8xf32>
    %456 = vector.extract_strided_slice %364 {offsets = [3, 0], sizes = [1, 8], strides = [1, 1]} : vector<4x8xf32> to vector<1x8xf32>
    %457 = tpu.concatenate %415, %435, %455, %456 in 0 : vector<1x8xf32>, vector<1x8xf32>, vector<1x8xf32>, vector<1x8xf32> -> vector<4x8xf32>
    %cst_144 = arith.constant 0x7F800000 : f32
    %458 = vector.broadcast %cst_144 : f32 to vector<16x1xf32>
    %c0_i32_145 = arith.constant 0 : i32
    %459 = vector.broadcast %c0_i32_145 : i32 to vector<16x1xi32>
    %460 = vector.extract_strided_slice %457 {offsets = [0, 0], sizes = [1, 8], strides = [1, 1]} : vector<4x8xf32> to vector<1x8xf32>
    %461 = vector.broadcast %460 : vector<1x8xf32> to vector<16x8xf32>
    %462 = arith.subf %37, %461 : vector<16x8xf32>
    %463 = arith.mulf %462, %462 : vector<16x8xf32>
    %cst_146 = arith.constant dense<0.000000e+00> : vector<16xf32>
    %464 = vector.multi_reduction <add>, %463, %cst_146 [1] : vector<16x8xf32> to vector<16xf32>
    %465 = vector.shape_cast %464 : vector<16xf32> to vector<16x1xf32>
    %466 = arith.cmpf olt, %465, %458 : vector<16x1xf32>
    %467 = arith.select %466, %465, %458 : vector<16x1xi1>, vector<16x1xf32>
    %c0_i32_147 = arith.constant 0 : i32
    %468 = vector.broadcast %c0_i32_147 : i32 to vector<16x1xi32>
    %469 = arith.select %466, %468, %459 : vector<16x1xi1>, vector<16x1xi32>
    %470 = vector.extract_strided_slice %457 {offsets = [1, 0], sizes = [1, 8], strides = [1, 1]} : vector<4x8xf32> to vector<1x8xf32>
    %471 = vector.broadcast %470 : vector<1x8xf32> to vector<16x8xf32>
    %472 = arith.subf %37, %471 : vector<16x8xf32>
    %473 = arith.mulf %472, %472 : vector<16x8xf32>
    %cst_148 = arith.constant dense<0.000000e+00> : vector<16xf32>
    %474 = vector.multi_reduction <add>, %473, %cst_148 [1] : vector<16x8xf32> to vector<16xf32>
    %475 = vector.shape_cast %474 : vector<16xf32> to vector<16x1xf32>
    %476 = arith.cmpf olt, %475, %467 : vector<16x1xf32>
    %477 = arith.select %476, %475, %467 : vector<16x1xi1>, vector<16x1xf32>
    %c1_i32_149 = arith.constant 1 : i32
    %478 = vector.broadcast %c1_i32_149 : i32 to vector<16x1xi32>
    %479 = arith.select %476, %478, %469 : vector<16x1xi1>, vector<16x1xi32>
    %480 = vector.extract_strided_slice %457 {offsets = [2, 0], sizes = [1, 8], strides = [1, 1]} : vector<4x8xf32> to vector<1x8xf32>
    %481 = vector.broadcast %480 : vector<1x8xf32> to vector<16x8xf32>
    %482 = arith.subf %37, %481 : vector<16x8xf32>
    %483 = arith.mulf %482, %482 : vector<16x8xf32>
    %cst_150 = arith.constant dense<0.000000e+00> : vector<16xf32>
    %484 = vector.multi_reduction <add>, %483, %cst_150 [1] : vector<16x8xf32> to vector<16xf32>
    %485 = vector.shape_cast %484 : vector<16xf32> to vector<16x1xf32>
    %486 = arith.cmpf olt, %485, %477 : vector<16x1xf32>
    %c2_i32_151 = arith.constant 2 : i32
    %487 = vector.broadcast %c2_i32_151 : i32 to vector<16x1xi32>
    %488 = arith.select %486, %487, %479 : vector<16x1xi1>, vector<16x1xi32>
    %c0_i32_152 = arith.constant 0 : i32
    %489 = vector.broadcast %c0_i32_152 : i32 to vector<16x1xi32>
    %490 = arith.cmpi eq, %488, %489 : vector<16x1xi32>
    %491 = arith.extui %490 : vector<16x1xi1> to vector<16x1xi32>
    %492 = arith.sitofp %491 : vector<16x1xi32> to vector<16x1xf32>
    %cst_153 = arith.constant dense<0.000000e+00> : vector<1xf32>
    %493 = vector.multi_reduction <add>, %492, %cst_153 [0] : vector<16x1xf32> to vector<1xf32>
    %494 = vector.shape_cast %493 : vector<1xf32> to vector<1x1xf32>
    %495 = vector.broadcast %492 : vector<16x1xf32> to vector<16x8xf32>
    %496 = arith.mulf %495, %37 : vector<16x8xf32>
    %cst_154 = arith.constant dense<0.000000e+00> : vector<8xf32>
    %497 = vector.multi_reduction <add>, %496, %cst_154 [0] : vector<16x8xf32> to vector<8xf32>
    %498 = vector.shape_cast %497 : vector<8xf32> to vector<1x8xf32>
    %cst_155 = arith.constant 0.000000e+00 : f32
    %499 = vector.broadcast %cst_155 : f32 to vector<1x1xf32>
    %500 = arith.cmpf ogt, %494, %499 : vector<1x1xf32>
    %cst_156 = arith.constant 1.000000e+00 : f32
    %501 = vector.broadcast %cst_156 : f32 to vector<1x1xf32>
    %502 = arith.maximumf %494, %501 : vector<1x1xf32>
    %503 = vector.broadcast %502 : vector<1x1xf32> to vector<1x8xf32>
    %504 = arith.divf %498, %503 : vector<1x8xf32>
    %505 = vector.extract_strided_slice %457 {offsets = [0, 0], sizes = [1, 8], strides = [1, 1]} : vector<4x8xf32> to vector<1x8xf32>
    %506 = vector.shape_cast %500 : vector<1x1xi1> to vector<1x1xi1>
    %507 = vector.broadcast %506 : vector<1x1xi1> to vector<1x8xi1>
    %508 = arith.select %507, %504, %505 : vector<1x8xi1>, vector<1x8xf32>
    %c1_i32_157 = arith.constant 1 : i32
    %509 = vector.broadcast %c1_i32_157 : i32 to vector<16x1xi32>
    %510 = arith.cmpi eq, %488, %509 : vector<16x1xi32>
    %511 = arith.extui %510 : vector<16x1xi1> to vector<16x1xi32>
    %512 = arith.sitofp %511 : vector<16x1xi32> to vector<16x1xf32>
    %cst_158 = arith.constant dense<0.000000e+00> : vector<1xf32>
    %513 = vector.multi_reduction <add>, %512, %cst_158 [0] : vector<16x1xf32> to vector<1xf32>
    %514 = vector.shape_cast %513 : vector<1xf32> to vector<1x1xf32>
    %515 = vector.broadcast %512 : vector<16x1xf32> to vector<16x8xf32>
    %516 = arith.mulf %515, %37 : vector<16x8xf32>
    %cst_159 = arith.constant dense<0.000000e+00> : vector<8xf32>
    %517 = vector.multi_reduction <add>, %516, %cst_159 [0] : vector<16x8xf32> to vector<8xf32>
    %518 = vector.shape_cast %517 : vector<8xf32> to vector<1x8xf32>
    %cst_160 = arith.constant 0.000000e+00 : f32
    %519 = vector.broadcast %cst_160 : f32 to vector<1x1xf32>
    %520 = arith.cmpf ogt, %514, %519 : vector<1x1xf32>
    %cst_161 = arith.constant 1.000000e+00 : f32
    %521 = vector.broadcast %cst_161 : f32 to vector<1x1xf32>
    %522 = arith.maximumf %514, %521 : vector<1x1xf32>
    %523 = vector.broadcast %522 : vector<1x1xf32> to vector<1x8xf32>
    %524 = arith.divf %518, %523 : vector<1x8xf32>
    %525 = vector.extract_strided_slice %457 {offsets = [1, 0], sizes = [1, 8], strides = [1, 1]} : vector<4x8xf32> to vector<1x8xf32>
    %526 = vector.shape_cast %520 : vector<1x1xi1> to vector<1x1xi1>
    %527 = vector.broadcast %526 : vector<1x1xi1> to vector<1x8xi1>
    %528 = arith.select %527, %524, %525 : vector<1x8xi1>, vector<1x8xf32>
    %c2_i32_162 = arith.constant 2 : i32
    %529 = vector.broadcast %c2_i32_162 : i32 to vector<16x1xi32>
    %530 = arith.cmpi eq, %488, %529 : vector<16x1xi32>
    %531 = arith.extui %530 : vector<16x1xi1> to vector<16x1xi32>
    %532 = arith.sitofp %531 : vector<16x1xi32> to vector<16x1xf32>
    %cst_163 = arith.constant dense<0.000000e+00> : vector<1xf32>
    %533 = vector.multi_reduction <add>, %532, %cst_163 [0] : vector<16x1xf32> to vector<1xf32>
    %534 = vector.shape_cast %533 : vector<1xf32> to vector<1x1xf32>
    %535 = vector.broadcast %532 : vector<16x1xf32> to vector<16x8xf32>
    %536 = arith.mulf %535, %37 : vector<16x8xf32>
    %cst_164 = arith.constant dense<0.000000e+00> : vector<8xf32>
    %537 = vector.multi_reduction <add>, %536, %cst_164 [0] : vector<16x8xf32> to vector<8xf32>
    %538 = vector.shape_cast %537 : vector<8xf32> to vector<1x8xf32>
    %cst_165 = arith.constant 0.000000e+00 : f32
    %539 = vector.broadcast %cst_165 : f32 to vector<1x1xf32>
    %540 = arith.cmpf ogt, %534, %539 : vector<1x1xf32>
    %cst_166 = arith.constant 1.000000e+00 : f32
    %541 = vector.broadcast %cst_166 : f32 to vector<1x1xf32>
    %542 = arith.maximumf %534, %541 : vector<1x1xf32>
    %543 = vector.broadcast %542 : vector<1x1xf32> to vector<1x8xf32>
    %544 = arith.divf %538, %543 : vector<1x8xf32>
    %545 = vector.extract_strided_slice %457 {offsets = [2, 0], sizes = [1, 8], strides = [1, 1]} : vector<4x8xf32> to vector<1x8xf32>
    %546 = vector.shape_cast %540 : vector<1x1xi1> to vector<1x1xi1>
    %547 = vector.broadcast %546 : vector<1x1xi1> to vector<1x8xi1>
    %548 = arith.select %547, %544, %545 : vector<1x8xi1>, vector<1x8xf32>
    %549 = vector.extract_strided_slice %457 {offsets = [3, 0], sizes = [1, 8], strides = [1, 1]} : vector<4x8xf32> to vector<1x8xf32>
    %550 = tpu.concatenate %508, %528, %548, %549 in 0 : vector<1x8xf32>, vector<1x8xf32>, vector<1x8xf32>, vector<1x8xf32> -> vector<4x8xf32>
    %cst_167 = arith.constant 0x7F800000 : f32
    %551 = vector.broadcast %cst_167 : f32 to vector<16x1xf32>
    %c0_i32_168 = arith.constant 0 : i32
    %552 = vector.broadcast %c0_i32_168 : i32 to vector<16x1xi32>
    %553 = vector.extract_strided_slice %550 {offsets = [0, 0], sizes = [1, 8], strides = [1, 1]} : vector<4x8xf32> to vector<1x8xf32>
    %554 = vector.broadcast %553 : vector<1x8xf32> to vector<16x8xf32>
    %555 = arith.subf %37, %554 : vector<16x8xf32>
    %556 = arith.mulf %555, %555 : vector<16x8xf32>
    %cst_169 = arith.constant dense<0.000000e+00> : vector<16xf32>
    %557 = vector.multi_reduction <add>, %556, %cst_169 [1] : vector<16x8xf32> to vector<16xf32>
    %558 = vector.shape_cast %557 : vector<16xf32> to vector<16x1xf32>
    %559 = arith.cmpf olt, %558, %551 : vector<16x1xf32>
    %560 = arith.select %559, %558, %551 : vector<16x1xi1>, vector<16x1xf32>
    %c0_i32_170 = arith.constant 0 : i32
    %561 = vector.broadcast %c0_i32_170 : i32 to vector<16x1xi32>
    %562 = arith.select %559, %561, %552 : vector<16x1xi1>, vector<16x1xi32>
    %563 = vector.extract_strided_slice %550 {offsets = [1, 0], sizes = [1, 8], strides = [1, 1]} : vector<4x8xf32> to vector<1x8xf32>
    %564 = vector.broadcast %563 : vector<1x8xf32> to vector<16x8xf32>
    %565 = arith.subf %37, %564 : vector<16x8xf32>
    %566 = arith.mulf %565, %565 : vector<16x8xf32>
    %cst_171 = arith.constant dense<0.000000e+00> : vector<16xf32>
    %567 = vector.multi_reduction <add>, %566, %cst_171 [1] : vector<16x8xf32> to vector<16xf32>
    %568 = vector.shape_cast %567 : vector<16xf32> to vector<16x1xf32>
    %569 = arith.cmpf olt, %568, %560 : vector<16x1xf32>
    %570 = arith.select %569, %568, %560 : vector<16x1xi1>, vector<16x1xf32>
    %c1_i32_172 = arith.constant 1 : i32
    %571 = vector.broadcast %c1_i32_172 : i32 to vector<16x1xi32>
    %572 = arith.select %569, %571, %562 : vector<16x1xi1>, vector<16x1xi32>
    %573 = vector.extract_strided_slice %550 {offsets = [2, 0], sizes = [1, 8], strides = [1, 1]} : vector<4x8xf32> to vector<1x8xf32>
    %574 = vector.broadcast %573 : vector<1x8xf32> to vector<16x8xf32>
    %575 = arith.subf %37, %574 : vector<16x8xf32>
    %576 = arith.mulf %575, %575 : vector<16x8xf32>
    %cst_173 = arith.constant dense<0.000000e+00> : vector<16xf32>
    %577 = vector.multi_reduction <add>, %576, %cst_173 [1] : vector<16x8xf32> to vector<16xf32>
    %578 = vector.shape_cast %577 : vector<16xf32> to vector<16x1xf32>
    %579 = arith.cmpf olt, %578, %570 : vector<16x1xf32>
    %580 = arith.select %579, %578, %570 : vector<16x1xi1>, vector<16x1xf32>
    %c2_i32_174 = arith.constant 2 : i32
    %581 = vector.broadcast %c2_i32_174 : i32 to vector<16x1xi32>
    %582 = arith.select %579, %581, %572 : vector<16x1xi1>, vector<16x1xi32>
    %cst_175 = arith.constant dense<0.000000e+00> : vector<1xf32>
    %583 = vector.multi_reduction <add>, %580, %cst_175 [0] : vector<16x1xf32> to vector<1xf32>
    %584 = vector.shape_cast %583 : vector<1xf32> to vector<1x1xf32>
    %cst_176 = arith.constant 0.000000e+00 : f32
    %585 = vector.broadcast %cst_176 : f32 to vector<1x1xf32>
    %586 = arith.subf %585, %584 : vector<1x1xf32>
    %cst_177 = arith.constant 1.600000e+01 : f32
    %587 = vector.broadcast %cst_177 : f32 to vector<1x1xf32>
    %588 = arith.divf %586, %587 : vector<1x1xf32>
    %c0_178 = arith.constant 0 : index
    %c0_179 = arith.constant 0 : index
    %c0_180 = arith.constant 0 : index
    %589 = vector.load %arg15[%c0_178, %c0_179, %c0_180] : memref<2x4x8xf32, #tpu.memory_space<vmem>>, vector<1x4x8xf32>
    %590 = vector.shape_cast %589 : vector<1x4x8xf32> to vector<4x8xf32>
    %591 = vector.shape_cast %550 : vector<4x8xf32> to vector<1x4x8xf32>
    tpu.vector_store %arg15[%c0_178, %c0_179, %c0_180], %591 {strides = array<i32>} : memref<2x4x8xf32, #tpu.memory_space<vmem>>, vector<1x4x8xf32>,
    %cst_181 = arith.constant 0x7F800000 : f32
    %592 = vector.broadcast %cst_181 : f32 to vector<16x1xf32>
    %c0_i32_182 = arith.constant 0 : i32
    %593 = vector.broadcast %c0_i32_182 : i32 to vector<16x1xi32>
    %594 = vector.extract_strided_slice %85 {offsets = [0, 0], sizes = [1, 8], strides = [1, 1]} : vector<4x8xf32> to vector<1x8xf32>
    %595 = vector.broadcast %594 : vector<1x8xf32> to vector<16x8xf32>
    %596 = arith.subf %37, %595 : vector<16x8xf32>
    %597 = arith.mulf %596, %596 : vector<16x8xf32>
    %cst_183 = arith.constant dense<0.000000e+00> : vector<16xf32>
    %598 = vector.multi_reduction <add>, %597, %cst_183 [1] : vector<16x8xf32> to vector<16xf32>
    %599 = vector.shape_cast %598 : vector<16xf32> to vector<16x1xf32>
    %600 = arith.cmpf olt, %599, %592 : vector<16x1xf32>
    %601 = arith.select %600, %599, %592 : vector<16x1xi1>, vector<16x1xf32>
    %c0_i32_184 = arith.constant 0 : i32
    %602 = vector.broadcast %c0_i32_184 : i32 to vector<16x1xi32>
    %603 = arith.select %600, %602, %593 : vector<16x1xi1>, vector<16x1xi32>
    %604 = vector.extract_strided_slice %85 {offsets = [1, 0], sizes = [1, 8], strides = [1, 1]} : vector<4x8xf32> to vector<1x8xf32>
    %605 = vector.broadcast %604 : vector<1x8xf32> to vector<16x8xf32>
    %606 = arith.subf %37, %605 : vector<16x8xf32>
    %607 = arith.mulf %606, %606 : vector<16x8xf32>
    %cst_185 = arith.constant dense<0.000000e+00> : vector<16xf32>
    %608 = vector.multi_reduction <add>, %607, %cst_185 [1] : vector<16x8xf32> to vector<16xf32>
    %609 = vector.shape_cast %608 : vector<16xf32> to vector<16x1xf32>
    %610 = arith.cmpf olt, %609, %601 : vector<16x1xf32>
    %611 = arith.select %610, %609, %601 : vector<16x1xi1>, vector<16x1xf32>
    %c1_i32_186 = arith.constant 1 : i32
    %612 = vector.broadcast %c1_i32_186 : i32 to vector<16x1xi32>
    %613 = arith.select %610, %612, %603 : vector<16x1xi1>, vector<16x1xi32>
    %614 = vector.extract_strided_slice %85 {offsets = [2, 0], sizes = [1, 8], strides = [1, 1]} : vector<4x8xf32> to vector<1x8xf32>
    %615 = vector.broadcast %614 : vector<1x8xf32> to vector<16x8xf32>
    %616 = arith.subf %37, %615 : vector<16x8xf32>
    %617 = arith.mulf %616, %616 : vector<16x8xf32>
    %cst_187 = arith.constant dense<0.000000e+00> : vector<16xf32>
    %618 = vector.multi_reduction <add>, %617, %cst_187 [1] : vector<16x8xf32> to vector<16xf32>
    %619 = vector.shape_cast %618 : vector<16xf32> to vector<16x1xf32>
    %620 = arith.cmpf olt, %619, %611 : vector<16x1xf32>
    %621 = arith.select %620, %619, %611 : vector<16x1xi1>, vector<16x1xf32>
    %c2_i32_188 = arith.constant 2 : i32
    %622 = vector.broadcast %c2_i32_188 : i32 to vector<16x1xi32>
    %623 = arith.select %620, %622, %613 : vector<16x1xi1>, vector<16x1xi32>
    %624 = vector.extract_strided_slice %85 {offsets = [3, 0], sizes = [1, 8], strides = [1, 1]} : vector<4x8xf32> to vector<1x8xf32>
    %625 = vector.broadcast %624 : vector<1x8xf32> to vector<16x8xf32>
    %626 = arith.subf %37, %625 : vector<16x8xf32>
    %627 = arith.mulf %626, %626 : vector<16x8xf32>
    %cst_189 = arith.constant dense<0.000000e+00> : vector<16xf32>
    %628 = vector.multi_reduction <add>, %627, %cst_189 [1] : vector<16x8xf32> to vector<16xf32>
    %629 = vector.shape_cast %628 : vector<16xf32> to vector<16x1xf32>
    %630 = arith.cmpf olt, %629, %621 : vector<16x1xf32>
    %c3_i32 = arith.constant 3 : i32
    %631 = vector.broadcast %c3_i32 : i32 to vector<16x1xi32>
    %632 = arith.select %630, %631, %623 : vector<16x1xi1>, vector<16x1xi32>
    %c0_i32_190 = arith.constant 0 : i32
    %633 = vector.broadcast %c0_i32_190 : i32 to vector<16x1xi32>
    %634 = arith.cmpi eq, %632, %633 : vector<16x1xi32>
    %635 = arith.extui %634 : vector<16x1xi1> to vector<16x1xi32>
    %636 = arith.sitofp %635 : vector<16x1xi32> to vector<16x1xf32>
    %cst_191 = arith.constant dense<0.000000e+00> : vector<1xf32>
    %637 = vector.multi_reduction <add>, %636, %cst_191 [0] : vector<16x1xf32> to vector<1xf32>
    %638 = vector.shape_cast %637 : vector<1xf32> to vector<1x1xf32>
    %639 = vector.broadcast %636 : vector<16x1xf32> to vector<16x8xf32>
    %640 = arith.mulf %639, %37 : vector<16x8xf32>
    %cst_192 = arith.constant dense<0.000000e+00> : vector<8xf32>
    %641 = vector.multi_reduction <add>, %640, %cst_192 [0] : vector<16x8xf32> to vector<8xf32>
    %642 = vector.shape_cast %641 : vector<8xf32> to vector<1x8xf32>
    %cst_193 = arith.constant 0.000000e+00 : f32
    %643 = vector.broadcast %cst_193 : f32 to vector<1x1xf32>
    %644 = arith.cmpf ogt, %638, %643 : vector<1x1xf32>
    %cst_194 = arith.constant 1.000000e+00 : f32
    %645 = vector.broadcast %cst_194 : f32 to vector<1x1xf32>
    %646 = arith.maximumf %638, %645 : vector<1x1xf32>
    %647 = vector.broadcast %646 : vector<1x1xf32> to vector<1x8xf32>
    %648 = arith.divf %642, %647 : vector<1x8xf32>
    %649 = vector.extract_strided_slice %85 {offsets = [0, 0], sizes = [1, 8], strides = [1, 1]} : vector<4x8xf32> to vector<1x8xf32>
    %650 = vector.shape_cast %644 : vector<1x1xi1> to vector<1x1xi1>
    %651 = vector.broadcast %650 : vector<1x1xi1> to vector<1x8xi1>
    %652 = arith.select %651, %648, %649 : vector<1x8xi1>, vector<1x8xf32>
    %c1_i32_195 = arith.constant 1 : i32
    %653 = vector.broadcast %c1_i32_195 : i32 to vector<16x1xi32>
    %654 = arith.cmpi eq, %632, %653 : vector<16x1xi32>
    %655 = arith.extui %654 : vector<16x1xi1> to vector<16x1xi32>
    %656 = arith.sitofp %655 : vector<16x1xi32> to vector<16x1xf32>
    %cst_196 = arith.constant dense<0.000000e+00> : vector<1xf32>
    %657 = vector.multi_reduction <add>, %656, %cst_196 [0] : vector<16x1xf32> to vector<1xf32>
    %658 = vector.shape_cast %657 : vector<1xf32> to vector<1x1xf32>
    %659 = vector.broadcast %656 : vector<16x1xf32> to vector<16x8xf32>
    %660 = arith.mulf %659, %37 : vector<16x8xf32>
    %cst_197 = arith.constant dense<0.000000e+00> : vector<8xf32>
    %661 = vector.multi_reduction <add>, %660, %cst_197 [0] : vector<16x8xf32> to vector<8xf32>
    %662 = vector.shape_cast %661 : vector<8xf32> to vector<1x8xf32>
    %cst_198 = arith.constant 0.000000e+00 : f32
    %663 = vector.broadcast %cst_198 : f32 to vector<1x1xf32>
    %664 = arith.cmpf ogt, %658, %663 : vector<1x1xf32>
    %cst_199 = arith.constant 1.000000e+00 : f32
    %665 = vector.broadcast %cst_199 : f32 to vector<1x1xf32>
    %666 = arith.maximumf %658, %665 : vector<1x1xf32>
    %667 = vector.broadcast %666 : vector<1x1xf32> to vector<1x8xf32>
    %668 = arith.divf %662, %667 : vector<1x8xf32>
    %669 = vector.extract_strided_slice %85 {offsets = [1, 0], sizes = [1, 8], strides = [1, 1]} : vector<4x8xf32> to vector<1x8xf32>
    %670 = vector.shape_cast %664 : vector<1x1xi1> to vector<1x1xi1>
    %671 = vector.broadcast %670 : vector<1x1xi1> to vector<1x8xi1>
    %672 = arith.select %671, %668, %669 : vector<1x8xi1>, vector<1x8xf32>
    %c2_i32_200 = arith.constant 2 : i32
    %673 = vector.broadcast %c2_i32_200 : i32 to vector<16x1xi32>
    %674 = arith.cmpi eq, %632, %673 : vector<16x1xi32>
    %675 = arith.extui %674 : vector<16x1xi1> to vector<16x1xi32>
    %676 = arith.sitofp %675 : vector<16x1xi32> to vector<16x1xf32>
    %cst_201 = arith.constant dense<0.000000e+00> : vector<1xf32>
    %677 = vector.multi_reduction <add>, %676, %cst_201 [0] : vector<16x1xf32> to vector<1xf32>
    %678 = vector.shape_cast %677 : vector<1xf32> to vector<1x1xf32>
    %679 = vector.broadcast %676 : vector<16x1xf32> to vector<16x8xf32>
    %680 = arith.mulf %679, %37 : vector<16x8xf32>
    %cst_202 = arith.constant dense<0.000000e+00> : vector<8xf32>
    %681 = vector.multi_reduction <add>, %680, %cst_202 [0] : vector<16x8xf32> to vector<8xf32>
    %682 = vector.shape_cast %681 : vector<8xf32> to vector<1x8xf32>
    %cst_203 = arith.constant 0.000000e+00 : f32
    %683 = vector.broadcast %cst_203 : f32 to vector<1x1xf32>
    %684 = arith.cmpf ogt, %678, %683 : vector<1x1xf32>
    %cst_204 = arith.constant 1.000000e+00 : f32
    %685 = vector.broadcast %cst_204 : f32 to vector<1x1xf32>
    %686 = arith.maximumf %678, %685 : vector<1x1xf32>
    %687 = vector.broadcast %686 : vector<1x1xf32> to vector<1x8xf32>
    %688 = arith.divf %682, %687 : vector<1x8xf32>
    %689 = vector.extract_strided_slice %85 {offsets = [2, 0], sizes = [1, 8], strides = [1, 1]} : vector<4x8xf32> to vector<1x8xf32>
    %690 = vector.shape_cast %684 : vector<1x1xi1> to vector<1x1xi1>
    %691 = vector.broadcast %690 : vector<1x1xi1> to vector<1x8xi1>
    %692 = arith.select %691, %688, %689 : vector<1x8xi1>, vector<1x8xf32>
    %c3_i32_205 = arith.constant 3 : i32
    %693 = vector.broadcast %c3_i32_205 : i32 to vector<16x1xi32>
    %694 = arith.cmpi eq, %632, %693 : vector<16x1xi32>
    %695 = arith.extui %694 : vector<16x1xi1> to vector<16x1xi32>
    %696 = arith.sitofp %695 : vector<16x1xi32> to vector<16x1xf32>
    %cst_206 = arith.constant dense<0.000000e+00> : vector<1xf32>
    %697 = vector.multi_reduction <add>, %696, %cst_206 [0] : vector<16x1xf32> to vector<1xf32>
    %698 = vector.shape_cast %697 : vector<1xf32> to vector<1x1xf32>
    %699 = vector.broadcast %696 : vector<16x1xf32> to vector<16x8xf32>
    %700 = arith.mulf %699, %37 : vector<16x8xf32>
    %cst_207 = arith.constant dense<0.000000e+00> : vector<8xf32>
    %701 = vector.multi_reduction <add>, %700, %cst_207 [0] : vector<16x8xf32> to vector<8xf32>
    %702 = vector.shape_cast %701 : vector<8xf32> to vector<1x8xf32>
    %cst_208 = arith.constant 0.000000e+00 : f32
    %703 = vector.broadcast %cst_208 : f32 to vector<1x1xf32>
    %704 = arith.cmpf ogt, %698, %703 : vector<1x1xf32>
    %cst_209 = arith.constant 1.000000e+00 : f32
    %705 = vector.broadcast %cst_209 : f32 to vector<1x1xf32>
    %706 = arith.maximumf %698, %705 : vector<1x1xf32>
    %707 = vector.broadcast %706 : vector<1x1xf32> to vector<1x8xf32>
    %708 = arith.divf %702, %707 : vector<1x8xf32>
    %709 = vector.extract_strided_slice %85 {offsets = [3, 0], sizes = [1, 8], strides = [1, 1]} : vector<4x8xf32> to vector<1x8xf32>
    %710 = vector.shape_cast %704 : vector<1x1xi1> to vector<1x1xi1>
    %711 = vector.broadcast %710 : vector<1x1xi1> to vector<1x8xi1>
    %712 = arith.select %711, %708, %709 : vector<1x8xi1>, vector<1x8xf32>
    %713 = tpu.concatenate %652, %672, %692, %712 in 0 : vector<1x8xf32>, vector<1x8xf32>, vector<1x8xf32>, vector<1x8xf32> -> vector<4x8xf32>
    %cst_210 = arith.constant 0x7F800000 : f32
    %714 = vector.broadcast %cst_210 : f32 to vector<16x1xf32>
    %c0_i32_211 = arith.constant 0 : i32
    %715 = vector.broadcast %c0_i32_211 : i32 to vector<16x1xi32>
    %716 = vector.extract_strided_slice %713 {offsets = [0, 0], sizes = [1, 8], strides = [1, 1]} : vector<4x8xf32> to vector<1x8xf32>
    %717 = vector.broadcast %716 : vector<1x8xf32> to vector<16x8xf32>
    %718 = arith.subf %37, %717 : vector<16x8xf32>
    %719 = arith.mulf %718, %718 : vector<16x8xf32>
    %cst_212 = arith.constant dense<0.000000e+00> : vector<16xf32>
    %720 = vector.multi_reduction <add>, %719, %cst_212 [1] : vector<16x8xf32> to vector<16xf32>
    %721 = vector.shape_cast %720 : vector<16xf32> to vector<16x1xf32>
    %722 = arith.cmpf olt, %721, %714 : vector<16x1xf32>
    %723 = arith.select %722, %721, %714 : vector<16x1xi1>, vector<16x1xf32>
    %c0_i32_213 = arith.constant 0 : i32
    %724 = vector.broadcast %c0_i32_213 : i32 to vector<16x1xi32>
    %725 = arith.select %722, %724, %715 : vector<16x1xi1>, vector<16x1xi32>
    %726 = vector.extract_strided_slice %713 {offsets = [1, 0], sizes = [1, 8], strides = [1, 1]} : vector<4x8xf32> to vector<1x8xf32>
    %727 = vector.broadcast %726 : vector<1x8xf32> to vector<16x8xf32>
    %728 = arith.subf %37, %727 : vector<16x8xf32>
    %729 = arith.mulf %728, %728 : vector<16x8xf32>
    %cst_214 = arith.constant dense<0.000000e+00> : vector<16xf32>
    %730 = vector.multi_reduction <add>, %729, %cst_214 [1] : vector<16x8xf32> to vector<16xf32>
    %731 = vector.shape_cast %730 : vector<16xf32> to vector<16x1xf32>
    %732 = arith.cmpf olt, %731, %723 : vector<16x1xf32>
    %733 = arith.select %732, %731, %723 : vector<16x1xi1>, vector<16x1xf32>
    %c1_i32_215 = arith.constant 1 : i32
    %734 = vector.broadcast %c1_i32_215 : i32 to vector<16x1xi32>
    %735 = arith.select %732, %734, %725 : vector<16x1xi1>, vector<16x1xi32>
    %736 = vector.extract_strided_slice %713 {offsets = [2, 0], sizes = [1, 8], strides = [1, 1]} : vector<4x8xf32> to vector<1x8xf32>
    %737 = vector.broadcast %736 : vector<1x8xf32> to vector<16x8xf32>
    %738 = arith.subf %37, %737 : vector<16x8xf32>
    %739 = arith.mulf %738, %738 : vector<16x8xf32>
    %cst_216 = arith.constant dense<0.000000e+00> : vector<16xf32>
    %740 = vector.multi_reduction <add>, %739, %cst_216 [1] : vector<16x8xf32> to vector<16xf32>
    %741 = vector.shape_cast %740 : vector<16xf32> to vector<16x1xf32>
    %742 = arith.cmpf olt, %741, %733 : vector<16x1xf32>
    %743 = arith.select %742, %741, %733 : vector<16x1xi1>, vector<16x1xf32>
    %c2_i32_217 = arith.constant 2 : i32
    %744 = vector.broadcast %c2_i32_217 : i32 to vector<16x1xi32>
    %745 = arith.select %742, %744, %735 : vector<16x1xi1>, vector<16x1xi32>
    %746 = vector.extract_strided_slice %713 {offsets = [3, 0], sizes = [1, 8], strides = [1, 1]} : vector<4x8xf32> to vector<1x8xf32>
    %747 = vector.broadcast %746 : vector<1x8xf32> to vector<16x8xf32>
    %748 = arith.subf %37, %747 : vector<16x8xf32>
    %749 = arith.mulf %748, %748 : vector<16x8xf32>
    %cst_218 = arith.constant dense<0.000000e+00> : vector<16xf32>
    %750 = vector.multi_reduction <add>, %749, %cst_218 [1] : vector<16x8xf32> to vector<16xf32>
    %751 = vector.shape_cast %750 : vector<16xf32> to vector<16x1xf32>
    %752 = arith.cmpf olt, %751, %743 : vector<16x1xf32>
    %c3_i32_219 = arith.constant 3 : i32
    %753 = vector.broadcast %c3_i32_219 : i32 to vector<16x1xi32>
    %754 = arith.select %752, %753, %745 : vector<16x1xi1>, vector<16x1xi32>
    %c0_i32_220 = arith.constant 0 : i32
    %755 = vector.broadcast %c0_i32_220 : i32 to vector<16x1xi32>
    %756 = arith.cmpi eq, %754, %755 : vector<16x1xi32>
    %757 = arith.extui %756 : vector<16x1xi1> to vector<16x1xi32>
    %758 = arith.sitofp %757 : vector<16x1xi32> to vector<16x1xf32>
    %cst_221 = arith.constant dense<0.000000e+00> : vector<1xf32>
    %759 = vector.multi_reduction <add>, %758, %cst_221 [0] : vector<16x1xf32> to vector<1xf32>
    %760 = vector.shape_cast %759 : vector<1xf32> to vector<1x1xf32>
    %761 = vector.broadcast %758 : vector<16x1xf32> to vector<16x8xf32>
    %762 = arith.mulf %761, %37 : vector<16x8xf32>
    %cst_222 = arith.constant dense<0.000000e+00> : vector<8xf32>
    %763 = vector.multi_reduction <add>, %762, %cst_222 [0] : vector<16x8xf32> to vector<8xf32>
    %764 = vector.shape_cast %763 : vector<8xf32> to vector<1x8xf32>
    %cst_223 = arith.constant 0.000000e+00 : f32
    %765 = vector.broadcast %cst_223 : f32 to vector<1x1xf32>
    %766 = arith.cmpf ogt, %760, %765 : vector<1x1xf32>
    %cst_224 = arith.constant 1.000000e+00 : f32
    %767 = vector.broadcast %cst_224 : f32 to vector<1x1xf32>
    %768 = arith.maximumf %760, %767 : vector<1x1xf32>
    %769 = vector.broadcast %768 : vector<1x1xf32> to vector<1x8xf32>
    %770 = arith.divf %764, %769 : vector<1x8xf32>
    %771 = vector.extract_strided_slice %713 {offsets = [0, 0], sizes = [1, 8], strides = [1, 1]} : vector<4x8xf32> to vector<1x8xf32>
    %772 = vector.shape_cast %766 : vector<1x1xi1> to vector<1x1xi1>
    %773 = vector.broadcast %772 : vector<1x1xi1> to vector<1x8xi1>
    %774 = arith.select %773, %770, %771 : vector<1x8xi1>, vector<1x8xf32>
    %c1_i32_225 = arith.constant 1 : i32
    %775 = vector.broadcast %c1_i32_225 : i32 to vector<16x1xi32>
    %776 = arith.cmpi eq, %754, %775 : vector<16x1xi32>
    %777 = arith.extui %776 : vector<16x1xi1> to vector<16x1xi32>
    %778 = arith.sitofp %777 : vector<16x1xi32> to vector<16x1xf32>
    %cst_226 = arith.constant dense<0.000000e+00> : vector<1xf32>
    %779 = vector.multi_reduction <add>, %778, %cst_226 [0] : vector<16x1xf32> to vector<1xf32>
    %780 = vector.shape_cast %779 : vector<1xf32> to vector<1x1xf32>
    %781 = vector.broadcast %778 : vector<16x1xf32> to vector<16x8xf32>
    %782 = arith.mulf %781, %37 : vector<16x8xf32>
    %cst_227 = arith.constant dense<0.000000e+00> : vector<8xf32>
    %783 = vector.multi_reduction <add>, %782, %cst_227 [0] : vector<16x8xf32> to vector<8xf32>
    %784 = vector.shape_cast %783 : vector<8xf32> to vector<1x8xf32>
    %cst_228 = arith.constant 0.000000e+00 : f32
    %785 = vector.broadcast %cst_228 : f32 to vector<1x1xf32>
    %786 = arith.cmpf ogt, %780, %785 : vector<1x1xf32>
    %cst_229 = arith.constant 1.000000e+00 : f32
    %787 = vector.broadcast %cst_229 : f32 to vector<1x1xf32>
    %788 = arith.maximumf %780, %787 : vector<1x1xf32>
    %789 = vector.broadcast %788 : vector<1x1xf32> to vector<1x8xf32>
    %790 = arith.divf %784, %789 : vector<1x8xf32>
    %791 = vector.extract_strided_slice %713 {offsets = [1, 0], sizes = [1, 8], strides = [1, 1]} : vector<4x8xf32> to vector<1x8xf32>
    %792 = vector.shape_cast %786 : vector<1x1xi1> to vector<1x1xi1>
    %793 = vector.broadcast %792 : vector<1x1xi1> to vector<1x8xi1>
    %794 = arith.select %793, %790, %791 : vector<1x8xi1>, vector<1x8xf32>
    %c2_i32_230 = arith.constant 2 : i32
    %795 = vector.broadcast %c2_i32_230 : i32 to vector<16x1xi32>
    %796 = arith.cmpi eq, %754, %795 : vector<16x1xi32>
    %797 = arith.extui %796 : vector<16x1xi1> to vector<16x1xi32>
    %798 = arith.sitofp %797 : vector<16x1xi32> to vector<16x1xf32>
    %cst_231 = arith.constant dense<0.000000e+00> : vector<1xf32>
    %799 = vector.multi_reduction <add>, %798, %cst_231 [0] : vector<16x1xf32> to vector<1xf32>
    %800 = vector.shape_cast %799 : vector<1xf32> to vector<1x1xf32>
    %801 = vector.broadcast %798 : vector<16x1xf32> to vector<16x8xf32>
    %802 = arith.mulf %801, %37 : vector<16x8xf32>
    %cst_232 = arith.constant dense<0.000000e+00> : vector<8xf32>
    %803 = vector.multi_reduction <add>, %802, %cst_232 [0] : vector<16x8xf32> to vector<8xf32>
    %804 = vector.shape_cast %803 : vector<8xf32> to vector<1x8xf32>
    %cst_233 = arith.constant 0.000000e+00 : f32
    %805 = vector.broadcast %cst_233 : f32 to vector<1x1xf32>
    %806 = arith.cmpf ogt, %800, %805 : vector<1x1xf32>
    %cst_234 = arith.constant 1.000000e+00 : f32
    %807 = vector.broadcast %cst_234 : f32 to vector<1x1xf32>
    %808 = arith.maximumf %800, %807 : vector<1x1xf32>
    %809 = vector.broadcast %808 : vector<1x1xf32> to vector<1x8xf32>
    %810 = arith.divf %804, %809 : vector<1x8xf32>
    %811 = vector.extract_strided_slice %713 {offsets = [2, 0], sizes = [1, 8], strides = [1, 1]} : vector<4x8xf32> to vector<1x8xf32>
    %812 = vector.shape_cast %806 : vector<1x1xi1> to vector<1x1xi1>
    %813 = vector.broadcast %812 : vector<1x1xi1> to vector<1x8xi1>
    %814 = arith.select %813, %810, %811 : vector<1x8xi1>, vector<1x8xf32>
    %c3_i32_235 = arith.constant 3 : i32
    %815 = vector.broadcast %c3_i32_235 : i32 to vector<16x1xi32>
    %816 = arith.cmpi eq, %754, %815 : vector<16x1xi32>
    %817 = arith.extui %816 : vector<16x1xi1> to vector<16x1xi32>
    %818 = arith.sitofp %817 : vector<16x1xi32> to vector<16x1xf32>
    %cst_236 = arith.constant dense<0.000000e+00> : vector<1xf32>
    %819 = vector.multi_reduction <add>, %818, %cst_236 [0] : vector<16x1xf32> to vector<1xf32>
    %820 = vector.shape_cast %819 : vector<1xf32> to vector<1x1xf32>
    %821 = vector.broadcast %818 : vector<16x1xf32> to vector<16x8xf32>
    %822 = arith.mulf %821, %37 : vector<16x8xf32>
    %cst_237 = arith.constant dense<0.000000e+00> : vector<8xf32>
    %823 = vector.multi_reduction <add>, %822, %cst_237 [0] : vector<16x8xf32> to vector<8xf32>
    %824 = vector.shape_cast %823 : vector<8xf32> to vector<1x8xf32>
    %cst_238 = arith.constant 0.000000e+00 : f32
    %825 = vector.broadcast %cst_238 : f32 to vector<1x1xf32>
    %826 = arith.cmpf ogt, %820, %825 : vector<1x1xf32>
    %cst_239 = arith.constant 1.000000e+00 : f32
    %827 = vector.broadcast %cst_239 : f32 to vector<1x1xf32>
    %828 = arith.maximumf %820, %827 : vector<1x1xf32>
    %829 = vector.broadcast %828 : vector<1x1xf32> to vector<1x8xf32>
    %830 = arith.divf %824, %829 : vector<1x8xf32>
    %831 = vector.extract_strided_slice %713 {offsets = [3, 0], sizes = [1, 8], strides = [1, 1]} : vector<4x8xf32> to vector<1x8xf32>
    %832 = vector.shape_cast %826 : vector<1x1xi1> to vector<1x1xi1>
    %833 = vector.broadcast %832 : vector<1x1xi1> to vector<1x8xi1>
    %834 = arith.select %833, %830, %831 : vector<1x8xi1>, vector<1x8xf32>
    %835 = tpu.concatenate %774, %794, %814, %834 in 0 : vector<1x8xf32>, vector<1x8xf32>, vector<1x8xf32>, vector<1x8xf32> -> vector<4x8xf32>
    %cst_240 = arith.constant 0x7F800000 : f32
    %836 = vector.broadcast %cst_240 : f32 to vector<16x1xf32>
    %c0_i32_241 = arith.constant 0 : i32
    %837 = vector.broadcast %c0_i32_241 : i32 to vector<16x1xi32>
    %838 = vector.extract_strided_slice %835 {offsets = [0, 0], sizes = [1, 8], strides = [1, 1]} : vector<4x8xf32> to vector<1x8xf32>
    %839 = vector.broadcast %838 : vector<1x8xf32> to vector<16x8xf32>
    %840 = arith.subf %37, %839 : vector<16x8xf32>
    %841 = arith.mulf %840, %840 : vector<16x8xf32>
    %cst_242 = arith.constant dense<0.000000e+00> : vector<16xf32>
    %842 = vector.multi_reduction <add>, %841, %cst_242 [1] : vector<16x8xf32> to vector<16xf32>
    %843 = vector.shape_cast %842 : vector<16xf32> to vector<16x1xf32>
    %844 = arith.cmpf olt, %843, %836 : vector<16x1xf32>
    %845 = arith.select %844, %843, %836 : vector<16x1xi1>, vector<16x1xf32>
    %c0_i32_243 = arith.constant 0 : i32
    %846 = vector.broadcast %c0_i32_243 : i32 to vector<16x1xi32>
    %847 = arith.select %844, %846, %837 : vector<16x1xi1>, vector<16x1xi32>
    %848 = vector.extract_strided_slice %835 {offsets = [1, 0], sizes = [1, 8], strides = [1, 1]} : vector<4x8xf32> to vector<1x8xf32>
    %849 = vector.broadcast %848 : vector<1x8xf32> to vector<16x8xf32>
    %850 = arith.subf %37, %849 : vector<16x8xf32>
    %851 = arith.mulf %850, %850 : vector<16x8xf32>
    %cst_244 = arith.constant dense<0.000000e+00> : vector<16xf32>
    %852 = vector.multi_reduction <add>, %851, %cst_244 [1] : vector<16x8xf32> to vector<16xf32>
    %853 = vector.shape_cast %852 : vector<16xf32> to vector<16x1xf32>
    %854 = arith.cmpf olt, %853, %845 : vector<16x1xf32>
    %855 = arith.select %854, %853, %845 : vector<16x1xi1>, vector<16x1xf32>
    %c1_i32_245 = arith.constant 1 : i32
    %856 = vector.broadcast %c1_i32_245 : i32 to vector<16x1xi32>
    %857 = arith.select %854, %856, %847 : vector<16x1xi1>, vector<16x1xi32>
    %858 = vector.extract_strided_slice %835 {offsets = [2, 0], sizes = [1, 8], strides = [1, 1]} : vector<4x8xf32> to vector<1x8xf32>
    %859 = vector.broadcast %858 : vector<1x8xf32> to vector<16x8xf32>
    %860 = arith.subf %37, %859 : vector<16x8xf32>
    %861 = arith.mulf %860, %860 : vector<16x8xf32>
    %cst_246 = arith.constant dense<0.000000e+00> : vector<16xf32>
    %862 = vector.multi_reduction <add>, %861, %cst_246 [1] : vector<16x8xf32> to vector<16xf32>
    %863 = vector.shape_cast %862 : vector<16xf32> to vector<16x1xf32>
    %864 = arith.cmpf olt, %863, %855 : vector<16x1xf32>
    %865 = arith.select %864, %863, %855 : vector<16x1xi1>, vector<16x1xf32>
    %c2_i32_247 = arith.constant 2 : i32
    %866 = vector.broadcast %c2_i32_247 : i32 to vector<16x1xi32>
    %867 = arith.select %864, %866, %857 : vector<16x1xi1>, vector<16x1xi32>
    %868 = vector.extract_strided_slice %835 {offsets = [3, 0], sizes = [1, 8], strides = [1, 1]} : vector<4x8xf32> to vector<1x8xf32>
    %869 = vector.broadcast %868 : vector<1x8xf32> to vector<16x8xf32>
    %870 = arith.subf %37, %869 : vector<16x8xf32>
    %871 = arith.mulf %870, %870 : vector<16x8xf32>
    %cst_248 = arith.constant dense<0.000000e+00> : vector<16xf32>
    %872 = vector.multi_reduction <add>, %871, %cst_248 [1] : vector<16x8xf32> to vector<16xf32>
    %873 = vector.shape_cast %872 : vector<16xf32> to vector<16x1xf32>
    %874 = arith.cmpf olt, %873, %865 : vector<16x1xf32>
    %c3_i32_249 = arith.constant 3 : i32
    %875 = vector.broadcast %c3_i32_249 : i32 to vector<16x1xi32>
    %876 = arith.select %874, %875, %867 : vector<16x1xi1>, vector<16x1xi32>
    %c0_i32_250 = arith.constant 0 : i32
    %877 = vector.broadcast %c0_i32_250 : i32 to vector<16x1xi32>
    %878 = arith.cmpi eq, %876, %877 : vector<16x1xi32>
    %879 = arith.extui %878 : vector<16x1xi1> to vector<16x1xi32>
    %880 = arith.sitofp %879 : vector<16x1xi32> to vector<16x1xf32>
    %cst_251 = arith.constant dense<0.000000e+00> : vector<1xf32>
    %881 = vector.multi_reduction <add>, %880, %cst_251 [0] : vector<16x1xf32> to vector<1xf32>
    %882 = vector.shape_cast %881 : vector<1xf32> to vector<1x1xf32>
    %883 = vector.broadcast %880 : vector<16x1xf32> to vector<16x8xf32>
    %884 = arith.mulf %883, %37 : vector<16x8xf32>
    %cst_252 = arith.constant dense<0.000000e+00> : vector<8xf32>
    %885 = vector.multi_reduction <add>, %884, %cst_252 [0] : vector<16x8xf32> to vector<8xf32>
    %886 = vector.shape_cast %885 : vector<8xf32> to vector<1x8xf32>
    %cst_253 = arith.constant 0.000000e+00 : f32
    %887 = vector.broadcast %cst_253 : f32 to vector<1x1xf32>
    %888 = arith.cmpf ogt, %882, %887 : vector<1x1xf32>
    %cst_254 = arith.constant 1.000000e+00 : f32
    %889 = vector.broadcast %cst_254 : f32 to vector<1x1xf32>
    %890 = arith.maximumf %882, %889 : vector<1x1xf32>
    %891 = vector.broadcast %890 : vector<1x1xf32> to vector<1x8xf32>
    %892 = arith.divf %886, %891 : vector<1x8xf32>
    %893 = vector.extract_strided_slice %835 {offsets = [0, 0], sizes = [1, 8], strides = [1, 1]} : vector<4x8xf32> to vector<1x8xf32>
    %894 = vector.shape_cast %888 : vector<1x1xi1> to vector<1x1xi1>
    %895 = vector.broadcast %894 : vector<1x1xi1> to vector<1x8xi1>
    %896 = arith.select %895, %892, %893 : vector<1x8xi1>, vector<1x8xf32>
    %c1_i32_255 = arith.constant 1 : i32
    %897 = vector.broadcast %c1_i32_255 : i32 to vector<16x1xi32>
    %898 = arith.cmpi eq, %876, %897 : vector<16x1xi32>
    %899 = arith.extui %898 : vector<16x1xi1> to vector<16x1xi32>
    %900 = arith.sitofp %899 : vector<16x1xi32> to vector<16x1xf32>
    %cst_256 = arith.constant dense<0.000000e+00> : vector<1xf32>
    %901 = vector.multi_reduction <add>, %900, %cst_256 [0] : vector<16x1xf32> to vector<1xf32>
    %902 = vector.shape_cast %901 : vector<1xf32> to vector<1x1xf32>
    %903 = vector.broadcast %900 : vector<16x1xf32> to vector<16x8xf32>
    %904 = arith.mulf %903, %37 : vector<16x8xf32>
    %cst_257 = arith.constant dense<0.000000e+00> : vector<8xf32>
    %905 = vector.multi_reduction <add>, %904, %cst_257 [0] : vector<16x8xf32> to vector<8xf32>
    %906 = vector.shape_cast %905 : vector<8xf32> to vector<1x8xf32>
    %cst_258 = arith.constant 0.000000e+00 : f32
    %907 = vector.broadcast %cst_258 : f32 to vector<1x1xf32>
    %908 = arith.cmpf ogt, %902, %907 : vector<1x1xf32>
    %cst_259 = arith.constant 1.000000e+00 : f32
    %909 = vector.broadcast %cst_259 : f32 to vector<1x1xf32>
    %910 = arith.maximumf %902, %909 : vector<1x1xf32>
    %911 = vector.broadcast %910 : vector<1x1xf32> to vector<1x8xf32>
    %912 = arith.divf %906, %911 : vector<1x8xf32>
    %913 = vector.extract_strided_slice %835 {offsets = [1, 0], sizes = [1, 8], strides = [1, 1]} : vector<4x8xf32> to vector<1x8xf32>
    %914 = vector.shape_cast %908 : vector<1x1xi1> to vector<1x1xi1>
    %915 = vector.broadcast %914 : vector<1x1xi1> to vector<1x8xi1>
    %916 = arith.select %915, %912, %913 : vector<1x8xi1>, vector<1x8xf32>
    %c2_i32_260 = arith.constant 2 : i32
    %917 = vector.broadcast %c2_i32_260 : i32 to vector<16x1xi32>
    %918 = arith.cmpi eq, %876, %917 : vector<16x1xi32>
    %919 = arith.extui %918 : vector<16x1xi1> to vector<16x1xi32>
    %920 = arith.sitofp %919 : vector<16x1xi32> to vector<16x1xf32>
    %cst_261 = arith.constant dense<0.000000e+00> : vector<1xf32>
    %921 = vector.multi_reduction <add>, %920, %cst_261 [0] : vector<16x1xf32> to vector<1xf32>
    %922 = vector.shape_cast %921 : vector<1xf32> to vector<1x1xf32>
    %923 = vector.broadcast %920 : vector<16x1xf32> to vector<16x8xf32>
    %924 = arith.mulf %923, %37 : vector<16x8xf32>
    %cst_262 = arith.constant dense<0.000000e+00> : vector<8xf32>
    %925 = vector.multi_reduction <add>, %924, %cst_262 [0] : vector<16x8xf32> to vector<8xf32>
    %926 = vector.shape_cast %925 : vector<8xf32> to vector<1x8xf32>
    %cst_263 = arith.constant 0.000000e+00 : f32
    %927 = vector.broadcast %cst_263 : f32 to vector<1x1xf32>
    %928 = arith.cmpf ogt, %922, %927 : vector<1x1xf32>
    %cst_264 = arith.constant 1.000000e+00 : f32
    %929 = vector.broadcast %cst_264 : f32 to vector<1x1xf32>
    %930 = arith.maximumf %922, %929 : vector<1x1xf32>
    %931 = vector.broadcast %930 : vector<1x1xf32> to vector<1x8xf32>
    %932 = arith.divf %926, %931 : vector<1x8xf32>
    %933 = vector.extract_strided_slice %835 {offsets = [2, 0], sizes = [1, 8], strides = [1, 1]} : vector<4x8xf32> to vector<1x8xf32>
    %934 = vector.shape_cast %928 : vector<1x1xi1> to vector<1x1xi1>
    %935 = vector.broadcast %934 : vector<1x1xi1> to vector<1x8xi1>
    %936 = arith.select %935, %932, %933 : vector<1x8xi1>, vector<1x8xf32>
    %c3_i32_265 = arith.constant 3 : i32
    %937 = vector.broadcast %c3_i32_265 : i32 to vector<16x1xi32>
    %938 = arith.cmpi eq, %876, %937 : vector<16x1xi32>
    %939 = arith.extui %938 : vector<16x1xi1> to vector<16x1xi32>
    %940 = arith.sitofp %939 : vector<16x1xi32> to vector<16x1xf32>
    %cst_266 = arith.constant dense<0.000000e+00> : vector<1xf32>
    %941 = vector.multi_reduction <add>, %940, %cst_266 [0] : vector<16x1xf32> to vector<1xf32>
    %942 = vector.shape_cast %941 : vector<1xf32> to vector<1x1xf32>
    %943 = vector.broadcast %940 : vector<16x1xf32> to vector<16x8xf32>
    %944 = arith.mulf %943, %37 : vector<16x8xf32>
    %cst_267 = arith.constant dense<0.000000e+00> : vector<8xf32>
    %945 = vector.multi_reduction <add>, %944, %cst_267 [0] : vector<16x8xf32> to vector<8xf32>
    %946 = vector.shape_cast %945 : vector<8xf32> to vector<1x8xf32>
    %cst_268 = arith.constant 0.000000e+00 : f32
    %947 = vector.broadcast %cst_268 : f32 to vector<1x1xf32>
    %948 = arith.cmpf ogt, %942, %947 : vector<1x1xf32>
    %cst_269 = arith.constant 1.000000e+00 : f32
    %949 = vector.broadcast %cst_269 : f32 to vector<1x1xf32>
    %950 = arith.maximumf %942, %949 : vector<1x1xf32>
    %951 = vector.broadcast %950 : vector<1x1xf32> to vector<1x8xf32>
    %952 = arith.divf %946, %951 : vector<1x8xf32>
    %953 = vector.extract_strided_slice %835 {offsets = [3, 0], sizes = [1, 8], strides = [1, 1]} : vector<4x8xf32> to vector<1x8xf32>
    %954 = vector.shape_cast %948 : vector<1x1xi1> to vector<1x1xi1>
    %955 = vector.broadcast %954 : vector<1x1xi1> to vector<1x8xi1>
    %956 = arith.select %955, %952, %953 : vector<1x8xi1>, vector<1x8xf32>
    %957 = tpu.concatenate %896, %916, %936, %956 in 0 : vector<1x8xf32>, vector<1x8xf32>, vector<1x8xf32>, vector<1x8xf32> -> vector<4x8xf32>
    %cst_270 = arith.constant 0x7F800000 : f32
    %958 = vector.broadcast %cst_270 : f32 to vector<16x1xf32>
    %c0_i32_271 = arith.constant 0 : i32
    %959 = vector.broadcast %c0_i32_271 : i32 to vector<16x1xi32>
    %960 = vector.extract_strided_slice %957 {offsets = [0, 0], sizes = [1, 8], strides = [1, 1]} : vector<4x8xf32> to vector<1x8xf32>
    %961 = vector.broadcast %960 : vector<1x8xf32> to vector<16x8xf32>
    %962 = arith.subf %37, %961 : vector<16x8xf32>
    %963 = arith.mulf %962, %962 : vector<16x8xf32>
    %cst_272 = arith.constant dense<0.000000e+00> : vector<16xf32>
    %964 = vector.multi_reduction <add>, %963, %cst_272 [1] : vector<16x8xf32> to vector<16xf32>
    %965 = vector.shape_cast %964 : vector<16xf32> to vector<16x1xf32>
    %966 = arith.cmpf olt, %965, %958 : vector<16x1xf32>
    %967 = arith.select %966, %965, %958 : vector<16x1xi1>, vector<16x1xf32>
    %c0_i32_273 = arith.constant 0 : i32
    %968 = vector.broadcast %c0_i32_273 : i32 to vector<16x1xi32>
    %969 = arith.select %966, %968, %959 : vector<16x1xi1>, vector<16x1xi32>
    %970 = vector.extract_strided_slice %957 {offsets = [1, 0], sizes = [1, 8], strides = [1, 1]} : vector<4x8xf32> to vector<1x8xf32>
    %971 = vector.broadcast %970 : vector<1x8xf32> to vector<16x8xf32>
    %972 = arith.subf %37, %971 : vector<16x8xf32>
    %973 = arith.mulf %972, %972 : vector<16x8xf32>
    %cst_274 = arith.constant dense<0.000000e+00> : vector<16xf32>
    %974 = vector.multi_reduction <add>, %973, %cst_274 [1] : vector<16x8xf32> to vector<16xf32>
    %975 = vector.shape_cast %974 : vector<16xf32> to vector<16x1xf32>
    %976 = arith.cmpf olt, %975, %967 : vector<16x1xf32>
    %977 = arith.select %976, %975, %967 : vector<16x1xi1>, vector<16x1xf32>
    %c1_i32_275 = arith.constant 1 : i32
    %978 = vector.broadcast %c1_i32_275 : i32 to vector<16x1xi32>
    %979 = arith.select %976, %978, %969 : vector<16x1xi1>, vector<16x1xi32>
    %980 = vector.extract_strided_slice %957 {offsets = [2, 0], sizes = [1, 8], strides = [1, 1]} : vector<4x8xf32> to vector<1x8xf32>
    %981 = vector.broadcast %980 : vector<1x8xf32> to vector<16x8xf32>
    %982 = arith.subf %37, %981 : vector<16x8xf32>
    %983 = arith.mulf %982, %982 : vector<16x8xf32>
    %cst_276 = arith.constant dense<0.000000e+00> : vector<16xf32>
    %984 = vector.multi_reduction <add>, %983, %cst_276 [1] : vector<16x8xf32> to vector<16xf32>
    %985 = vector.shape_cast %984 : vector<16xf32> to vector<16x1xf32>
    %986 = arith.cmpf olt, %985, %977 : vector<16x1xf32>
    %987 = arith.select %986, %985, %977 : vector<16x1xi1>, vector<16x1xf32>
    %c2_i32_277 = arith.constant 2 : i32
    %988 = vector.broadcast %c2_i32_277 : i32 to vector<16x1xi32>
    %989 = arith.select %986, %988, %979 : vector<16x1xi1>, vector<16x1xi32>
    %990 = vector.extract_strided_slice %957 {offsets = [3, 0], sizes = [1, 8], strides = [1, 1]} : vector<4x8xf32> to vector<1x8xf32>
    %991 = vector.broadcast %990 : vector<1x8xf32> to vector<16x8xf32>
    %992 = arith.subf %37, %991 : vector<16x8xf32>
    %993 = arith.mulf %992, %992 : vector<16x8xf32>
    %cst_278 = arith.constant dense<0.000000e+00> : vector<16xf32>
    %994 = vector.multi_reduction <add>, %993, %cst_278 [1] : vector<16x8xf32> to vector<16xf32>
    %995 = vector.shape_cast %994 : vector<16xf32> to vector<16x1xf32>
    %996 = arith.cmpf olt, %995, %987 : vector<16x1xf32>
    %c3_i32_279 = arith.constant 3 : i32
    %997 = vector.broadcast %c3_i32_279 : i32 to vector<16x1xi32>
    %998 = arith.select %996, %997, %989 : vector<16x1xi1>, vector<16x1xi32>
    %c0_i32_280 = arith.constant 0 : i32
    %999 = vector.broadcast %c0_i32_280 : i32 to vector<16x1xi32>
    %1000 = arith.cmpi eq, %998, %999 : vector<16x1xi32>
    %1001 = arith.extui %1000 : vector<16x1xi1> to vector<16x1xi32>
    %1002 = arith.sitofp %1001 : vector<16x1xi32> to vector<16x1xf32>
    %cst_281 = arith.constant dense<0.000000e+00> : vector<1xf32>
    %1003 = vector.multi_reduction <add>, %1002, %cst_281 [0] : vector<16x1xf32> to vector<1xf32>
    %1004 = vector.shape_cast %1003 : vector<1xf32> to vector<1x1xf32>
    %1005 = vector.broadcast %1002 : vector<16x1xf32> to vector<16x8xf32>
    %1006 = arith.mulf %1005, %37 : vector<16x8xf32>
    %cst_282 = arith.constant dense<0.000000e+00> : vector<8xf32>
    %1007 = vector.multi_reduction <add>, %1006, %cst_282 [0] : vector<16x8xf32> to vector<8xf32>
    %1008 = vector.shape_cast %1007 : vector<8xf32> to vector<1x8xf32>
    %cst_283 = arith.constant 0.000000e+00 : f32
    %1009 = vector.broadcast %cst_283 : f32 to vector<1x1xf32>
    %1010 = arith.cmpf ogt, %1004, %1009 : vector<1x1xf32>
    %cst_284 = arith.constant 1.000000e+00 : f32
    %1011 = vector.broadcast %cst_284 : f32 to vector<1x1xf32>
    %1012 = arith.maximumf %1004, %1011 : vector<1x1xf32>
    %1013 = vector.broadcast %1012 : vector<1x1xf32> to vector<1x8xf32>
    %1014 = arith.divf %1008, %1013 : vector<1x8xf32>
    %1015 = vector.extract_strided_slice %957 {offsets = [0, 0], sizes = [1, 8], strides = [1, 1]} : vector<4x8xf32> to vector<1x8xf32>
    %1016 = vector.shape_cast %1010 : vector<1x1xi1> to vector<1x1xi1>
    %1017 = vector.broadcast %1016 : vector<1x1xi1> to vector<1x8xi1>
    %1018 = arith.select %1017, %1014, %1015 : vector<1x8xi1>, vector<1x8xf32>
    %c1_i32_285 = arith.constant 1 : i32
    %1019 = vector.broadcast %c1_i32_285 : i32 to vector<16x1xi32>
    %1020 = arith.cmpi eq, %998, %1019 : vector<16x1xi32>
    %1021 = arith.extui %1020 : vector<16x1xi1> to vector<16x1xi32>
    %1022 = arith.sitofp %1021 : vector<16x1xi32> to vector<16x1xf32>
    %cst_286 = arith.constant dense<0.000000e+00> : vector<1xf32>
    %1023 = vector.multi_reduction <add>, %1022, %cst_286 [0] : vector<16x1xf32> to vector<1xf32>
    %1024 = vector.shape_cast %1023 : vector<1xf32> to vector<1x1xf32>
    %1025 = vector.broadcast %1022 : vector<16x1xf32> to vector<16x8xf32>
    %1026 = arith.mulf %1025, %37 : vector<16x8xf32>
    %cst_287 = arith.constant dense<0.000000e+00> : vector<8xf32>
    %1027 = vector.multi_reduction <add>, %1026, %cst_287 [0] : vector<16x8xf32> to vector<8xf32>
    %1028 = vector.shape_cast %1027 : vector<8xf32> to vector<1x8xf32>
    %cst_288 = arith.constant 0.000000e+00 : f32
    %1029 = vector.broadcast %cst_288 : f32 to vector<1x1xf32>
    %1030 = arith.cmpf ogt, %1024, %1029 : vector<1x1xf32>
    %cst_289 = arith.constant 1.000000e+00 : f32
    %1031 = vector.broadcast %cst_289 : f32 to vector<1x1xf32>
    %1032 = arith.maximumf %1024, %1031 : vector<1x1xf32>
    %1033 = vector.broadcast %1032 : vector<1x1xf32> to vector<1x8xf32>
    %1034 = arith.divf %1028, %1033 : vector<1x8xf32>
    %1035 = vector.extract_strided_slice %957 {offsets = [1, 0], sizes = [1, 8], strides = [1, 1]} : vector<4x8xf32> to vector<1x8xf32>
    %1036 = vector.shape_cast %1030 : vector<1x1xi1> to vector<1x1xi1>
    %1037 = vector.broadcast %1036 : vector<1x1xi1> to vector<1x8xi1>
    %1038 = arith.select %1037, %1034, %1035 : vector<1x8xi1>, vector<1x8xf32>
    %c2_i32_290 = arith.constant 2 : i32
    %1039 = vector.broadcast %c2_i32_290 : i32 to vector<16x1xi32>
    %1040 = arith.cmpi eq, %998, %1039 : vector<16x1xi32>
    %1041 = arith.extui %1040 : vector<16x1xi1> to vector<16x1xi32>
    %1042 = arith.sitofp %1041 : vector<16x1xi32> to vector<16x1xf32>
    %cst_291 = arith.constant dense<0.000000e+00> : vector<1xf32>
    %1043 = vector.multi_reduction <add>, %1042, %cst_291 [0] : vector<16x1xf32> to vector<1xf32>
    %1044 = vector.shape_cast %1043 : vector<1xf32> to vector<1x1xf32>
    %1045 = vector.broadcast %1042 : vector<16x1xf32> to vector<16x8xf32>
    %1046 = arith.mulf %1045, %37 : vector<16x8xf32>
    %cst_292 = arith.constant dense<0.000000e+00> : vector<8xf32>
    %1047 = vector.multi_reduction <add>, %1046, %cst_292 [0] : vector<16x8xf32> to vector<8xf32>
    %1048 = vector.shape_cast %1047 : vector<8xf32> to vector<1x8xf32>
    %cst_293 = arith.constant 0.000000e+00 : f32
    %1049 = vector.broadcast %cst_293 : f32 to vector<1x1xf32>
    %1050 = arith.cmpf ogt, %1044, %1049 : vector<1x1xf32>
    %cst_294 = arith.constant 1.000000e+00 : f32
    %1051 = vector.broadcast %cst_294 : f32 to vector<1x1xf32>
    %1052 = arith.maximumf %1044, %1051 : vector<1x1xf32>
    %1053 = vector.broadcast %1052 : vector<1x1xf32> to vector<1x8xf32>
    %1054 = arith.divf %1048, %1053 : vector<1x8xf32>
    %1055 = vector.extract_strided_slice %957 {offsets = [2, 0], sizes = [1, 8], strides = [1, 1]} : vector<4x8xf32> to vector<1x8xf32>
    %1056 = vector.shape_cast %1050 : vector<1x1xi1> to vector<1x1xi1>
    %1057 = vector.broadcast %1056 : vector<1x1xi1> to vector<1x8xi1>
    %1058 = arith.select %1057, %1054, %1055 : vector<1x8xi1>, vector<1x8xf32>
    %c3_i32_295 = arith.constant 3 : i32
    %1059 = vector.broadcast %c3_i32_295 : i32 to vector<16x1xi32>
    %1060 = arith.cmpi eq, %998, %1059 : vector<16x1xi32>
    %1061 = arith.extui %1060 : vector<16x1xi1> to vector<16x1xi32>
    %1062 = arith.sitofp %1061 : vector<16x1xi32> to vector<16x1xf32>
    %cst_296 = arith.constant dense<0.000000e+00> : vector<1xf32>
    %1063 = vector.multi_reduction <add>, %1062, %cst_296 [0] : vector<16x1xf32> to vector<1xf32>
    %1064 = vector.shape_cast %1063 : vector<1xf32> to vector<1x1xf32>
    %1065 = vector.broadcast %1062 : vector<16x1xf32> to vector<16x8xf32>
    %1066 = arith.mulf %1065, %37 : vector<16x8xf32>
    %cst_297 = arith.constant dense<0.000000e+00> : vector<8xf32>
    %1067 = vector.multi_reduction <add>, %1066, %cst_297 [0] : vector<16x8xf32> to vector<8xf32>
    %1068 = vector.shape_cast %1067 : vector<8xf32> to vector<1x8xf32>
    %cst_298 = arith.constant 0.000000e+00 : f32
    %1069 = vector.broadcast %cst_298 : f32 to vector<1x1xf32>
    %1070 = arith.cmpf ogt, %1064, %1069 : vector<1x1xf32>
    %cst_299 = arith.constant 1.000000e+00 : f32
    %1071 = vector.broadcast %cst_299 : f32 to vector<1x1xf32>
    %1072 = arith.maximumf %1064, %1071 : vector<1x1xf32>
    %1073 = vector.broadcast %1072 : vector<1x1xf32> to vector<1x8xf32>
    %1074 = arith.divf %1068, %1073 : vector<1x8xf32>
    %1075 = vector.extract_strided_slice %957 {offsets = [3, 0], sizes = [1, 8], strides = [1, 1]} : vector<4x8xf32> to vector<1x8xf32>
    %1076 = vector.shape_cast %1070 : vector<1x1xi1> to vector<1x1xi1>
    %1077 = vector.broadcast %1076 : vector<1x1xi1> to vector<1x8xi1>
    %1078 = arith.select %1077, %1074, %1075 : vector<1x8xi1>, vector<1x8xf32>
    %1079 = tpu.concatenate %1018, %1038, %1058, %1078 in 0 : vector<1x8xf32>, vector<1x8xf32>, vector<1x8xf32>, vector<1x8xf32> -> vector<4x8xf32>
    %cst_300 = arith.constant 0x7F800000 : f32
    %1080 = vector.broadcast %cst_300 : f32 to vector<16x1xf32>
    %c0_i32_301 = arith.constant 0 : i32
    %1081 = vector.broadcast %c0_i32_301 : i32 to vector<16x1xi32>
    %1082 = vector.extract_strided_slice %1079 {offsets = [0, 0], sizes = [1, 8], strides = [1, 1]} : vector<4x8xf32> to vector<1x8xf32>
    %1083 = vector.broadcast %1082 : vector<1x8xf32> to vector<16x8xf32>
    %1084 = arith.subf %37, %1083 : vector<16x8xf32>
    %1085 = arith.mulf %1084, %1084 : vector<16x8xf32>
    %cst_302 = arith.constant dense<0.000000e+00> : vector<16xf32>
    %1086 = vector.multi_reduction <add>, %1085, %cst_302 [1] : vector<16x8xf32> to vector<16xf32>
    %1087 = vector.shape_cast %1086 : vector<16xf32> to vector<16x1xf32>
    %1088 = arith.cmpf olt, %1087, %1080 : vector<16x1xf32>
    %1089 = arith.select %1088, %1087, %1080 : vector<16x1xi1>, vector<16x1xf32>
    %c0_i32_303 = arith.constant 0 : i32
    %1090 = vector.broadcast %c0_i32_303 : i32 to vector<16x1xi32>
    %1091 = arith.select %1088, %1090, %1081 : vector<16x1xi1>, vector<16x1xi32>
    %1092 = vector.extract_strided_slice %1079 {offsets = [1, 0], sizes = [1, 8], strides = [1, 1]} : vector<4x8xf32> to vector<1x8xf32>
    %1093 = vector.broadcast %1092 : vector<1x8xf32> to vector<16x8xf32>
    %1094 = arith.subf %37, %1093 : vector<16x8xf32>
    %1095 = arith.mulf %1094, %1094 : vector<16x8xf32>
    %cst_304 = arith.constant dense<0.000000e+00> : vector<16xf32>
    %1096 = vector.multi_reduction <add>, %1095, %cst_304 [1] : vector<16x8xf32> to vector<16xf32>
    %1097 = vector.shape_cast %1096 : vector<16xf32> to vector<16x1xf32>
    %1098 = arith.cmpf olt, %1097, %1089 : vector<16x1xf32>
    %1099 = arith.select %1098, %1097, %1089 : vector<16x1xi1>, vector<16x1xf32>
    %c1_i32_305 = arith.constant 1 : i32
    %1100 = vector.broadcast %c1_i32_305 : i32 to vector<16x1xi32>
    %1101 = arith.select %1098, %1100, %1091 : vector<16x1xi1>, vector<16x1xi32>
    %1102 = vector.extract_strided_slice %1079 {offsets = [2, 0], sizes = [1, 8], strides = [1, 1]} : vector<4x8xf32> to vector<1x8xf32>
    %1103 = vector.broadcast %1102 : vector<1x8xf32> to vector<16x8xf32>
    %1104 = arith.subf %37, %1103 : vector<16x8xf32>
    %1105 = arith.mulf %1104, %1104 : vector<16x8xf32>
    %cst_306 = arith.constant dense<0.000000e+00> : vector<16xf32>
    %1106 = vector.multi_reduction <add>, %1105, %cst_306 [1] : vector<16x8xf32> to vector<16xf32>
    %1107 = vector.shape_cast %1106 : vector<16xf32> to vector<16x1xf32>
    %1108 = arith.cmpf olt, %1107, %1099 : vector<16x1xf32>
    %1109 = arith.select %1108, %1107, %1099 : vector<16x1xi1>, vector<16x1xf32>
    %c2_i32_307 = arith.constant 2 : i32
    %1110 = vector.broadcast %c2_i32_307 : i32 to vector<16x1xi32>
    %1111 = arith.select %1108, %1110, %1101 : vector<16x1xi1>, vector<16x1xi32>
    %1112 = vector.extract_strided_slice %1079 {offsets = [3, 0], sizes = [1, 8], strides = [1, 1]} : vector<4x8xf32> to vector<1x8xf32>
    %1113 = vector.broadcast %1112 : vector<1x8xf32> to vector<16x8xf32>
    %1114 = arith.subf %37, %1113 : vector<16x8xf32>
    %1115 = arith.mulf %1114, %1114 : vector<16x8xf32>
    %cst_308 = arith.constant dense<0.000000e+00> : vector<16xf32>
    %1116 = vector.multi_reduction <add>, %1115, %cst_308 [1] : vector<16x8xf32> to vector<16xf32>
    %1117 = vector.shape_cast %1116 : vector<16xf32> to vector<16x1xf32>
    %1118 = arith.cmpf olt, %1117, %1109 : vector<16x1xf32>
    %c3_i32_309 = arith.constant 3 : i32
    %1119 = vector.broadcast %c3_i32_309 : i32 to vector<16x1xi32>
    %1120 = arith.select %1118, %1119, %1111 : vector<16x1xi1>, vector<16x1xi32>
    %c0_i32_310 = arith.constant 0 : i32
    %1121 = vector.broadcast %c0_i32_310 : i32 to vector<16x1xi32>
    %1122 = arith.cmpi eq, %1120, %1121 : vector<16x1xi32>
    %1123 = arith.extui %1122 : vector<16x1xi1> to vector<16x1xi32>
    %1124 = arith.sitofp %1123 : vector<16x1xi32> to vector<16x1xf32>
    %cst_311 = arith.constant dense<0.000000e+00> : vector<1xf32>
    %1125 = vector.multi_reduction <add>, %1124, %cst_311 [0] : vector<16x1xf32> to vector<1xf32>
    %1126 = vector.shape_cast %1125 : vector<1xf32> to vector<1x1xf32>
    %1127 = vector.broadcast %1124 : vector<16x1xf32> to vector<16x8xf32>
    %1128 = arith.mulf %1127, %37 : vector<16x8xf32>
    %cst_312 = arith.constant dense<0.000000e+00> : vector<8xf32>
    %1129 = vector.multi_reduction <add>, %1128, %cst_312 [0] : vector<16x8xf32> to vector<8xf32>
    %1130 = vector.shape_cast %1129 : vector<8xf32> to vector<1x8xf32>
    %cst_313 = arith.constant 0.000000e+00 : f32
    %1131 = vector.broadcast %cst_313 : f32 to vector<1x1xf32>
    %1132 = arith.cmpf ogt, %1126, %1131 : vector<1x1xf32>
    %cst_314 = arith.constant 1.000000e+00 : f32
    %1133 = vector.broadcast %cst_314 : f32 to vector<1x1xf32>
    %1134 = arith.maximumf %1126, %1133 : vector<1x1xf32>
    %1135 = vector.broadcast %1134 : vector<1x1xf32> to vector<1x8xf32>
    %1136 = arith.divf %1130, %1135 : vector<1x8xf32>
    %1137 = vector.extract_strided_slice %1079 {offsets = [0, 0], sizes = [1, 8], strides = [1, 1]} : vector<4x8xf32> to vector<1x8xf32>
    %1138 = vector.shape_cast %1132 : vector<1x1xi1> to vector<1x1xi1>
    %1139 = vector.broadcast %1138 : vector<1x1xi1> to vector<1x8xi1>
    %1140 = arith.select %1139, %1136, %1137 : vector<1x8xi1>, vector<1x8xf32>
    %c1_i32_315 = arith.constant 1 : i32
    %1141 = vector.broadcast %c1_i32_315 : i32 to vector<16x1xi32>
    %1142 = arith.cmpi eq, %1120, %1141 : vector<16x1xi32>
    %1143 = arith.extui %1142 : vector<16x1xi1> to vector<16x1xi32>
    %1144 = arith.sitofp %1143 : vector<16x1xi32> to vector<16x1xf32>
    %cst_316 = arith.constant dense<0.000000e+00> : vector<1xf32>
    %1145 = vector.multi_reduction <add>, %1144, %cst_316 [0] : vector<16x1xf32> to vector<1xf32>
    %1146 = vector.shape_cast %1145 : vector<1xf32> to vector<1x1xf32>
    %1147 = vector.broadcast %1144 : vector<16x1xf32> to vector<16x8xf32>
    %1148 = arith.mulf %1147, %37 : vector<16x8xf32>
    %cst_317 = arith.constant dense<0.000000e+00> : vector<8xf32>
    %1149 = vector.multi_reduction <add>, %1148, %cst_317 [0] : vector<16x8xf32> to vector<8xf32>
    %1150 = vector.shape_cast %1149 : vector<8xf32> to vector<1x8xf32>
    %cst_318 = arith.constant 0.000000e+00 : f32
    %1151 = vector.broadcast %cst_318 : f32 to vector<1x1xf32>
    %1152 = arith.cmpf ogt, %1146, %1151 : vector<1x1xf32>
    %cst_319 = arith.constant 1.000000e+00 : f32
    %1153 = vector.broadcast %cst_319 : f32 to vector<1x1xf32>
    %1154 = arith.maximumf %1146, %1153 : vector<1x1xf32>
    %1155 = vector.broadcast %1154 : vector<1x1xf32> to vector<1x8xf32>
    %1156 = arith.divf %1150, %1155 : vector<1x8xf32>
    %1157 = vector.extract_strided_slice %1079 {offsets = [1, 0], sizes = [1, 8], strides = [1, 1]} : vector<4x8xf32> to vector<1x8xf32>
    %1158 = vector.shape_cast %1152 : vector<1x1xi1> to vector<1x1xi1>
    %1159 = vector.broadcast %1158 : vector<1x1xi1> to vector<1x8xi1>
    %1160 = arith.select %1159, %1156, %1157 : vector<1x8xi1>, vector<1x8xf32>
    %c2_i32_320 = arith.constant 2 : i32
    %1161 = vector.broadcast %c2_i32_320 : i32 to vector<16x1xi32>
    %1162 = arith.cmpi eq, %1120, %1161 : vector<16x1xi32>
    %1163 = arith.extui %1162 : vector<16x1xi1> to vector<16x1xi32>
    %1164 = arith.sitofp %1163 : vector<16x1xi32> to vector<16x1xf32>
    %cst_321 = arith.constant dense<0.000000e+00> : vector<1xf32>
    %1165 = vector.multi_reduction <add>, %1164, %cst_321 [0] : vector<16x1xf32> to vector<1xf32>
    %1166 = vector.shape_cast %1165 : vector<1xf32> to vector<1x1xf32>
    %1167 = vector.broadcast %1164 : vector<16x1xf32> to vector<16x8xf32>
    %1168 = arith.mulf %1167, %37 : vector<16x8xf32>
    %cst_322 = arith.constant dense<0.000000e+00> : vector<8xf32>
    %1169 = vector.multi_reduction <add>, %1168, %cst_322 [0] : vector<16x8xf32> to vector<8xf32>
    %1170 = vector.shape_cast %1169 : vector<8xf32> to vector<1x8xf32>
    %cst_323 = arith.constant 0.000000e+00 : f32
    %1171 = vector.broadcast %cst_323 : f32 to vector<1x1xf32>
    %1172 = arith.cmpf ogt, %1166, %1171 : vector<1x1xf32>
    %cst_324 = arith.constant 1.000000e+00 : f32
    %1173 = vector.broadcast %cst_324 : f32 to vector<1x1xf32>
    %1174 = arith.maximumf %1166, %1173 : vector<1x1xf32>
    %1175 = vector.broadcast %1174 : vector<1x1xf32> to vector<1x8xf32>
    %1176 = arith.divf %1170, %1175 : vector<1x8xf32>
    %1177 = vector.extract_strided_slice %1079 {offsets = [2, 0], sizes = [1, 8], strides = [1, 1]} : vector<4x8xf32> to vector<1x8xf32>
    %1178 = vector.shape_cast %1172 : vector<1x1xi1> to vector<1x1xi1>
    %1179 = vector.broadcast %1178 : vector<1x1xi1> to vector<1x8xi1>
    %1180 = arith.select %1179, %1176, %1177 : vector<1x8xi1>, vector<1x8xf32>
    %c3_i32_325 = arith.constant 3 : i32
    %1181 = vector.broadcast %c3_i32_325 : i32 to vector<16x1xi32>
    %1182 = arith.cmpi eq, %1120, %1181 : vector<16x1xi32>
    %1183 = arith.extui %1182 : vector<16x1xi1> to vector<16x1xi32>
    %1184 = arith.sitofp %1183 : vector<16x1xi32> to vector<16x1xf32>
    %cst_326 = arith.constant dense<0.000000e+00> : vector<1xf32>
    %1185 = vector.multi_reduction <add>, %1184, %cst_326 [0] : vector<16x1xf32> to vector<1xf32>
    %1186 = vector.shape_cast %1185 : vector<1xf32> to vector<1x1xf32>
    %1187 = vector.broadcast %1184 : vector<16x1xf32> to vector<16x8xf32>
    %1188 = arith.mulf %1187, %37 : vector<16x8xf32>
    %cst_327 = arith.constant dense<0.000000e+00> : vector<8xf32>
    %1189 = vector.multi_reduction <add>, %1188, %cst_327 [0] : vector<16x8xf32> to vector<8xf32>
    %1190 = vector.shape_cast %1189 : vector<8xf32> to vector<1x8xf32>
    %cst_328 = arith.constant 0.000000e+00 : f32
    %1191 = vector.broadcast %cst_328 : f32 to vector<1x1xf32>
    %1192 = arith.cmpf ogt, %1186, %1191 : vector<1x1xf32>
    %cst_329 = arith.constant 1.000000e+00 : f32
    %1193 = vector.broadcast %cst_329 : f32 to vector<1x1xf32>
    %1194 = arith.maximumf %1186, %1193 : vector<1x1xf32>
    %1195 = vector.broadcast %1194 : vector<1x1xf32> to vector<1x8xf32>
    %1196 = arith.divf %1190, %1195 : vector<1x8xf32>
    %1197 = vector.extract_strided_slice %1079 {offsets = [3, 0], sizes = [1, 8], strides = [1, 1]} : vector<4x8xf32> to vector<1x8xf32>
    %1198 = vector.shape_cast %1192 : vector<1x1xi1> to vector<1x1xi1>
    %1199 = vector.broadcast %1198 : vector<1x1xi1> to vector<1x8xi1>
    %1200 = arith.select %1199, %1196, %1197 : vector<1x8xi1>, vector<1x8xf32>
    %1201 = tpu.concatenate %1140, %1160, %1180, %1200 in 0 : vector<1x8xf32>, vector<1x8xf32>, vector<1x8xf32>, vector<1x8xf32> -> vector<4x8xf32>
    %cst_330 = arith.constant 0x7F800000 : f32
    %1202 = vector.broadcast %cst_330 : f32 to vector<16x1xf32>
    %c0_i32_331 = arith.constant 0 : i32
    %1203 = vector.broadcast %c0_i32_331 : i32 to vector<16x1xi32>
    %1204 = vector.extract_strided_slice %1201 {offsets = [0, 0], sizes = [1, 8], strides = [1, 1]} : vector<4x8xf32> to vector<1x8xf32>
    %1205 = vector.broadcast %1204 : vector<1x8xf32> to vector<16x8xf32>
    %1206 = arith.subf %37, %1205 : vector<16x8xf32>
    %1207 = arith.mulf %1206, %1206 : vector<16x8xf32>
    %cst_332 = arith.constant dense<0.000000e+00> : vector<16xf32>
    %1208 = vector.multi_reduction <add>, %1207, %cst_332 [1] : vector<16x8xf32> to vector<16xf32>
    %1209 = vector.shape_cast %1208 : vector<16xf32> to vector<16x1xf32>
    %1210 = arith.cmpf olt, %1209, %1202 : vector<16x1xf32>
    %1211 = arith.select %1210, %1209, %1202 : vector<16x1xi1>, vector<16x1xf32>
    %c0_i32_333 = arith.constant 0 : i32
    %1212 = vector.broadcast %c0_i32_333 : i32 to vector<16x1xi32>
    %1213 = arith.select %1210, %1212, %1203 : vector<16x1xi1>, vector<16x1xi32>
    %1214 = vector.extract_strided_slice %1201 {offsets = [1, 0], sizes = [1, 8], strides = [1, 1]} : vector<4x8xf32> to vector<1x8xf32>
    %1215 = vector.broadcast %1214 : vector<1x8xf32> to vector<16x8xf32>
    %1216 = arith.subf %37, %1215 : vector<16x8xf32>
    %1217 = arith.mulf %1216, %1216 : vector<16x8xf32>
    %cst_334 = arith.constant dense<0.000000e+00> : vector<16xf32>
    %1218 = vector.multi_reduction <add>, %1217, %cst_334 [1] : vector<16x8xf32> to vector<16xf32>
    %1219 = vector.shape_cast %1218 : vector<16xf32> to vector<16x1xf32>
    %1220 = arith.cmpf olt, %1219, %1211 : vector<16x1xf32>
    %1221 = arith.select %1220, %1219, %1211 : vector<16x1xi1>, vector<16x1xf32>
    %c1_i32_335 = arith.constant 1 : i32
    %1222 = vector.broadcast %c1_i32_335 : i32 to vector<16x1xi32>
    %1223 = arith.select %1220, %1222, %1213 : vector<16x1xi1>, vector<16x1xi32>
    %1224 = vector.extract_strided_slice %1201 {offsets = [2, 0], sizes = [1, 8], strides = [1, 1]} : vector<4x8xf32> to vector<1x8xf32>
    %1225 = vector.broadcast %1224 : vector<1x8xf32> to vector<16x8xf32>
    %1226 = arith.subf %37, %1225 : vector<16x8xf32>
    %1227 = arith.mulf %1226, %1226 : vector<16x8xf32>
    %cst_336 = arith.constant dense<0.000000e+00> : vector<16xf32>
    %1228 = vector.multi_reduction <add>, %1227, %cst_336 [1] : vector<16x8xf32> to vector<16xf32>
    %1229 = vector.shape_cast %1228 : vector<16xf32> to vector<16x1xf32>
    %1230 = arith.cmpf olt, %1229, %1221 : vector<16x1xf32>
    %1231 = arith.select %1230, %1229, %1221 : vector<16x1xi1>, vector<16x1xf32>
    %c2_i32_337 = arith.constant 2 : i32
    %1232 = vector.broadcast %c2_i32_337 : i32 to vector<16x1xi32>
    %1233 = arith.select %1230, %1232, %1223 : vector<16x1xi1>, vector<16x1xi32>
    %1234 = vector.extract_strided_slice %1201 {offsets = [3, 0], sizes = [1, 8], strides = [1, 1]} : vector<4x8xf32> to vector<1x8xf32>
    %1235 = vector.broadcast %1234 : vector<1x8xf32> to vector<16x8xf32>
    %1236 = arith.subf %37, %1235 : vector<16x8xf32>
    %1237 = arith.mulf %1236, %1236 : vector<16x8xf32>
    %cst_338 = arith.constant dense<0.000000e+00> : vector<16xf32>
    %1238 = vector.multi_reduction <add>, %1237, %cst_338 [1] : vector<16x8xf32> to vector<16xf32>
    %1239 = vector.shape_cast %1238 : vector<16xf32> to vector<16x1xf32>
    %1240 = arith.cmpf olt, %1239, %1231 : vector<16x1xf32>
    %1241 = arith.select %1240, %1239, %1231 : vector<16x1xi1>, vector<16x1xf32>
    %c3_i32_339 = arith.constant 3 : i32
    %1242 = vector.broadcast %c3_i32_339 : i32 to vector<16x1xi32>
    %1243 = arith.select %1240, %1242, %1233 : vector<16x1xi1>, vector<16x1xi32>
    %cst_340 = arith.constant dense<0.000000e+00> : vector<1xf32>
    %1244 = vector.multi_reduction <add>, %1241, %cst_340 [0] : vector<16x1xf32> to vector<1xf32>
    %1245 = vector.shape_cast %1244 : vector<1xf32> to vector<1x1xf32>
    %cst_341 = arith.constant 0.000000e+00 : f32
    %1246 = vector.broadcast %cst_341 : f32 to vector<1x1xf32>
    %1247 = arith.subf %1246, %1245 : vector<1x1xf32>
    %cst_342 = arith.constant 1.600000e+01 : f32
    %1248 = vector.broadcast %cst_342 : f32 to vector<1x1xf32>
    %1249 = arith.divf %1247, %1248 : vector<1x1xf32>
    %c1 = arith.constant 1 : index
    %c0_343 = arith.constant 0 : index
    %c0_344 = arith.constant 0 : index
    %1250 = vector.load %arg15[%c1, %c0_343, %c0_344] : memref<2x4x8xf32, #tpu.memory_space<vmem>>, vector<1x4x8xf32>
    %1251 = vector.shape_cast %1250 : vector<1x4x8xf32> to vector<4x8xf32>
    %1252 = vector.shape_cast %1201 : vector<4x8xf32> to vector<1x4x8xf32>
    tpu.vector_store %arg15[%c1, %c0_343, %c0_344], %1252 {strides = array<i32>} : memref<2x4x8xf32, #tpu.memory_space<vmem>>, vector<1x4x8xf32>,
    %1253 = tpu.concatenate %582, %1243 in 1 : vector<16x1xi32>, vector<16x1xi32> -> vector<16x2xi32>
    %c0_345 = arith.constant 0 : index
    %c0_346 = arith.constant 0 : index
    %1254 = vector.load %arg14[%c0_345, %c0_346] : memref<16x2xi32, #tpu.memory_space<vmem>>, vector<16x2xi32>
    tpu.vector_store %arg14[%c0_345, %c0_346], %1253 {strides = array<i32>} : memref<16x2xi32, #tpu.memory_space<vmem>>, vector<16x2xi32>,
    %1255 = tpu.concatenate %588, %1249 in 1 : vector<1x1xf32>, vector<1x1xf32> -> vector<1x2xf32>
    %c0_347 = arith.constant 0 : index
    %c0_348 = arith.constant 0 : index
    %1256 = vector.load %arg16[%c0_347, %c0_348] : memref<1x2xf32, #tpu.memory_space<vmem>>, vector<1x2xf32>
    tpu.vector_store %arg16[%c0_347, %c0_348], %1255 {strides = array<i32>} : memref<1x2xf32, #tpu.memory_space<vmem>>, vector<1x2xf32>,
    return
  }
}

</mosaic_0001>

<llo_original>
// kernel: forward.1
$region0: #{forward.1}
  #allocation0 [shape = 'u32[]', space=smem, size = 0x4, offset = 0x4, fixed_abs, tag = 'smem constant byte address 0x4 - core index']
  #allocation1 [shape = 'u32[72,128]{1,0:T(1,128)}', space=vmem, size = 0x9000, scoped, tag = 'internal scratch']
  %s0 = inlined_call_operand.vmem [shape: f32[16,128], index: 0, kind: input, shape index: {}]
  %s1 = inlined_call_operand.vmem [shape: f32[128,64], index: 1, kind: input, shape index: {}]
  %s2 = inlined_call_operand.vmem [shape: f32[64,42], index: 2, kind: input, shape index: {}]
  %s3 = inlined_call_operand.vmem [shape: f32[42,32], index: 3, kind: input, shape index: {}]
  %s4 = inlined_call_operand.vmem [shape: f32[1,32], index: 4, kind: input, shape index: {}]
  %s5 = inlined_call_operand.vmem [shape: f32[32,16], index: 5, kind: input, shape index: {}]
  %s6 = inlined_call_operand.vmem [shape: f32[1,16], index: 6, kind: input, shape index: {}]
  %s7 = inlined_call_operand.vmem [shape: f32[8,32], index: 7, kind: input, shape index: {}]
  %s8 = inlined_call_operand.vmem [shape: f32[32,42], index: 8, kind: input, shape index: {}]
  %s9 = inlined_call_operand.vmem [shape: f32[42,64], index: 9, kind: input, shape index: {}]
  %s10 = inlined_call_operand.vmem [shape: f32[64,128], index: 10, kind: input, shape index: {}]
  %s11 = inlined_call_operand.vmem [shape: f32[1,128], index: 11, kind: input, shape index: {}]
  %s12 = inlined_call_operand.hbm [shape: f32[16,128], index: 12, kind: output, shape index: {0}]
  %s13 = inlined_call_operand.vmem [shape: f32[16,16], index: 13, kind: output, shape index: {1}]
  %s14 = inlined_call_operand.vmem [shape: s32[16,2], index: 14, kind: output, shape index: {2}]
  %s15 = inlined_call_operand.vmem [shape: f32[2,4,8], index: 15, kind: output, shape index: {3}]
  %s16 = inlined_call_operand.vmem [shape: f32[1,2], index: 16, kind: output, shape index: {4}]
  %17 = xla_tuple %s12, %s13, %s14, %s15, %s16
  %s18 = sld [smem:[#allocation0]]
  $region90: #{forward.1} parent=0
    _
  %s20 = ssub.s32 1, %s18
  %s21 = scalar_select 0, %s20, %s18
  $region1: #{forward.1} parent=0
    #allocation2 [shape = 'u8[8192]{0}', space=vmem, size = 0x2000, scoped, tag = 'output window, operand 0, single buffered']
    #allocation3 [shape = 's32[1]{0}', space=sflag, size = 0x4, scoped, tag = 'scoped memory for forward.1']
    %22 = vsyncpa [#allocation3], 0
    // Predicated region
    $region2: #{forward.1} parent=1 // pred_check
      _
    $region3: #{forward.1} parent=1 // pred_check_branch
      %24 = sbr.rel (0) target = $region5
    $region4: #{forward.1} parent=1 // pred_region
      _
    $region5: #{forward.1} parent=1 // pred_fallthru
      _
    // Predicated region
    $region6: #{forward.1} parent=1 // pred_check
      _
    $region7: #{forward.1} parent=1 // pred_check_branch
      %26 = sbr.rel (0) target = $region9
    $region8: #{forward.1} parent=1 // pred_region
      _
    $region9: #{forward.1} parent=1 // pred_fallthru
      _
    // Predicated region
    $region10: #{forward.1} parent=1 // pred_check
      _
    $region11: #{forward.1} parent=1 // pred_check_branch
      %28 = sbr.rel (0) target = $region13
    $region12: #{forward.1} parent=1 // pred_region
      _
    $region13: #{forward.1} parent=1 // pred_fallthru
      _
    // Predicated region
    $region14: #{forward.1} parent=1 // pred_check
      _
    $region15: #{forward.1} parent=1 // pred_check_branch
      %30 = sbr.rel (0) target = $region17
    $region16: #{forward.1} parent=1 // pred_region
      _
    $region17: #{forward.1} parent=1 // pred_fallthru
      _
    // Predicated region
    $region18: #{forward.1} parent=1 // pred_check
      _
    $region19: #{forward.1} parent=1 // pred_check_branch
      %32 = sbr.rel (0) target = $region21
    $region20: #{forward.1} parent=1 // pred_region
      _
    $region21: #{forward.1} parent=1 // pred_fallthru
      _
    // Predicated region
    $region22: #{forward.1} parent=1 // pred_check
      _
    $region23: #{forward.1} parent=1 // pred_check_branch
      %34 = sbr.rel (0) target = $region25
    $region24: #{forward.1} parent=1 // pred_region
      _
    $region25: #{forward.1} parent=1 // pred_fallthru
      _
    // Predicated region
    $region26: #{forward.1} parent=1 // pred_check
      _
    $region27: #{forward.1} parent=1 // pred_check_branch
      %36 = sbr.rel (0) target = $region29
    $region28: #{forward.1} parent=1 // pred_region
      _
    $region29: #{forward.1} parent=1 // pred_fallthru
      _
    // Predicated region
    $region30: #{forward.1} parent=1 // pred_check
      _
    $region31: #{forward.1} parent=1 // pred_check_branch
      %38 = sbr.rel (0) target = $region33
    $region32: #{forward.1} parent=1 // pred_region
      _
    $region33: #{forward.1} parent=1 // pred_fallthru
      _
    // Predicated region
    $region34: #{forward.1} parent=1 // pred_check
      _
    $region35: #{forward.1} parent=1 // pred_check_branch
      %40 = sbr.rel (0) target = $region37
    $region36: #{forward.1} parent=1 // pred_region
      _
    $region37: #{forward.1} parent=1 // pred_fallthru
      _
    // Predicated region
    $region38: #{forward.1} parent=1 // pred_check
      _
    $region39: #{forward.1} parent=1 // pred_check_branch
      %42 = sbr.rel (0) target = $region41
    $region40: #{forward.1} parent=1 // pred_region
      _
    $region41: #{forward.1} parent=1 // pred_fallthru
      _
    // Predicated region
    $region42: #{forward.1} parent=1 // pred_check
      _
    $region43: #{forward.1} parent=1 // pred_check_branch
      %44 = sbr.rel (0) target = $region45
    $region44: #{forward.1} parent=1 // pred_region
      _
    $region45: #{forward.1} parent=1 // pred_fallthru
      _
    // Predicated region
    $region46: #{forward.1} parent=1 // pred_check
      _
    $region47: #{forward.1} parent=1 // pred_check_branch
      %46 = sbr.rel (0) target = $region49
    $region48: #{forward.1} parent=1 // pred_region
      _
    $region49: #{forward.1} parent=1 // pred_fallthru
      _
    %v47 = vld [vmem:[%s0] sm:$0xff]
    %v48 = vld [vmem:[%s0 + $0x8] sm:$0xff]
    %v49 = vld [vmem:[%s1] sm:$0xff]
    %v50 = vld [vmem:[%s1 + $0x8] sm:$0xff]
    %v51 = vld [vmem:[%s1 + $0x10] sm:$0xff]
    %v52 = vld [vmem:[%s1 + $0x18] sm:$0xff]
    %v53 = vld [vmem:[%s1 + $0x20] sm:$0xff]
    %v54 = vld [vmem:[%s1 + $0x28] sm:$0xff]
    %v55 = vld [vmem:[%s1 + $0x30] sm:$0xff]
    %v56 = vld [vmem:[%s1 + $0x38] sm:$0xff]
    %v57 = vld [vmem:[%s1 + $0x40] sm:$0xff]
    %v58 = vld [vmem:[%s1 + $0x48] sm:$0xff]
    %v59 = vld [vmem:[%s1 + $0x50] sm:$0xff]
    %v60 = vld [vmem:[%s1 + $0x58] sm:$0xff]
    %v61 = vld [vmem:[%s1 + $0x60] sm:$0xff]
    %v62 = vld [vmem:[%s1 + $0x68] sm:$0xff]
    %v63 = vld [vmem:[%s1 + $0x70] sm:$0xff]
    %v64 = vld [vmem:[%s1 + $0x78] sm:$0xff]
    %65 = vmatpush.msra.mxu0 %v64
    %66 = vmatpush.msra.mxu0 %v63
    %67 = vmatpush.msra.mxu0 %v62
    %68 = vmatpush.msra.mxu0 %v61
    %69 = vmatpush.msra.mxu0 %v60
    %70 = vmatpush.msra.mxu0 %v59
    %71 = vmatpush.msra.mxu0 %v58
    %72 = vmatpush.msra.mxu0 %v57
    %73 = vmatpush.msra.mxu0 %v56
    %74 = vmatpush.msra.mxu0 %v55
    %75 = vmatpush.msra.mxu0 %v54
    %76 = vmatpush.msra.mxu0 %v53
    %77 = vmatpush.msra.mxu0 %v52
    %78 = vmatpush.msra.mxu0 %v51
    %79 = vmatpush.msra.mxu0 %v50
    %80 = vmatpush.msra.mxu0 %v49
    %81 = vmatmul.f32.gmra.mxu0 %v47
    %v82 = vpop.f32.mrf.mxu0
    %v83 = vadd.f32 0.0, %v82
    %84 = vmatmul.f32.gmra.mxu0 %v48
    %v85 = vpop.f32.mrf.mxu0
    %v86 = vadd.f32 0.0, %v85
    %87 = vdwg.mxu0
    %vm88 = vcmp.gt.f32.partialorder %v83, 0.0
    %vm89 = vcmp.gt.f32.partialorder %v86, 0.0
    %v90 = vmul.f32 %v83, 1.442695
    %v91 = vpow.pop %v90
    %v92 = vmul.f32 %v86, 1.442695
    %v93 = vpow.pop %v92
    %v94 = vsub.f32 %v91, 1.0
    %v95 = vsub.f32 %v93, 1.0
    %v96 = vmul.f32 %v94, 1.6732632
    %v97 = vmul.f32 %v95, 1.6732632
    %v98 = vsel %vm88, %v83, %v96
    %v99 = vsel %vm89, %v86, %v97
    %v100 = vmul.f32 %v98, 1.050701
    %v101 = vmul.f32 %v99, 1.050701
    %v102 = vld [vmem:[%s2] sm:$0xff]
    %v103 = vld [vmem:[%s2 + $0x8] sm:$0xff]
    %v104 = vld [vmem:[%s2 + $0x10] sm:$0xff]
    %v105 = vld [vmem:[%s2 + $0x18] sm:$0xff]
    %v106 = vld [vmem:[%s2 + $0x20] sm:$0xff]
    %v107 = vld [vmem:[%s2 + $0x28] sm:$0xff]
    %v108 = vld [vmem:[%s2 + $0x30] sm:$0xff]
    %v109 = vld [vmem:[%s2 + $0x38] sm:$0xff]
    %vm110 = vcmask 523264
    %v112 = vsel %vm110, %v100, 0
    %v115 = vsel %vm110, %v101, 0
    %117 = vmatpush.msra.mxu0 0.0
    %118 = vmatpush.msra.mxu0 0.0
    %119 = vmatpush.msra.mxu0 0.0
    %120 = vmatpush.msra.mxu0 0.0
    %121 = vmatpush.msra.mxu0 0.0
    %122 = vmatpush.msra.mxu0 0.0
    %123 = vmatpush.msra.mxu0 0.0
    %124 = vmatpush.msra.mxu0 0.0
    %125 = vmatpush.msra.mxu0 %v109
    %126 = vmatpush.msra.mxu0 %v108
    %127 = vmatpush.msra.mxu0 %v107
    %128 = vmatpush.msra.mxu0 %v106
    %129 = vmatpush.msra.mxu0 %v105
    %130 = vmatpush.msra.mxu0 %v104
    %131 = vmatpush.msra.mxu0 %v103
    %132 = vmatpush.msra.mxu0 %v102
    %133 = vmatmul.f32.gmra.mxu0 %v112
    %v134 = vpop.f32.mrf.mxu0
    %v135 = vadd.f32 0.0, %v134
    %136 = vmatmul.f32.gmra.mxu0 %v115
    %v137 = vpop.f32.mrf.mxu0
    %v138 = vadd.f32 0.0, %v137
    %139 = vdwg.mxu0
    %vm140 = vcmp.gt.f32.partialorder %v135, 0.0
    %vm141 = vcmp.gt.f32.partialorder %v138, 0.0
    %v142 = vmul.f32 %v135, 1.442695
    %v143 = vpow.pop %v142
    %v144 = vmul.f32 %v138, 1.442695
    %v145 = vpow.pop %v144
    %v146 = vsub.f32 %v143, 1.0
    %v147 = vsub.f32 %v145, 1.0
    %v148 = vmul.f32 %v146, 1.6732632
    %v149 = vmul.f32 %v147, 1.6732632
    %v150 = vsel %vm140, %v135, %v148
    %v151 = vsel %vm141, %v138, %v149
    %v152 = vmul.f32 %v150, 1.050701
    %v153 = vmul.f32 %v151, 1.050701
    %v154 = vld [vmem:[%s3] sm:$0xff]
    %v155 = vld [vmem:[%s3 + $0x8] sm:$0xff]
    %v156 = vld [vmem:[%s3 + $0x10] sm:$0xff]
    %v157 = vld [vmem:[%s3 + $0x18] sm:$0xff]
    %v158 = vld [vmem:[%s3 + $0x20] sm:$0xff]
    %v159 = vld [vmem:[%s3 + $0x28] sm:$0x3]
    %v160 = vld [vmem:[%s4] sm:$0x1]
    %v162 = vperm.slane %v160, 0
    %vm164 = vcmask 343040
    %v166 = vsel %vm164, %v152, 0
    %v169 = vsel %vm164, %v153, 0
    %vm171 = vcmask 1041408
    %v173 = vsel %vm171, %v159, 0
    %175 = vmatpush.msra.mxu0 0.0
    %176 = vmatpush.msra.mxu0 0.0
    %177 = vmatpush.msra.mxu0 0.0
    %178 = vmatpush.msra.mxu0 0.0
    %179 = vmatpush.msra.mxu0 0.0
    %180 = vmatpush.msra.mxu0 0.0
    %181 = vmatpush.msra.mxu0 0.0
    %182 = vmatpush.msra.mxu0 0.0
    %183 = vmatpush.msra.mxu0 0.0
    %184 = vmatpush.msra.mxu0 0.0
    %185 = vmatpush.msra.mxu0 %v173
    %186 = vmatpush.msra.mxu0 %v158
    %187 = vmatpush.msra.mxu0 %v157
    %188 = vmatpush.msra.mxu0 %v156
    %189 = vmatpush.msra.mxu0 %v155
    %190 = vmatpush.msra.mxu0 %v154
    %191 = vmatmul.f32.gmra.mxu0 %v166
    %v192 = vpop.f32.mrf.mxu0
    %v193 = vadd.f32 %v162, %v192
    %194 = vmatmul.f32.gmra.mxu0 %v169
    %v195 = vpop.f32.mrf.mxu0
    %v196 = vadd.f32 %v162, %v195
    %197 = vdwg.mxu0
    %v198 = vtanh.pop %v193
    %v199 = vtanh.pop %v196
    %v200 = vld [vmem:[%s5] sm:$0xff]
    %v201 = vld [vmem:[%s5 + $0x8] sm:$0xff]
    %v202 = vld [vmem:[%s5 + $0x10] sm:$0xff]
    %v203 = vld [vmem:[%s5 + $0x18] sm:$0xff]
    %v204 = vld [vmem:[%s6] sm:$0x1]
    %v206 = vperm.slane %v204, 0
    %vm208 = vcmask 261120
    %v210 = vsel %vm208, %v198, 0
    %v213 = vsel %vm208, %v199, 0
    %215 = vmatpush.msra.mxu0 0.0
    %216 = vmatpush.msra.mxu0 0.0
    %217 = vmatpush.msra.mxu0 0.0
    %218 = vmatpush.msra.mxu0 0.0
    %219 = vmatpush.msra.mxu0 0.0
    %220 = vmatpush.msra.mxu0 0.0
    %221 = vmatpush.msra.mxu0 0.0
    %222 = vmatpush.msra.mxu0 0.0
    %223 = vmatpush.msra.mxu0 0.0
    %224 = vmatpush.msra.mxu0 0.0
    %225 = vmatpush.msra.mxu0 0.0
    %226 = vmatpush.msra.mxu0 0.0
    %227 = vmatpush.msra.mxu0 %v203
    %228 = vmatpush.msra.mxu0 %v202
    %229 = vmatpush.msra.mxu0 %v201
    %230 = vmatpush.msra.mxu0 %v200
    %231 = vmatmul.f32.gmra.mxu0 %v210
    %v232 = vpop.f32.mrf.mxu0
    %v233 = vadd.f32 %v206, %v232
    %234 = vmatmul.f32.gmra.mxu0 %v213
    %v235 = vpop.f32.mrf.mxu0
    %v236 = vadd.f32 %v206, %v235
    %237 = vdwg.mxu0
    %vm238 = vcmask 130048
    %239 = vst.msk [vmem:[%s13] sm:$0xff] %vm238, %v233
    %240 = vst.msk [vmem:[%s13 + $0x8] sm:$0xff] %vm238, %v236
    %v241 = vld [vmem:[%s7] sm:$0xff]
    %vm242 = vcmask 64512
    %v244 = vsel %vm242, %v233, 0
    %v247 = vsel %vm242, %v236, 0
    %249 = vmatpush.msra.mxu0 0.0
    %250 = vmatpush.msra.mxu0 0.0
    %251 = vmatpush.msra.mxu0 0.0
    %252 = vmatpush.msra.mxu0 0.0
    %253 = vmatpush.msra.mxu0 0.0
    %254 = vmatpush.msra.mxu0 0.0
    %255 = vmatpush.msra.mxu0 0.0
    %256 = vmatpush.msra.mxu0 0.0
    %257 = vmatpush.msra.mxu0 0.0
    %258 = vmatpush.msra.mxu0 0.0
    %259 = vmatpush.msra.mxu0 0.0
    %260 = vmatpush.msra.mxu0 0.0
    %261 = vmatpush.msra.mxu0 0.0
    %262 = vmatpush.msra.mxu0 0.0
    %263 = vmatpush.msra.mxu0 0.0
    %264 = vmatpush.msra.mxu0 %v241
    %265 = vmatmul.f32.gmra.mxu0 %v244
    %v266 = vpop.f32.mrf.mxu0
    %v267 = vadd.f32 0.0, %v266
    %268 = vmatmul.f32.gmra.mxu0 %v247
    %v269 = vpop.f32.mrf.mxu0
    %v270 = vadd.f32 0.0, %v269
    %271 = vdwg.mxu0
    %vm272 = vcmp.gt.f32.partialorder %v267, 0.0
    %vm273 = vcmp.gt.f32.partialorder %v270, 0.0
    %v274 = vmul.f32 %v267, 1.442695
    %v275 = vpow.pop %v274
    %v276 = vmul.f32 %v270, 1.442695
    %v277 = vpow.pop %v276
    %v278 = vsub.f32 %v275, 1.0
    %v279 = vsub.f32 %v277, 1.0
    %v280 = vmul.f32 %v278, 1.6732632
    %v281 = vmul.f32 %v279, 1.6732632
    %v282 = vsel %vm272, %v267, %v280
    %v283 = vsel %vm273, %v270, %v281
    %v284 = vmul.f32 %v282, 1.050701
    %v285 = vmul.f32 %v283, 1.050701
    %v286 = vld [vmem:[%s8] sm:$0xff]
    %v287 = vld [vmem:[%s8 + $0x8] sm:$0xff]
    %v288 = vld [vmem:[%s8 + $0x10] sm:$0xff]
    %v289 = vld [vmem:[%s8 + $0x18] sm:$0xff]
    %v291 = vsel %vm208, %v284, 0
    %v294 = vsel %vm208, %v285, 0
    %296 = vmatpush.msra.mxu0 0.0
    %297 = vmatpush.msra.mxu0 0.0
    %298 = vmatpush.msra.mxu0 0.0
    %299 = vmatpush.msra.mxu0 0.0
    %300 = vmatpush.msra.mxu0 0.0
    %301 = vmatpush.msra.mxu0 0.0
    %302 = vmatpush.msra.mxu0 0.0
    %303 = vmatpush.msra.mxu0 0.0
    %304 = vmatpush.msra.mxu0 0.0
    %305 = vmatpush.msra.mxu0 0.0
    %306 = vmatpush.msra.mxu0 0.0
    %307 = vmatpush.msra.mxu0 0.0
    %308 = vmatpush.msra.mxu0 %v289
    %309 = vmatpush.msra.mxu0 %v288
    %310 = vmatpush.msra.mxu0 %v287
    %311 = vmatpush.msra.mxu0 %v286
    %312 = vmatmul.f32.gmra.mxu0 %v291
    %v313 = vpop.f32.mrf.mxu0
    %v314 = vadd.f32 0.0, %v313
    %315 = vmatmul.f32.gmra.mxu0 %v294
    %v316 = vpop.f32.mrf.mxu0
    %v317 = vadd.f32 0.0, %v316
    %318 = vdwg.mxu0
    %vm319 = vcmp.gt.f32.partialorder %v314, 0.0
    %vm320 = vcmp.gt.f32.partialorder %v317, 0.0
    %v321 = vmul.f32 %v314, 1.442695
    %v322 = vpow.pop %v321
    %v323 = vmul.f32 %v317, 1.442695
    %v324 = vpow.pop %v323
    %v325 = vsub.f32 %v322, 1.0
    %v326 = vsub.f32 %v324, 1.0
    %v327 = vmul.f32 %v325, 1.6732632
    %v328 = vmul.f32 %v326, 1.6732632
    %v329 = vsel %vm319, %v314, %v327
    %v330 = vsel %vm320, %v317, %v328
    %v331 = vmul.f32 %v329, 1.050701
    %v332 = vmul.f32 %v330, 1.050701
    %v333 = vld [vmem:[%s9] sm:$0xff]
    %v334 = vld [vmem:[%s9 + $0x8] sm:$0xff]
    %v335 = vld [vmem:[%s9 + $0x10] sm:$0xff]
    %v336 = vld [vmem:[%s9 + $0x18] sm:$0xff]
    %v337 = vld [vmem:[%s9 + $0x20] sm:$0xff]
    %v338 = vld [vmem:[%s9 + $0x28] sm:$0x3]
    %v340 = vsel %vm164, %v331, 0
    %v343 = vsel %vm164, %v332, 0
    %v346 = vsel %vm171, %v338, 0
    %348 = vmatpush.msra.mxu0 0.0
    %349 = vmatpush.msra.mxu0 0.0
    %350 = vmatpush.msra.mxu0 0.0
    %351 = vmatpush.msra.mxu0 0.0
    %352 = vmatpush.msra.mxu0 0.0
    %353 = vmatpush.msra.mxu0 0.0
    %354 = vmatpush.msra.mxu0 0.0
    %355 = vmatpush.msra.mxu0 0.0
    %356 = vmatpush.msra.mxu0 0.0
    %357 = vmatpush.msra.mxu0 0.0
    %358 = vmatpush.msra.mxu0 %v346
    %359 = vmatpush.msra.mxu0 %v337
    %360 = vmatpush.msra.mxu0 %v336
    %361 = vmatpush.msra.mxu0 %v335
    %362 = vmatpush.msra.mxu0 %v334
    %363 = vmatpush.msra.mxu0 %v333
    %364 = vmatmul.f32.gmra.mxu0 %v340
    %v365 = vpop.f32.mrf.mxu0
    %v366 = vadd.f32 0.0, %v365
    %367 = vmatmul.f32.gmra.mxu0 %v343
    %v368 = vpop.f32.mrf.mxu0
    %v369 = vadd.f32 0.0, %v368
    %370 = vdwg.mxu0
    %vm371 = vcmp.gt.f32.partialorder %v366, 0.0
    %vm372 = vcmp.gt.f32.partialorder %v369, 0.0
    %v373 = vmul.f32 %v366, 1.442695
    %v374 = vpow.pop %v373
    %v375 = vmul.f32 %v369, 1.442695
    %v376 = vpow.pop %v375
    %v377 = vsub.f32 %v374, 1.0
    %v378 = vsub.f32 %v376, 1.0
    %v379 = vmul.f32 %v377, 1.6732632
    %v380 = vmul.f32 %v378, 1.6732632
    %v381 = vsel %vm371, %v366, %v379
    %v382 = vsel %vm372, %v369, %v380
    %v383 = vmul.f32 %v381, 1.050701
    %v384 = vmul.f32 %v382, 1.050701
    %v385 = vld [vmem:[%s10] sm:$0xff]
    %v386 = vld [vmem:[%s10 + $0x8] sm:$0xff]
    %v387 = vld [vmem:[%s10 + $0x10] sm:$0xff]
    %v388 = vld [vmem:[%s10 + $0x18] sm:$0xff]
    %v389 = vld [vmem:[%s10 + $0x20] sm:$0xff]
    %v390 = vld [vmem:[%s10 + $0x28] sm:$0xff]
    %v391 = vld [vmem:[%s10 + $0x30] sm:$0xff]
    %v392 = vld [vmem:[%s10 + $0x38] sm:$0xff]
    %v393 = vld [vmem:[%s11] sm:$0x1]
    %v395 = vperm.slane %v393, 0
    %v398 = vsel %vm110, %v383, 0
    %v401 = vsel %vm110, %v384, 0
    %403 = vmatpush.msra.mxu0 0.0
    %404 = vmatpush.msra.mxu0 0.0
    %405 = vmatpush.msra.mxu0 0.0
    %406 = vmatpush.msra.mxu0 0.0
    %407 = vmatpush.msra.mxu0 0.0
    %408 = vmatpush.msra.mxu0 0.0
    %409 = vmatpush.msra.mxu0 0.0
    %410 = vmatpush.msra.mxu0 0.0
    %411 = vmatpush.msra.mxu0 %v392
    %412 = vmatpush.msra.mxu0 %v391
    %413 = vmatpush.msra.mxu0 %v390
    %414 = vmatpush.msra.mxu0 %v389
    %415 = vmatpush.msra.mxu0 %v388
    %416 = vmatpush.msra.mxu0 %v387
    %417 = vmatpush.msra.mxu0 %v386
    %418 = vmatpush.msra.mxu0 %v385
    %419 = vmatmul.f32.gmra.mxu0 %v398
    %v420 = vpop.f32.mrf.mxu0
    %v421 = vadd.f32 %v395, %v420
    %422 = vmatmul.f32.gmra.mxu0 %v401
    %v423 = vpop.f32.mrf.mxu0
    %v424 = vadd.f32 %v395, %v423
    %425 = vdwg.mxu0
    %v426 = vxor.u32 %v421, 2147483648
    %v427 = vxor.u32 %v424, 2147483648
    %v428 = vmul.f32 %v426, 1.442695
    %v429 = vpow.pop %v428
    %v430 = vmul.f32 %v427, 1.442695
    %v431 = vpow.pop %v430
    %v432 = vadd.f32 %v429, 1.0
    %v433 = vadd.f32 %v431, 1.0
    %v434 = vrcp.pop %v432
    %v435 = vmul.f32 %v432, %v434
    %v436 = vsub.f32 1.0, %v435
    %v437 = vmul.f32 %v434, %v436
    %v438 = vadd.f32 %v434, %v437
    %vm439 = vweird.f32 %v432
    %vm440 = vweird.f32 %v434
    %vm441 = vmor %vm439, %vm440
    %v442 = vsel %vm441, %v434, %v438
    %v443 = vand.u32 2147483647, %v432
    %vm444 = vcmp.eq.f32.partialorder %v443, 8.507059e+37
    %v445 = vand.u32 %v432, 2147483648
    %v446 = vor.u32 1.1754944e-38, %v445
    %v447 = vsel %vm444, %v446, %v442
    %v448 = vmul.f32 1.0, %v447
    %v449 = vrcp.pop %v433
    %v450 = vmul.f32 %v433, %v449
    %v451 = vsub.f32 1.0, %v450
    %v452 = vmul.f32 %v449, %v451
    %v453 = vadd.f32 %v449, %v452
    %vm454 = vweird.f32 %v433
    %vm455 = vweird.f32 %v449
    %vm456 = vmor %vm454, %vm455
    %v457 = vsel %vm456, %v449, %v453
    %v458 = vand.u32 2147483647, %v433
    %vm459 = vcmp.eq.f32.partialorder %v458, 8.507059e+37
    %v460 = vand.u32 %v433, 2147483648
    %v461 = vor.u32 1.1754944e-38, %v460
    %v462 = vsel %vm459, %v461, %v457
    %v463 = vmul.f32 1.0, %v462
    %464 = vst [vmem:[#allocation2] sm:$0xff] %v448
    %465 = vst [vmem:[#allocation2 + $0x8] sm:$0xff] %v463
    %v466 = vperm.slane %v233, 0
    %v467 = vsub.f32 %v233, %v466
    %v468 = vsub.f32 %v236, %v466
    %v469 = vmul.f32 %v467, %v467
    %v470 = vmul.f32 %v468, %v468
    %v471 = vsel %vm242, %v469, 0.0
    %472 = vadd.xlane.f32.xlu0 %v471
    %v473 = vpop.xlane.xlu0 %472
    %v474 = vsel %vm242, %v470, 0.0
    %475 = vadd.xlane.f32.xlu0 %v474
    %v476 = vpop.xlane.xlu0 %475
    %vm477 = vcmp.lt.f32.partialorder %v473, inf
    %vm478 = vcmp.lt.f32.partialorder %v476, inf
    %v479 = vsel %vm477, %v473, inf
    %v480 = vsel %vm478, %v476, inf
    %v481 = vperm.slane %v233, 1
    %v482 = vsub.f32 %v233, %v481
    %v483 = vsub.f32 %v236, %v481
    %v484 = vmul.f32 %v482, %v482
    %v485 = vmul.f32 %v483, %v483
    %v486 = vsel %vm242, %v484, 0.0
    %487 = vadd.xlane.f32.xlu0 %v486
    %v488 = vpop.xlane.xlu0 %487
    %v489 = vsel %vm242, %v485, 0.0
    %490 = vadd.xlane.f32.xlu0 %v489
    %v491 = vpop.xlane.xlu0 %490
    %vm492 = vcmp.lt.f32.partialorder %v488, %v479
    %vm493 = vcmp.lt.f32.partialorder %v491, %v480
    %v494 = vsel %vm492, %v488, %v479
    %v495 = vsel %vm493, %v491, %v480
    %v496 = vsel %vm492, 1, 0
    %v497 = vsel %vm493, 1, 0
    %v498 = vperm.slane %v233, 2
    %v499 = vsub.f32 %v233, %v498
    %v500 = vsub.f32 %v236, %v498
    %v501 = vmul.f32 %v499, %v499
    %v502 = vmul.f32 %v500, %v500
    %v503 = vsel %vm242, %v501, 0.0
    %504 = vadd.xlane.f32.xlu0 %v503
    %v505 = vpop.xlane.xlu0 %504
    %v506 = vsel %vm242, %v502, 0.0
    %507 = vadd.xlane.f32.xlu0 %v506
    %v508 = vpop.xlane.xlu0 %507
    %vm509 = vcmp.lt.f32.partialorder %v505, %v494
    %vm510 = vcmp.lt.f32.partialorder %v508, %v495
    %v511 = vsel %vm509, 2, %v496
    %v512 = vsel %vm510, 2, %v497
    %vm513 = vcmp.eq.s32.totalorder %v511, 0
    %vm514 = vcmp.eq.s32.totalorder %v512, 0
    %v515 = vsel %vm513, 1, 0
    %v516 = vsel %vm514, 1, 0
    %v517 = vcvt.s32.f32 %v515
    %v518 = vcvt.s32.f32 %v516
    %v519 = vadd.f32 %v517, %v518
    %v520 = vrot.slane %v519, 4
    %v521 = vadd.f32 %v519, %v520
    %v522 = vrot.slane %v521, 2
    %v523 = vadd.f32 %v521, %v522
    %v524 = vrot.slane %v523, 1
    %v525 = vadd.f32 %v523, %v524
    %v526 = vmul.f32 %v517, %v233
    %v527 = vmul.f32 %v518, %v236
    %v528 = vsel %vm242, %v526, 0.0
    %v529 = vsel %vm242, %v527, 0.0
    %v530 = vadd.f32 %v528, %v529
    %v531 = vrot.slane %v530, 4
    %v532 = vadd.f32 %v530, %v531
    %v533 = vrot.slane %v532, 2
    %v534 = vadd.f32 %v532, %v533
    %v535 = vrot.slane %v534, 1
    %v536 = vadd.f32 %v534, %v535
    %vm537 = vcmp.gt.f32.partialorder %v525, 0.0
    %v538 = vmax.f32 %v525, 1.0
    %v539 = vrcp.pop %v538
    %v540 = vmul.f32 %v538, %v539
    %v541 = vsub.f32 1.0, %v540
    %v542 = vmul.f32 %v539, %v541
    %v543 = vadd.f32 %v539, %v542
    %vm544 = vweird.f32 %v538
    %vm545 = vweird.f32 %v539
    %vm546 = vmor %vm544, %vm545
    %v547 = vsel %vm546, %v539, %v543
    %v548 = vand.u32 2147483647, %v538
    %vm549 = vcmp.eq.f32.partialorder %v548, 8.507059e+37
    %v550 = vand.u32 %v538, 2147483648
    %v551 = vor.u32 1.1754944e-38, %v550
    %v552 = vsel %vm549, %v551, %v547
    %v553 = vmul.f32 %v536, %v552
    %v554 = vsel %vm537, 1, 0
    %vm555 = vcmp.eq.s32.totalorder %v554, 1
    %v556 = vsel %vm555, %v553, %v233
    %vm557 = vcmp.eq.s32.totalorder %v511, 1
    %vm558 = vcmp.eq.s32.totalorder %v512, 1
    %v559 = vsel %vm557, 1, 0
    %v560 = vsel %vm558, 1, 0
    %v561 = vcvt.s32.f32 %v559
    %v562 = vcvt.s32.f32 %v560
    %v563 = vadd.f32 %v561, %v562
    %v564 = vrot.slane %v563, 4
    %v565 = vadd.f32 %v563, %v564
    %v566 = vrot.slane %v565, 2
    %v567 = vadd.f32 %v565, %v566
    %v568 = vrot.slane %v567, 1
    %v569 = vadd.f32 %v567, %v568
    %v570 = vmul.f32 %v561, %v233
    %v571 = vmul.f32 %v562, %v236
    %v572 = vsel %vm242, %v570, 0.0
    %v573 = vsel %vm242, %v571, 0.0
    %v574 = vadd.f32 %v572, %v573
    %v575 = vrot.slane %v574, 4
    %v576 = vadd.f32 %v574, %v575
    %v577 = vrot.slane %v576, 2
    %v578 = vadd.f32 %v576, %v577
    %v579 = vrot.slane %v578, 1
    %v580 = vadd.f32 %v578, %v579
    %vm581 = vcmp.gt.f32.partialorder %v569, 0.0
    %v582 = vmax.f32 %v569, 1.0
    %v583 = vrcp.pop %v582
    %v584 = vmul.f32 %v582, %v583
    %v585 = vsub.f32 1.0, %v584
    %v586 = vmul.f32 %v583, %v585
    %v587 = vadd.f32 %v583, %v586
    %vm588 = vweird.f32 %v582
    %vm589 = vweird.f32 %v583
    %vm590 = vmor %vm588, %vm589
    %v591 = vsel %vm590, %v583, %v587
    %v592 = vand.u32 2147483647, %v582
    %vm593 = vcmp.eq.f32.partialorder %v592, 8.507059e+37
    %v594 = vand.u32 %v582, 2147483648
    %v595 = vor.u32 1.1754944e-38, %v594
    %v596 = vsel %vm593, %v595, %v591
    %v597 = vmul.f32 %v580, %v596
    %v598 = vsel %vm581, 1, 0
    %vm599 = vcmp.eq.s32.totalorder %v598, 1
    %v600 = vsel %vm599, %v597, %v233
    %vm601 = vcmp.eq.s32.totalorder %v511, 2
    %vm602 = vcmp.eq.s32.totalorder %v512, 2
    %v603 = vsel %vm601, 1, 0
    %v604 = vsel %vm602, 1, 0
    %v605 = vcvt.s32.f32 %v603
    %v606 = vcvt.s32.f32 %v604
    %v607 = vadd.f32 %v605, %v606
    %v608 = vrot.slane %v607, 4
    %v609 = vadd.f32 %v607, %v608
    %v610 = vrot.slane %v609, 2
    %v611 = vadd.f32 %v609, %v610
    %v612 = vrot.slane %v611, 1
    %v613 = vadd.f32 %v611, %v612
    %v614 = vmul.f32 %v605, %v233
    %v615 = vmul.f32 %v606, %v236
    %v616 = vsel %vm242, %v614, 0.0
    %v617 = vsel %vm242, %v615, 0.0
    %v618 = vadd.f32 %v616, %v617
    %v619 = vrot.slane %v618, 4
    %v620 = vadd.f32 %v618, %v619
    %v621 = vrot.slane %v620, 2
    %v622 = vadd.f32 %v620, %v621
    %v623 = vrot.slane %v622, 1
    %v624 = vadd.f32 %v622, %v623
    %vm625 = vcmp.gt.f32.partialorder %v613, 0.0
    %v626 = vmax.f32 %v613, 1.0
    %v627 = vrcp.pop %v626
    %v628 = vmul.f32 %v626, %v627
    %v629 = vsub.f32 1.0, %v628
    %v630 = vmul.f32 %v627, %v629
    %v631 = vadd.f32 %v627, %v630
    %vm632 = vweird.f32 %v626
    %vm633 = vweird.f32 %v627
    %vm634 = vmor %vm632, %vm633
    %v635 = vsel %vm634, %v627, %v631
    %v636 = vand.u32 2147483647, %v626
    %vm637 = vcmp.eq.f32.partialorder %v636, 8.507059e+37
    %v638 = vand.u32 %v626, 2147483648
    %v639 = vor.u32 1.1754944e-38, %v638
    %v640 = vsel %vm637, %v639, %v635
    %v641 = vmul.f32 %v624, %v640
    %v642 = vsel %vm625, 1, 0
    %vm643 = vcmp.eq.s32.totalorder %v642, 1
    %v644 = vsel %vm643, %v641, %v233
    %vm645 = vcmask 1040384
    %v646 = vsel %vm645, %v556, %v600
    %v647 = vsel %vm171, %v646, %v644
    %vm648 = vcmask 1042432
    %v649 = vsel %vm648, %v647, %v233
    %v650 = vperm.slane %v649, 0
    %v651 = vsub.f32 %v233, %v650
    %v652 = vsub.f32 %v236, %v650
    %v653 = vmul.f32 %v651, %v651
    %v654 = vmul.f32 %v652, %v652
    %v655 = vsel %vm242, %v653, 0.0
    %656 = vadd.xlane.f32.xlu0 %v655
    %v657 = vpop.xlane.xlu0 %656
    %v658 = vsel %vm242, %v654, 0.0
    %659 = vadd.xlane.f32.xlu0 %v658
    %v660 = vpop.xlane.xlu0 %659
    %vm661 = vcmp.lt.f32.partialorder %v657, inf
    %vm662 = vcmp.lt.f32.partialorder %v660, inf
    %v663 = vsel %vm661, %v657, inf
    %v664 = vsel %vm662, %v660, inf
    %v665 = vperm.slane %v649, 1
    %v666 = vsub.f32 %v233, %v665
    %v667 = vsub.f32 %v236, %v665
    %v668 = vmul.f32 %v666, %v666
    %v669 = vmul.f32 %v667, %v667
    %v670 = vsel %vm242, %v668, 0.0
    %671 = vadd.xlane.f32.xlu0 %v670
    %v672 = vpop.xlane.xlu0 %671
    %v673 = vsel %vm242, %v669, 0.0
    %674 = vadd.xlane.f32.xlu0 %v673
    %v675 = vpop.xlane.xlu0 %674
    %vm676 = vcmp.lt.f32.partialorder %v672, %v663
    %vm677 = vcmp.lt.f32.partialorder %v675, %v664
    %v678 = vsel %vm676, %v672, %v663
    %v679 = vsel %vm677, %v675, %v664
    %v680 = vsel %vm676, 1, 0
    %v681 = vsel %vm677, 1, 0
    %v682 = vperm.slane %v649, 2
    %v683 = vsub.f32 %v233, %v682
    %v684 = vsub.f32 %v236, %v682
    %v685 = vmul.f32 %v683, %v683
    %v686 = vmul.f32 %v684, %v684
    %v687 = vsel %vm242, %v685, 0.0
    %688 = vadd.xlane.f32.xlu0 %v687
    %v689 = vpop.xlane.xlu0 %688
    %v690 = vsel %vm242, %v686, 0.0
    %691 = vadd.xlane.f32.xlu0 %v690
    %v692 = vpop.xlane.xlu0 %691
    %vm693 = vcmp.lt.f32.partialorder %v689, %v678
    %vm694 = vcmp.lt.f32.partialorder %v692, %v679
    %v695 = vsel %vm693, 2, %v680
    %v696 = vsel %vm694, 2, %v681
    %vm697 = vcmp.eq.s32.totalorder %v695, 0
    %vm698 = vcmp.eq.s32.totalorder %v696, 0
    %v699 = vsel %vm697, 1, 0
    %v700 = vsel %vm698, 1, 0
    %v701 = vcvt.s32.f32 %v699
    %v702 = vcvt.s32.f32 %v700
    %v703 = vadd.f32 %v701, %v702
    %v704 = vrot.slane %v703, 4
    %v705 = vadd.f32 %v703, %v704
    %v706 = vrot.slane %v705, 2
    %v707 = vadd.f32 %v705, %v706
    %v708 = vrot.slane %v707, 1
    %v709 = vadd.f32 %v707, %v708
    %v710 = vmul.f32 %v701, %v233
    %v711 = vmul.f32 %v702, %v236
    %v712 = vsel %vm242, %v710, 0.0
    %v713 = vsel %vm242, %v711, 0.0
    %v714 = vadd.f32 %v712, %v713
    %v715 = vrot.slane %v714, 4
    %v716 = vadd.f32 %v714, %v715
    %v717 = vrot.slane %v716, 2
    %v718 = vadd.f32 %v716, %v717
    %v719 = vrot.slane %v718, 1
    %v720 = vadd.f32 %v718, %v719
    %vm721 = vcmp.gt.f32.partialorder %v709, 0.0
    %v722 = vmax.f32 %v709, 1.0
    %v723 = vrcp.pop %v722
    %v724 = vmul.f32 %v722, %v723
    %v725 = vsub.f32 1.0, %v724
    %v726 = vmul.f32 %v723, %v725
    %v727 = vadd.f32 %v723, %v726
    %vm728 = vweird.f32 %v722
    %vm729 = vweird.f32 %v723
    %vm730 = vmor %vm728, %vm729
    %v731 = vsel %vm730, %v723, %v727
    %v732 = vand.u32 2147483647, %v722
    %vm733 = vcmp.eq.f32.partialorder %v732, 8.507059e+37
    %v734 = vand.u32 %v722, 2147483648
    %v735 = vor.u32 1.1754944e-38, %v734
    %v736 = vsel %vm733, %v735, %v731
    %v737 = vmul.f32 %v720, %v736
    %v738 = vsel %vm721, 1, 0
    %vm739 = vcmp.eq.s32.totalorder %v738, 1
    %v740 = vsel %vm739, %v737, %v649
    %vm741 = vcmp.eq.s32.totalorder %v695, 1
    %vm742 = vcmp.eq.s32.totalorder %v696, 1
    %v743 = vsel %vm741, 1, 0
    %v744 = vsel %vm742, 1, 0
    %v745 = vcvt.s32.f32 %v743
    %v746 = vcvt.s32.f32 %v744
    %v747 = vadd.f32 %v745, %v746
    %v748 = vrot.slane %v747, 4
    %v749 = vadd.f32 %v747, %v748
    %v750 = vrot.slane %v749, 2
    %v751 = vadd.f32 %v749, %v750
    %v752 = vrot.slane %v751, 1
    %v753 = vadd.f32 %v751, %v752
    %v754 = vmul.f32 %v745, %v233
    %v755 = vmul.f32 %v746, %v236
    %v756 = vsel %vm242, %v754, 0.0
    %v757 = vsel %vm242, %v755, 0.0
    %v758 = vadd.f32 %v756, %v757
    %v759 = vrot.slane %v758, 4
    %v760 = vadd.f32 %v758, %v759
    %v761 = vrot.slane %v760, 2
    %v762 = vadd.f32 %v760, %v761
    %v763 = vrot.slane %v762, 1
    %v764 = vadd.f32 %v762, %v763
    %vm765 = vcmp.gt.f32.partialorder %v753, 0.0
    %v766 = vmax.f32 %v753, 1.0
    %v767 = vrcp.pop %v766
    %v768 = vmul.f32 %v766, %v767
    %v769 = vsub.f32 1.0, %v768
    %v770 = vmul.f32 %v767, %v769
    %v771 = vadd.f32 %v767, %v770
    %vm772 = vweird.f32 %v766
    %vm773 = vweird.f32 %v767
    %vm774 = vmor %vm772, %vm773
    %v775 = vsel %vm774, %v767, %v771
    %v776 = vand.u32 2147483647, %v766
    %vm777 = vcmp.eq.f32.partialorder %v776, 8.507059e+37
    %v778 = vand.u32 %v766, 2147483648
    %v779 = vor.u32 1.1754944e-38, %v778
    %v780 = vsel %vm777, %v779, %v775
    %v781 = vmul.f32 %v764, %v780
    %v782 = vsel %vm765, 1, 0
    %vm783 = vcmp.eq.s32.totalorder %v782, 1
    %v784 = vsel %vm783, %v781, %v649
    %vm785 = vcmp.eq.s32.totalorder %v695, 2
    %vm786 = vcmp.eq.s32.totalorder %v696, 2
    %v787 = vsel %vm785, 1, 0
    %v788 = vsel %vm786, 1, 0
    %v789 = vcvt.s32.f32 %v787
    %v790 = vcvt.s32.f32 %v788
    %v791 = vadd.f32 %v789, %v790
    %v792 = vrot.slane %v791, 4
    %v793 = vadd.f32 %v791, %v792
    %v794 = vrot.slane %v793, 2
    %v795 = vadd.f32 %v793, %v794
    %v796 = vrot.slane %v795, 1
    %v797 = vadd.f32 %v795, %v796
    %v798 = vmul.f32 %v789, %v233
    %v799 = vmul.f32 %v790, %v236
    %v800 = vsel %vm242, %v798, 0.0
    %v801 = vsel %vm242, %v799, 0.0
    %v802 = vadd.f32 %v800, %v801
    %v803 = vrot.slane %v802, 4
    %v804 = vadd.f32 %v802, %v803
    %v805 = vrot.slane %v804, 2
    %v806 = vadd.f32 %v804, %v805
    %v807 = vrot.slane %v806, 1
    %v808 = vadd.f32 %v806, %v807
    %vm809 = vcmp.gt.f32.partialorder %v797, 0.0
    %v810 = vmax.f32 %v797, 1.0
    %v811 = vrcp.pop %v810
    %v812 = vmul.f32 %v810, %v811
    %v813 = vsub.f32 1.0, %v812
    %v814 = vmul.f32 %v811, %v813
    %v815 = vadd.f32 %v811, %v814
    %vm816 = vweird.f32 %v810
    %vm817 = vweird.f32 %v811
    %vm818 = vmor %vm816, %vm817
    %v819 = vsel %vm818, %v811, %v815
    %v820 = vand.u32 2147483647, %v810
    %vm821 = vcmp.eq.f32.partialorder %v820, 8.507059e+37
    %v822 = vand.u32 %v810, 2147483648
    %v823 = vor.u32 1.1754944e-38, %v822
    %v824 = vsel %vm821, %v823, %v819
    %v825 = vmul.f32 %v808, %v824
    %v826 = vsel %vm809, 1, 0
    %vm827 = vcmp.eq.s32.totalorder %v826, 1
    %v828 = vsel %vm827, %v825, %v649
    %v829 = vsel %vm645, %v740, %v784
    %v830 = vsel %vm171, %v829, %v828
    %v831 = vsel %vm648, %v830, %v649
    %v832 = vperm.slane %v831, 0
    %v833 = vsub.f32 %v233, %v832
    %v834 = vsub.f32 %v236, %v832
    %v835 = vmul.f32 %v833, %v833
    %v836 = vmul.f32 %v834, %v834
    %v837 = vsel %vm242, %v835, 0.0
    %838 = vadd.xlane.f32.xlu0 %v837
    %v839 = vpop.xlane.xlu0 %838
    %v840 = vsel %vm242, %v836, 0.0
    %841 = vadd.xlane.f32.xlu0 %v840
    %v842 = vpop.xlane.xlu0 %841
    %vm843 = vcmp.lt.f32.partialorder %v839, inf
    %vm844 = vcmp.lt.f32.partialorder %v842, inf
    %v845 = vsel %vm843, %v839, inf
    %v846 = vsel %vm844, %v842, inf
    %v847 = vperm.slane %v831, 1
    %v848 = vsub.f32 %v233, %v847
    %v849 = vsub.f32 %v236, %v847
    %v850 = vmul.f32 %v848, %v848
    %v851 = vmul.f32 %v849, %v849
    %v852 = vsel %vm242, %v850, 0.0
    %853 = vadd.xlane.f32.xlu0 %v852
    %v854 = vpop.xlane.xlu0 %853
    %v855 = vsel %vm242, %v851, 0.0
    %856 = vadd.xlane.f32.xlu0 %v855
    %v857 = vpop.xlane.xlu0 %856
    %vm858 = vcmp.lt.f32.partialorder %v854, %v845
    %vm859 = vcmp.lt.f32.partialorder %v857, %v846
    %v860 = vsel %vm858, %v854, %v845
    %v861 = vsel %vm859, %v857, %v846
    %v862 = vsel %vm858, 1, 0
    %v863 = vsel %vm859, 1, 0
    %v864 = vperm.slane %v831, 2
    %v865 = vsub.f32 %v233, %v864
    %v866 = vsub.f32 %v236, %v864
    %v867 = vmul.f32 %v865, %v865
    %v868 = vmul.f32 %v866, %v866
    %v869 = vsel %vm242, %v867, 0.0
    %870 = vadd.xlane.f32.xlu0 %v869
    %v871 = vpop.xlane.xlu0 %870
    %v872 = vsel %vm242, %v868, 0.0
    %873 = vadd.xlane.f32.xlu0 %v872
    %v874 = vpop.xlane.xlu0 %873
    %vm875 = vcmp.lt.f32.partialorder %v871, %v860
    %vm876 = vcmp.lt.f32.partialorder %v874, %v861
    %v877 = vsel %vm875, 2, %v862
    %v878 = vsel %vm876, 2, %v863
    %vm879 = vcmp.eq.s32.totalorder %v877, 0
    %vm880 = vcmp.eq.s32.totalorder %v878, 0
    %v881 = vsel %vm879, 1, 0
    %v882 = vsel %vm880, 1, 0
    %v883 = vcvt.s32.f32 %v881
    %v884 = vcvt.s32.f32 %v882
    %v885 = vadd.f32 %v883, %v884
    %v886 = vrot.slane %v885, 4
    %v887 = vadd.f32 %v885, %v886
    %v888 = vrot.slane %v887, 2
    %v889 = vadd.f32 %v887, %v888
    %v890 = vrot.slane %v889, 1
    %v891 = vadd.f32 %v889, %v890
    %v892 = vmul.f32 %v883, %v233
    %v893 = vmul.f32 %v884, %v236
    %v894 = vsel %vm242, %v892, 0.0
    %v895 = vsel %vm242, %v893, 0.0
    %v896 = vadd.f32 %v894, %v895
    %v897 = vrot.slane %v896, 4
    %v898 = vadd.f32 %v896, %v897
    %v899 = vrot.slane %v898, 2
    %v900 = vadd.f32 %v898, %v899
    %v901 = vrot.slane %v900, 1
    %v902 = vadd.f32 %v900, %v901
    %vm903 = vcmp.gt.f32.partialorder %v891, 0.0
    %v904 = vmax.f32 %v891, 1.0
    %v905 = vrcp.pop %v904
    %v906 = vmul.f32 %v904, %v905
    %v907 = vsub.f32 1.0, %v906
    %v908 = vmul.f32 %v905, %v907
    %v909 = vadd.f32 %v905, %v908
    %vm910 = vweird.f32 %v904
    %vm911 = vweird.f32 %v905
    %vm912 = vmor %vm910, %vm911
    %v913 = vsel %vm912, %v905, %v909
    %v914 = vand.u32 2147483647, %v904
    %vm915 = vcmp.eq.f32.partialorder %v914, 8.507059e+37
    %v916 = vand.u32 %v904, 2147483648
    %v917 = vor.u32 1.1754944e-38, %v916
    %v918 = vsel %vm915, %v917, %v913
    %v919 = vmul.f32 %v902, %v918
    %v920 = vsel %vm903, 1, 0
    %vm921 = vcmp.eq.s32.totalorder %v920, 1
    %v922 = vsel %vm921, %v919, %v831
    %vm923 = vcmp.eq.s32.totalorder %v877, 1
    %vm924 = vcmp.eq.s32.totalorder %v878, 1
    %v925 = vsel %vm923, 1, 0
    %v926 = vsel %vm924, 1, 0
    %v927 = vcvt.s32.f32 %v925
    %v928 = vcvt.s32.f32 %v926
    %v929 = vadd.f32 %v927, %v928
    %v930 = vrot.slane %v929, 4
    %v931 = vadd.f32 %v929, %v930
    %v932 = vrot.slane %v931, 2
    %v933 = vadd.f32 %v931, %v932
    %v934 = vrot.slane %v933, 1
    %v935 = vadd.f32 %v933, %v934
    %v936 = vmul.f32 %v927, %v233
    %v937 = vmul.f32 %v928, %v236
    %v938 = vsel %vm242, %v936, 0.0
    %v939 = vsel %vm242, %v937, 0.0
    %v940 = vadd.f32 %v938, %v939
    %v941 = vrot.slane %v940, 4
    %v942 = vadd.f32 %v940, %v941
    %v943 = vrot.slane %v942, 2
    %v944 = vadd.f32 %v942, %v943
    %v945 = vrot.slane %v944, 1
    %v946 = vadd.f32 %v944, %v945
    %vm947 = vcmp.gt.f32.partialorder %v935, 0.0
    %v948 = vmax.f32 %v935, 1.0
    %v949 = vrcp.pop %v948
    %v950 = vmul.f32 %v948, %v949
    %v951 = vsub.f32 1.0, %v950
    %v952 = vmul.f32 %v949, %v951
    %v953 = vadd.f32 %v949, %v952
    %vm954 = vweird.f32 %v948
    %vm955 = vweird.f32 %v949
    %vm956 = vmor %vm954, %vm955
    %v957 = vsel %vm956, %v949, %v953
    %v958 = vand.u32 2147483647, %v948
    %vm959 = vcmp.eq.f32.partialorder %v958, 8.507059e+37
    %v960 = vand.u32 %v948, 2147483648
    %v961 = vor.u32 1.1754944e-38, %v960
    %v962 = vsel %vm959, %v961, %v957
    %v963 = vmul.f32 %v946, %v962
    %v964 = vsel %vm947, 1, 0
    %vm965 = vcmp.eq.s32.totalorder %v964, 1
    %v966 = vsel %vm965, %v963, %v831
    %vm967 = vcmp.eq.s32.totalorder %v877, 2
    %vm968 = vcmp.eq.s32.totalorder %v878, 2
    %v969 = vsel %vm967, 1, 0
    %v970 = vsel %vm968, 1, 0
    %v971 = vcvt.s32.f32 %v969
    %v972 = vcvt.s32.f32 %v970
    %v973 = vadd.f32 %v971, %v972
    %v974 = vrot.slane %v973, 4
    %v975 = vadd.f32 %v973, %v974
    %v976 = vrot.slane %v975, 2
    %v977 = vadd.f32 %v975, %v976
    %v978 = vrot.slane %v977, 1
    %v979 = vadd.f32 %v977, %v978
    %v980 = vmul.f32 %v971, %v233
    %v981 = vmul.f32 %v972, %v236
    %v982 = vsel %vm242, %v980, 0.0
    %v983 = vsel %vm242, %v981, 0.0
    %v984 = vadd.f32 %v982, %v983
    %v985 = vrot.slane %v984, 4
    %v986 = vadd.f32 %v984, %v985
    %v987 = vrot.slane %v986, 2
    %v988 = vadd.f32 %v986, %v987
    %v989 = vrot.slane %v988, 1
    %v990 = vadd.f32 %v988, %v989
    %vm991 = vcmp.gt.f32.partialorder %v979, 0.0
    %v992 = vmax.f32 %v979, 1.0
    %v993 = vrcp.pop %v992
    %v994 = vmul.f32 %v992, %v993
    %v995 = vsub.f32 1.0, %v994
    %v996 = vmul.f32 %v993, %v995
    %v997 = vadd.f32 %v993, %v996
    %vm998 = vweird.f32 %v992
    %vm999 = vweird.f32 %v993
    %vm1000 = vmor %vm998, %vm999
    %v1001 = vsel %vm1000, %v993, %v997
    %v1002 = vand.u32 2147483647, %v992
    %vm1003 = vcmp.eq.f32.partialorder %v1002, 8.507059e+37
    %v1004 = vand.u32 %v992, 2147483648
    %v1005 = vor.u32 1.1754944e-38, %v1004
    %v1006 = vsel %vm1003, %v1005, %v1001
    %v1007 = vmul.f32 %v990, %v1006
    %v1008 = vsel %vm991, 1, 0
    %vm1009 = vcmp.eq.s32.totalorder %v1008, 1
    %v1010 = vsel %vm1009, %v1007, %v831
    %v1011 = vsel %vm645, %v922, %v966
    %v1012 = vsel %vm171, %v1011, %v1010
    %v1013 = vsel %vm648, %v1012, %v831
    %v1014 = vperm.slane %v1013, 0
    %v1015 = vsub.f32 %v233, %v1014
    %v1016 = vsub.f32 %v236, %v1014
    %v1017 = vmul.f32 %v1015, %v1015
    %v1018 = vmul.f32 %v1016, %v1016
    %v1019 = vsel %vm242, %v1017, 0.0
    %1020 = vadd.xlane.f32.xlu0 %v1019
    %v1021 = vpop.xlane.xlu0 %1020
    %v1022 = vsel %vm242, %v1018, 0.0
    %1023 = vadd.xlane.f32.xlu0 %v1022
    %v1024 = vpop.xlane.xlu0 %1023
    %vm1025 = vcmp.lt.f32.partialorder %v1021, inf
    %vm1026 = vcmp.lt.f32.partialorder %v1024, inf
    %v1027 = vsel %vm1025, %v1021, inf
    %v1028 = vsel %vm1026, %v1024, inf
    %v1029 = vperm.slane %v1013, 1
    %v1030 = vsub.f32 %v233, %v1029
    %v1031 = vsub.f32 %v236, %v1029
    %v1032 = vmul.f32 %v1030, %v1030
    %v1033 = vmul.f32 %v1031, %v1031
    %v1034 = vsel %vm242, %v1032, 0.0
    %1035 = vadd.xlane.f32.xlu0 %v1034
    %v1036 = vpop.xlane.xlu0 %1035
    %v1037 = vsel %vm242, %v1033, 0.0
    %1038 = vadd.xlane.f32.xlu0 %v1037
    %v1039 = vpop.xlane.xlu0 %1038
    %vm1040 = vcmp.lt.f32.partialorder %v1036, %v1027
    %vm1041 = vcmp.lt.f32.partialorder %v1039, %v1028
    %v1042 = vsel %vm1040, %v1036, %v1027
    %v1043 = vsel %vm1041, %v1039, %v1028
    %v1044 = vsel %vm1040, 1, 0
    %v1045 = vsel %vm1041, 1, 0
    %v1046 = vperm.slane %v1013, 2
    %v1047 = vsub.f32 %v233, %v1046
    %v1048 = vsub.f32 %v236, %v1046
    %v1049 = vmul.f32 %v1047, %v1047
    %v1050 = vmul.f32 %v1048, %v1048
    %v1051 = vsel %vm242, %v1049, 0.0
    %1052 = vadd.xlane.f32.xlu0 %v1051
    %v1053 = vpop.xlane.xlu0 %1052
    %v1054 = vsel %vm242, %v1050, 0.0
    %1055 = vadd.xlane.f32.xlu0 %v1054
    %v1056 = vpop.xlane.xlu0 %1055
    %vm1057 = vcmp.lt.f32.partialorder %v1053, %v1042
    %vm1058 = vcmp.lt.f32.partialorder %v1056, %v1043
    %v1059 = vsel %vm1057, 2, %v1044
    %v1060 = vsel %vm1058, 2, %v1045
    %vm1061 = vcmp.eq.s32.totalorder %v1059, 0
    %vm1062 = vcmp.eq.s32.totalorder %v1060, 0
    %v1063 = vsel %vm1061, 1, 0
    %v1064 = vsel %vm1062, 1, 0
    %v1065 = vcvt.s32.f32 %v1063
    %v1066 = vcvt.s32.f32 %v1064
    %v1067 = vadd.f32 %v1065, %v1066
    %v1068 = vrot.slane %v1067, 4
    %v1069 = vadd.f32 %v1067, %v1068
    %v1070 = vrot.slane %v1069, 2
    %v1071 = vadd.f32 %v1069, %v1070
    %v1072 = vrot.slane %v1071, 1
    %v1073 = vadd.f32 %v1071, %v1072
    %v1074 = vmul.f32 %v1065, %v233
    %v1075 = vmul.f32 %v1066, %v236
    %v1076 = vsel %vm242, %v1074, 0.0
    %v1077 = vsel %vm242, %v1075, 0.0
    %v1078 = vadd.f32 %v1076, %v1077
    %v1079 = vrot.slane %v1078, 4
    %v1080 = vadd.f32 %v1078, %v1079
    %v1081 = vrot.slane %v1080, 2
    %v1082 = vadd.f32 %v1080, %v1081
    %v1083 = vrot.slane %v1082, 1
    %v1084 = vadd.f32 %v1082, %v1083
    %vm1085 = vcmp.gt.f32.partialorder %v1073, 0.0
    %v1086 = vmax.f32 %v1073, 1.0
    %v1087 = vrcp.pop %v1086
    %v1088 = vmul.f32 %v1086, %v1087
    %v1089 = vsub.f32 1.0, %v1088
    %v1090 = vmul.f32 %v1087, %v1089
    %v1091 = vadd.f32 %v1087, %v1090
    %vm1092 = vweird.f32 %v1086
    %vm1093 = vweird.f32 %v1087
    %vm1094 = vmor %vm1092, %vm1093
    %v1095 = vsel %vm1094, %v1087, %v1091
    %v1096 = vand.u32 2147483647, %v1086
    %vm1097 = vcmp.eq.f32.partialorder %v1096, 8.507059e+37
    %v1098 = vand.u32 %v1086, 2147483648
    %v1099 = vor.u32 1.1754944e-38, %v1098
    %v1100 = vsel %vm1097, %v1099, %v1095
    %v1101 = vmul.f32 %v1084, %v1100
    %v1102 = vsel %vm1085, 1, 0
    %vm1103 = vcmp.eq.s32.totalorder %v1102, 1
    %v1104 = vsel %vm1103, %v1101, %v1013
    %vm1105 = vcmp.eq.s32.totalorder %v1059, 1
    %vm1106 = vcmp.eq.s32.totalorder %v1060, 1
    %v1107 = vsel %vm1105, 1, 0
    %v1108 = vsel %vm1106, 1, 0
    %v1109 = vcvt.s32.f32 %v1107
    %v1110 = vcvt.s32.f32 %v1108
    %v1111 = vadd.f32 %v1109, %v1110
    %v1112 = vrot.slane %v1111, 4
    %v1113 = vadd.f32 %v1111, %v1112
    %v1114 = vrot.slane %v1113, 2
    %v1115 = vadd.f32 %v1113, %v1114
    %v1116 = vrot.slane %v1115, 1
    %v1117 = vadd.f32 %v1115, %v1116
    %v1118 = vmul.f32 %v1109, %v233
    %v1119 = vmul.f32 %v1110, %v236
    %v1120 = vsel %vm242, %v1118, 0.0
    %v1121 = vsel %vm242, %v1119, 0.0
    %v1122 = vadd.f32 %v1120, %v1121
    %v1123 = vrot.slane %v1122, 4
    %v1124 = vadd.f32 %v1122, %v1123
    %v1125 = vrot.slane %v1124, 2
    %v1126 = vadd.f32 %v1124, %v1125
    %v1127 = vrot.slane %v1126, 1
    %v1128 = vadd.f32 %v1126, %v1127
    %vm1129 = vcmp.gt.f32.partialorder %v1117, 0.0
    %v1130 = vmax.f32 %v1117, 1.0
    %v1131 = vrcp.pop %v1130
    %v1132 = vmul.f32 %v1130, %v1131
    %v1133 = vsub.f32 1.0, %v1132
    %v1134 = vmul.f32 %v1131, %v1133
    %v1135 = vadd.f32 %v1131, %v1134
    %vm1136 = vweird.f32 %v1130
    %vm1137 = vweird.f32 %v1131
    %vm1138 = vmor %vm1136, %vm1137
    %v1139 = vsel %vm1138, %v1131, %v1135
    %v1140 = vand.u32 2147483647, %v1130
    %vm1141 = vcmp.eq.f32.partialorder %v1140, 8.507059e+37
    %v1142 = vand.u32 %v1130, 2147483648
    %v1143 = vor.u32 1.1754944e-38, %v1142
    %v1144 = vsel %vm1141, %v1143, %v1139
    %v1145 = vmul.f32 %v1128, %v1144
    %v1146 = vsel %vm1129, 1, 0
    %vm1147 = vcmp.eq.s32.totalorder %v1146, 1
    %v1148 = vsel %vm1147, %v1145, %v1013
    %vm1149 = vcmp.eq.s32.totalorder %v1059, 2
    %vm1150 = vcmp.eq.s32.totalorder %v1060, 2
    %v1151 = vsel %vm1149, 1, 0
    %v1152 = vsel %vm1150, 1, 0
    %v1153 = vcvt.s32.f32 %v1151
    %v1154 = vcvt.s32.f32 %v1152
    %v1155 = vadd.f32 %v1153, %v1154
    %v1156 = vrot.slane %v1155, 4
    %v1157 = vadd.f32 %v1155, %v1156
    %v1158 = vrot.slane %v1157, 2
    %v1159 = vadd.f32 %v1157, %v1158
    %v1160 = vrot.slane %v1159, 1
    %v1161 = vadd.f32 %v1159, %v1160
    %v1162 = vmul.f32 %v1153, %v233
    %v1163 = vmul.f32 %v1154, %v236
    %v1164 = vsel %vm242, %v1162, 0.0
    %v1165 = vsel %vm242, %v1163, 0.0
    %v1166 = vadd.f32 %v1164, %v1165
    %v1167 = vrot.slane %v1166, 4
    %v1168 = vadd.f32 %v1166, %v1167
    %v1169 = vrot.slane %v1168, 2
    %v1170 = vadd.f32 %v1168, %v1169
    %v1171 = vrot.slane %v1170, 1
    %v1172 = vadd.f32 %v1170, %v1171
    %vm1173 = vcmp.gt.f32.partialorder %v1161, 0.0
    %v1174 = vmax.f32 %v1161, 1.0
    %v1175 = vrcp.pop %v1174
    %v1176 = vmul.f32 %v1174, %v1175
    %v1177 = vsub.f32 1.0, %v1176
    %v1178 = vmul.f32 %v1175, %v1177
    %v1179 = vadd.f32 %v1175, %v1178
    %vm1180 = vweird.f32 %v1174
    %vm1181 = vweird.f32 %v1175
    %vm1182 = vmor %vm1180, %vm1181
    %v1183 = vsel %vm1182, %v1175, %v1179
    %v1184 = vand.u32 2147483647, %v1174
    %vm1185 = vcmp.eq.f32.partialorder %v1184, 8.507059e+37
    %v1186 = vand.u32 %v1174, 2147483648
    %v1187 = vor.u32 1.1754944e-38, %v1186
    %v1188 = vsel %vm1185, %v1187, %v1183
    %v1189 = vmul.f32 %v1172, %v1188
    %v1190 = vsel %vm1173, 1, 0
    %vm1191 = vcmp.eq.s32.totalorder %v1190, 1
    %v1192 = vsel %vm1191, %v1189, %v1013
    %v1193 = vsel %vm645, %v1104, %v1148
    %v1194 = vsel %vm171, %v1193, %v1192
    %v1195 = vsel %vm648, %v1194, %v1013
    %v1196 = vperm.slane %v1195, 0
    %v1197 = vsub.f32 %v233, %v1196
    %v1198 = vsub.f32 %v236, %v1196
    %v1199 = vmul.f32 %v1197, %v1197
    %v1200 = vmul.f32 %v1198, %v1198
    %v1201 = vsel %vm242, %v1199, 0.0
    %1202 = vadd.xlane.f32.xlu0 %v1201
    %v1203 = vpop.xlane.xlu0 %1202
    %v1204 = vsel %vm242, %v1200, 0.0
    %1205 = vadd.xlane.f32.xlu0 %v1204
    %v1206 = vpop.xlane.xlu0 %1205
    %vm1207 = vcmp.lt.f32.partialorder %v1203, inf
    %vm1208 = vcmp.lt.f32.partialorder %v1206, inf
    %v1209 = vsel %vm1207, %v1203, inf
    %v1210 = vsel %vm1208, %v1206, inf
    %v1211 = vperm.slane %v1195, 1
    %v1212 = vsub.f32 %v233, %v1211
    %v1213 = vsub.f32 %v236, %v1211
    %v1214 = vmul.f32 %v1212, %v1212
    %v1215 = vmul.f32 %v1213, %v1213
    %v1216 = vsel %vm242, %v1214, 0.0
    %1217 = vadd.xlane.f32.xlu0 %v1216
    %v1218 = vpop.xlane.xlu0 %1217
    %v1219 = vsel %vm242, %v1215, 0.0
    %1220 = vadd.xlane.f32.xlu0 %v1219
    %v1221 = vpop.xlane.xlu0 %1220
    %vm1222 = vcmp.lt.f32.partialorder %v1218, %v1209
    %vm1223 = vcmp.lt.f32.partialorder %v1221, %v1210
    %v1224 = vsel %vm1222, %v1218, %v1209
    %v1225 = vsel %vm1223, %v1221, %v1210
    %v1226 = vsel %vm1222, 1, 0
    %v1227 = vsel %vm1223, 1, 0
    %v1228 = vperm.slane %v1195, 2
    %v1229 = vsub.f32 %v233, %v1228
    %v1230 = vsub.f32 %v236, %v1228
    %v1231 = vmul.f32 %v1229, %v1229
    %v1232 = vmul.f32 %v1230, %v1230
    %v1233 = vsel %vm242, %v1231, 0.0
    %1234 = vadd.xlane.f32.xlu0 %v1233
    %v1235 = vpop.xlane.xlu0 %1234
    %v1236 = vsel %vm242, %v1232, 0.0
    %1237 = vadd.xlane.f32.xlu0 %v1236
    %v1238 = vpop.xlane.xlu0 %1237
    %vm1239 = vcmp.lt.f32.partialorder %v1235, %v1224
    %vm1240 = vcmp.lt.f32.partialorder %v1238, %v1225
    %v1241 = vsel %vm1239, 2, %v1226
    %v1242 = vsel %vm1240, 2, %v1227
    %vm1243 = vcmp.eq.s32.totalorder %v1241, 0
    %vm1244 = vcmp.eq.s32.totalorder %v1242, 0
    %v1245 = vsel %vm1243, 1, 0
    %v1246 = vsel %vm1244, 1, 0
    %v1247 = vcvt.s32.f32 %v1245
    %v1248 = vcvt.s32.f32 %v1246
    %v1249 = vadd.f32 %v1247, %v1248
    %v1250 = vrot.slane %v1249, 4
    %v1251 = vadd.f32 %v1249, %v1250
    %v1252 = vrot.slane %v1251, 2
    %v1253 = vadd.f32 %v1251, %v1252
    %v1254 = vrot.slane %v1253, 1
    %v1255 = vadd.f32 %v1253, %v1254
    %v1256 = vmul.f32 %v1247, %v233
    %v1257 = vmul.f32 %v1248, %v236
    %v1258 = vsel %vm242, %v1256, 0.0
    %v1259 = vsel %vm242, %v1257, 0.0
    %v1260 = vadd.f32 %v1258, %v1259
    %v1261 = vrot.slane %v1260, 4
    %v1262 = vadd.f32 %v1260, %v1261
    %v1263 = vrot.slane %v1262, 2
    %v1264 = vadd.f32 %v1262, %v1263
    %v1265 = vrot.slane %v1264, 1
    %v1266 = vadd.f32 %v1264, %v1265
    %vm1267 = vcmp.gt.f32.partialorder %v1255, 0.0
    %v1268 = vmax.f32 %v1255, 1.0
    %v1269 = vrcp.pop %v1268
    %v1270 = vmul.f32 %v1268, %v1269
    %v1271 = vsub.f32 1.0, %v1270
    %v1272 = vmul.f32 %v1269, %v1271
    %v1273 = vadd.f32 %v1269, %v1272
    %vm1274 = vweird.f32 %v1268
    %vm1275 = vweird.f32 %v1269
    %vm1276 = vmor %vm1274, %vm1275
    %v1277 = vsel %vm1276, %v1269, %v1273
    %v1278 = vand.u32 2147483647, %v1268
    %vm1279 = vcmp.eq.f32.partialorder %v1278, 8.507059e+37
    %v1280 = vand.u32 %v1268, 2147483648
    %v1281 = vor.u32 1.1754944e-38, %v1280
    %v1282 = vsel %vm1279, %v1281, %v1277
    %v1283 = vmul.f32 %v1266, %v1282
    %v1284 = vsel %vm1267, 1, 0
    %vm1285 = vcmp.eq.s32.totalorder %v1284, 1
    %v1286 = vsel %vm1285, %v1283, %v1195
    %vm1287 = vcmp.eq.s32.totalorder %v1241, 1
    %vm1288 = vcmp.eq.s32.totalorder %v1242, 1
    %v1289 = vsel %vm1287, 1, 0
    %v1290 = vsel %vm1288, 1, 0
    %v1291 = vcvt.s32.f32 %v1289
    %v1292 = vcvt.s32.f32 %v1290
    %v1293 = vadd.f32 %v1291, %v1292
    %v1294 = vrot.slane %v1293, 4
    %v1295 = vadd.f32 %v1293, %v1294
    %v1296 = vrot.slane %v1295, 2
    %v1297 = vadd.f32 %v1295, %v1296
    %v1298 = vrot.slane %v1297, 1
    %v1299 = vadd.f32 %v1297, %v1298
    %v1300 = vmul.f32 %v1291, %v233
    %v1301 = vmul.f32 %v1292, %v236
    %v1302 = vsel %vm242, %v1300, 0.0
    %v1303 = vsel %vm242, %v1301, 0.0
    %v1304 = vadd.f32 %v1302, %v1303
    %v1305 = vrot.slane %v1304, 4
    %v1306 = vadd.f32 %v1304, %v1305
    %v1307 = vrot.slane %v1306, 2
    %v1308 = vadd.f32 %v1306, %v1307
    %v1309 = vrot.slane %v1308, 1
    %v1310 = vadd.f32 %v1308, %v1309
    %vm1311 = vcmp.gt.f32.partialorder %v1299, 0.0
    %v1312 = vmax.f32 %v1299, 1.0
    %v1313 = vrcp.pop %v1312
    %v1314 = vmul.f32 %v1312, %v1313
    %v1315 = vsub.f32 1.0, %v1314
    %v1316 = vmul.f32 %v1313, %v1315
    %v1317 = vadd.f32 %v1313, %v1316
    %vm1318 = vweird.f32 %v1312
    %vm1319 = vweird.f32 %v1313
    %vm1320 = vmor %vm1318, %vm1319
    %v1321 = vsel %vm1320, %v1313, %v1317
    %v1322 = vand.u32 2147483647, %v1312
    %vm1323 = vcmp.eq.f32.partialorder %v1322, 8.507059e+37
    %v1324 = vand.u32 %v1312, 2147483648
    %v1325 = vor.u32 1.1754944e-38, %v1324
    %v1326 = vsel %vm1323, %v1325, %v1321
    %v1327 = vmul.f32 %v1310, %v1326
    %v1328 = vsel %vm1311, 1, 0
    %vm1329 = vcmp.eq.s32.totalorder %v1328, 1
    %v1330 = vsel %vm1329, %v1327, %v1195
    %vm1331 = vcmp.eq.s32.totalorder %v1241, 2
    %vm1332 = vcmp.eq.s32.totalorder %v1242, 2
    %v1333 = vsel %vm1331, 1, 0
    %v1334 = vsel %vm1332, 1, 0
    %v1335 = vcvt.s32.f32 %v1333
    %v1336 = vcvt.s32.f32 %v1334
    %v1337 = vadd.f32 %v1335, %v1336
    %v1338 = vrot.slane %v1337, 4
    %v1339 = vadd.f32 %v1337, %v1338
    %v1340 = vrot.slane %v1339, 2
    %v1341 = vadd.f32 %v1339, %v1340
    %v1342 = vrot.slane %v1341, 1
    %v1343 = vadd.f32 %v1341, %v1342
    %v1344 = vmul.f32 %v1335, %v233
    %v1345 = vmul.f32 %v1336, %v236
    %v1346 = vsel %vm242, %v1344, 0.0
    %v1347 = vsel %vm242, %v1345, 0.0
    %v1348 = vadd.f32 %v1346, %v1347
    %v1349 = vrot.slane %v1348, 4
    %v1350 = vadd.f32 %v1348, %v1349
    %v1351 = vrot.slane %v1350, 2
    %v1352 = vadd.f32 %v1350, %v1351
    %v1353 = vrot.slane %v1352, 1
    %v1354 = vadd.f32 %v1352, %v1353
    %vm1355 = vcmp.gt.f32.partialorder %v1343, 0.0
    %v1356 = vmax.f32 %v1343, 1.0
    %v1357 = vrcp.pop %v1356
    %v1358 = vmul.f32 %v1356, %v1357
    %v1359 = vsub.f32 1.0, %v1358
    %v1360 = vmul.f32 %v1357, %v1359
    %v1361 = vadd.f32 %v1357, %v1360
    %vm1362 = vweird.f32 %v1356
    %vm1363 = vweird.f32 %v1357
    %vm1364 = vmor %vm1362, %vm1363
    %v1365 = vsel %vm1364, %v1357, %v1361
    %v1366 = vand.u32 2147483647, %v1356
    %vm1367 = vcmp.eq.f32.partialorder %v1366, 8.507059e+37
    %v1368 = vand.u32 %v1356, 2147483648
    %v1369 = vor.u32 1.1754944e-38, %v1368
    %v1370 = vsel %vm1367, %v1369, %v1365
    %v1371 = vmul.f32 %v1354, %v1370
    %v1372 = vsel %vm1355, 1, 0
    %vm1373 = vcmp.eq.s32.totalorder %v1372, 1
    %v1374 = vsel %vm1373, %v1371, %v1195
    %v1375 = vsel %vm645, %v1286, %v1330
    %v1376 = vsel %vm171, %v1375, %v1374
    %v1377 = vsel %vm648, %v1376, %v1195
    %v1378 = vperm.slane %v1377, 0
    %v1379 = vsub.f32 %v233, %v1378
    %v1380 = vsub.f32 %v236, %v1378
    %v1381 = vmul.f32 %v1379, %v1379
    %v1382 = vmul.f32 %v1380, %v1380
    %v1383 = vsel %vm242, %v1381, 0.0
    %1384 = vadd.xlane.f32.xlu0 %v1383
    %v1385 = vpop.xlane.xlu0 %1384
    %v1386 = vsel %vm242, %v1382, 0.0
    %1387 = vadd.xlane.f32.xlu0 %v1386
    %v1388 = vpop.xlane.xlu0 %1387
    %vm1389 = vcmp.lt.f32.partialorder %v1385, inf
    %vm1390 = vcmp.lt.f32.partialorder %v1388, inf
    %v1391 = vsel %vm1389, %v1385, inf
    %v1392 = vsel %vm1390, %v1388, inf
    %v1393 = vperm.slane %v1377, 1
    %v1394 = vsub.f32 %v233, %v1393
    %v1395 = vsub.f32 %v236, %v1393
    %v1396 = vmul.f32 %v1394, %v1394
    %v1397 = vmul.f32 %v1395, %v1395
    %v1398 = vsel %vm242, %v1396, 0.0
    %1399 = vadd.xlane.f32.xlu0 %v1398
    %v1400 = vpop.xlane.xlu0 %1399
    %v1401 = vsel %vm242, %v1397, 0.0
    %1402 = vadd.xlane.f32.xlu0 %v1401
    %v1403 = vpop.xlane.xlu0 %1402
    %vm1404 = vcmp.lt.f32.partialorder %v1400, %v1391
    %vm1405 = vcmp.lt.f32.partialorder %v1403, %v1392
    %v1406 = vsel %vm1404, %v1400, %v1391
    %v1407 = vsel %vm1405, %v1403, %v1392
    %v1408 = vsel %vm1404, 1, 0
    %v1409 = vsel %vm1405, 1, 0
    %v1410 = vperm.slane %v1377, 2
    %v1411 = vsub.f32 %v233, %v1410
    %v1412 = vsub.f32 %v236, %v1410
    %v1413 = vmul.f32 %v1411, %v1411
    %v1414 = vmul.f32 %v1412, %v1412
    %v1415 = vsel %vm242, %v1413, 0.0
    %1416 = vadd.xlane.f32.xlu0 %v1415
    %v1417 = vpop.xlane.xlu0 %1416
    %v1418 = vsel %vm242, %v1414, 0.0
    %1419 = vadd.xlane.f32.xlu0 %v1418
    %v1420 = vpop.xlane.xlu0 %1419
    %vm1421 = vcmp.lt.f32.partialorder %v1417, %v1406
    %vm1422 = vcmp.lt.f32.partialorder %v1420, %v1407
    %v1423 = vsel %vm1421, %v1417, %v1406
    %v1424 = vsel %vm1422, %v1420, %v1407
    %v1425 = vsel %vm1421, 2, %v1408
    %v1426 = vsel %vm1422, 2, %v1409
    %v1427 = vadd.f32 %v1423, %v1424
    %v1428 = vrot.slane %v1427, 4
    %v1429 = vadd.f32 %v1427, %v1428
    %v1430 = vrot.slane %v1429, 2
    %v1431 = vadd.f32 %v1429, %v1430
    %v1432 = vrot.slane %v1431, 1
    %v1433 = vadd.f32 %v1431, %v1432
    %v1434 = vsub.f32 0.0, %v1433
    %v1435 = vrcp.pop 16.0
    %v1436 = vmul.f32 16.0, %v1435
    %v1437 = vsub.f32 1.0, %v1436
    %v1438 = vmul.f32 %v1435, %v1437
    %v1439 = vadd.f32 %v1435, %v1438
    %vm1440 = vweird.f32 %v1435
    %v1441 = vsel %vm1440, %v1435, %v1439
    %v1442 = vmul.f32 %v1434, %v1441
    %vm1443 = vcmask 60416
    %1444 = vst.msk [vmem:[%s15] sm:$0xf] %vm1443, %v1377
    %v1445 = vsel %vm509, %v505, %v494
    %v1446 = vsel %vm510, %v508, %v495
    %v1447 = vperm.slane %v233, 3
    %v1448 = vsub.f32 %v233, %v1447
    %v1449 = vsub.f32 %v236, %v1447
    %v1450 = vmul.f32 %v1448, %v1448
    %v1451 = vmul.f32 %v1449, %v1449
    %v1452 = vsel %vm242, %v1450, 0.0
    %1453 = vadd.xlane.f32.xlu0 %v1452
    %v1454 = vpop.xlane.xlu0 %1453
    %v1455 = vsel %vm242, %v1451, 0.0
    %1456 = vadd.xlane.f32.xlu0 %v1455
    %v1457 = vpop.xlane.xlu0 %1456
    %vm1458 = vcmp.lt.f32.partialorder %v1454, %v1445
    %vm1459 = vcmp.lt.f32.partialorder %v1457, %v1446
    %v1460 = vsel %vm1458, 3, %v511
    %v1461 = vsel %vm1459, 3, %v512
    %vm1462 = vcmp.eq.s32.totalorder %v1460, 0
    %vm1463 = vcmp.eq.s32.totalorder %v1461, 0
    %v1464 = vsel %vm1462, 1, 0
    %v1465 = vsel %vm1463, 1, 0
    %v1466 = vcvt.s32.f32 %v1464
    %v1467 = vcvt.s32.f32 %v1465
    %v1468 = vadd.f32 %v1466, %v1467
    %v1469 = vrot.slane %v1468, 4
    %v1470 = vadd.f32 %v1468, %v1469
    %v1471 = vrot.slane %v1470, 2
    %v1472 = vadd.f32 %v1470, %v1471
    %v1473 = vrot.slane %v1472, 1
    %v1474 = vadd.f32 %v1472, %v1473
    %v1475 = vmul.f32 %v1466, %v233
    %v1476 = vmul.f32 %v1467, %v236
    %v1477 = vsel %vm242, %v1475, 0.0
    %v1478 = vsel %vm242, %v1476, 0.0
    %v1479 = vadd.f32 %v1477, %v1478
    %v1480 = vrot.slane %v1479, 4
    %v1481 = vadd.f32 %v1479, %v1480
    %v1482 = vrot.slane %v1481, 2
    %v1483 = vadd.f32 %v1481, %v1482
    %v1484 = vrot.slane %v1483, 1
    %v1485 = vadd.f32 %v1483, %v1484
    %vm1486 = vcmp.gt.f32.partialorder %v1474, 0.0
    %v1487 = vmax.f32 %v1474, 1.0
    %v1488 = vrcp.pop %v1487
    %v1489 = vmul.f32 %v1487, %v1488
    %v1490 = vsub.f32 1.0, %v1489
    %v1491 = vmul.f32 %v1488, %v1490
    %v1492 = vadd.f32 %v1488, %v1491
    %vm1493 = vweird.f32 %v1487
    %vm1494 = vweird.f32 %v1488
    %vm1495 = vmor %vm1493, %vm1494
    %v1496 = vsel %vm1495, %v1488, %v1492
    %v1497 = vand.u32 2147483647, %v1487
    %vm1498 = vcmp.eq.f32.partialorder %v1497, 8.507059e+37
    %v1499 = vand.u32 %v1487, 2147483648
    %v1500 = vor.u32 1.1754944e-38, %v1499
    %v1501 = vsel %vm1498, %v1500, %v1496
    %v1502 = vmul.f32 %v1485, %v1501
    %v1503 = vsel %vm1486, 1, 0
    %vm1504 = vcmp.eq.s32.totalorder %v1503, 1
    %v1505 = vsel %vm1504, %v1502, %v233
    %vm1506 = vcmp.eq.s32.totalorder %v1460, 1
    %vm1507 = vcmp.eq.s32.totalorder %v1461, 1
    %v1508 = vsel %vm1506, 1, 0
    %v1509 = vsel %vm1507, 1, 0
    %v1510 = vcvt.s32.f32 %v1508
    %v1511 = vcvt.s32.f32 %v1509
    %v1512 = vadd.f32 %v1510, %v1511
    %v1513 = vrot.slane %v1512, 4
    %v1514 = vadd.f32 %v1512, %v1513
    %v1515 = vrot.slane %v1514, 2
    %v1516 = vadd.f32 %v1514, %v1515
    %v1517 = vrot.slane %v1516, 1
    %v1518 = vadd.f32 %v1516, %v1517
    %v1519 = vmul.f32 %v1510, %v233
    %v1520 = vmul.f32 %v1511, %v236
    %v1521 = vsel %vm242, %v1519, 0.0
    %v1522 = vsel %vm242, %v1520, 0.0
    %v1523 = vadd.f32 %v1521, %v1522
    %v1524 = vrot.slane %v1523, 4
    %v1525 = vadd.f32 %v1523, %v1524
    %v1526 = vrot.slane %v1525, 2
    %v1527 = vadd.f32 %v1525, %v1526
    %v1528 = vrot.slane %v1527, 1
    %v1529 = vadd.f32 %v1527, %v1528
    %vm1530 = vcmp.gt.f32.partialorder %v1518, 0.0
    %v1531 = vmax.f32 %v1518, 1.0
    %v1532 = vrcp.pop %v1531
    %v1533 = vmul.f32 %v1531, %v1532
    %v1534 = vsub.f32 1.0, %v1533
    %v1535 = vmul.f32 %v1532, %v1534
    %v1536 = vadd.f32 %v1532, %v1535
    %vm1537 = vweird.f32 %v1531
    %vm1538 = vweird.f32 %v1532
    %vm1539 = vmor %vm1537, %vm1538
    %v1540 = vsel %vm1539, %v1532, %v1536
    %v1541 = vand.u32 2147483647, %v1531
    %vm1542 = vcmp.eq.f32.partialorder %v1541, 8.507059e+37
    %v1543 = vand.u32 %v1531, 2147483648
    %v1544 = vor.u32 1.1754944e-38, %v1543
    %v1545 = vsel %vm1542, %v1544, %v1540
    %v1546 = vmul.f32 %v1529, %v1545
    %v1547 = vsel %vm1530, 1, 0
    %vm1548 = vcmp.eq.s32.totalorder %v1547, 1
    %v1549 = vsel %vm1548, %v1546, %v233
    %vm1550 = vcmp.eq.s32.totalorder %v1460, 2
    %vm1551 = vcmp.eq.s32.totalorder %v1461, 2
    %v1552 = vsel %vm1550, 1, 0
    %v1553 = vsel %vm1551, 1, 0
    %v1554 = vcvt.s32.f32 %v1552
    %v1555 = vcvt.s32.f32 %v1553
    %v1556 = vadd.f32 %v1554, %v1555
    %v1557 = vrot.slane %v1556, 4
    %v1558 = vadd.f32 %v1556, %v1557
    %v1559 = vrot.slane %v1558, 2
    %v1560 = vadd.f32 %v1558, %v1559
    %v1561 = vrot.slane %v1560, 1
    %v1562 = vadd.f32 %v1560, %v1561
    %v1563 = vmul.f32 %v1554, %v233
    %v1564 = vmul.f32 %v1555, %v236
    %v1565 = vsel %vm242, %v1563, 0.0
    %v1566 = vsel %vm242, %v1564, 0.0
    %v1567 = vadd.f32 %v1565, %v1566
    %v1568 = vrot.slane %v1567, 4
    %v1569 = vadd.f32 %v1567, %v1568
    %v1570 = vrot.slane %v1569, 2
    %v1571 = vadd.f32 %v1569, %v1570
    %v1572 = vrot.slane %v1571, 1
    %v1573 = vadd.f32 %v1571, %v1572
    %vm1574 = vcmp.gt.f32.partialorder %v1562, 0.0
    %v1575 = vmax.f32 %v1562, 1.0
    %v1576 = vrcp.pop %v1575
    %v1577 = vmul.f32 %v1575, %v1576
    %v1578 = vsub.f32 1.0, %v1577
    %v1579 = vmul.f32 %v1576, %v1578
    %v1580 = vadd.f32 %v1576, %v1579
    %vm1581 = vweird.f32 %v1575
    %vm1582 = vweird.f32 %v1576
    %vm1583 = vmor %vm1581, %vm1582
    %v1584 = vsel %vm1583, %v1576, %v1580
    %v1585 = vand.u32 2147483647, %v1575
    %vm1586 = vcmp.eq.f32.partialorder %v1585, 8.507059e+37
    %v1587 = vand.u32 %v1575, 2147483648
    %v1588 = vor.u32 1.1754944e-38, %v1587
    %v1589 = vsel %vm1586, %v1588, %v1584
    %v1590 = vmul.f32 %v1573, %v1589
    %v1591 = vsel %vm1574, 1, 0
    %vm1592 = vcmp.eq.s32.totalorder %v1591, 1
    %v1593 = vsel %vm1592, %v1590, %v233
    %vm1594 = vcmp.eq.s32.totalorder %v1460, 3
    %vm1595 = vcmp.eq.s32.totalorder %v1461, 3
    %v1596 = vsel %vm1594, 1, 0
    %v1597 = vsel %vm1595, 1, 0
    %v1598 = vcvt.s32.f32 %v1596
    %v1599 = vcvt.s32.f32 %v1597
    %v1600 = vadd.f32 %v1598, %v1599
    %v1601 = vrot.slane %v1600, 4
    %v1602 = vadd.f32 %v1600, %v1601
    %v1603 = vrot.slane %v1602, 2
    %v1604 = vadd.f32 %v1602, %v1603
    %v1605 = vrot.slane %v1604, 1
    %v1606 = vadd.f32 %v1604, %v1605
    %v1607 = vmul.f32 %v1598, %v233
    %v1608 = vmul.f32 %v1599, %v236
    %v1609 = vsel %vm242, %v1607, 0.0
    %v1610 = vsel %vm242, %v1608, 0.0
    %v1611 = vadd.f32 %v1609, %v1610
    %v1612 = vrot.slane %v1611, 4
    %v1613 = vadd.f32 %v1611, %v1612
    %v1614 = vrot.slane %v1613, 2
    %v1615 = vadd.f32 %v1613, %v1614
    %v1616 = vrot.slane %v1615, 1
    %v1617 = vadd.f32 %v1615, %v1616
    %vm1618 = vcmp.gt.f32.partialorder %v1606, 0.0
    %v1619 = vmax.f32 %v1606, 1.0
    %v1620 = vrcp.pop %v1619
    %v1621 = vmul.f32 %v1619, %v1620
    %v1622 = vsub.f32 1.0, %v1621
    %v1623 = vmul.f32 %v1620, %v1622
    %v1624 = vadd.f32 %v1620, %v1623
    %vm1625 = vweird.f32 %v1619
    %vm1626 = vweird.f32 %v1620
    %vm1627 = vmor %vm1625, %vm1626
    %v1628 = vsel %vm1627, %v1620, %v1624
    %v1629 = vand.u32 2147483647, %v1619
    %vm1630 = vcmp.eq.f32.partialorder %v1629, 8.507059e+37
    %v1631 = vand.u32 %v1619, 2147483648
    %v1632 = vor.u32 1.1754944e-38, %v1631
    %v1633 = vsel %vm1630, %v1632, %v1628
    %v1634 = vmul.f32 %v1617, %v1633
    %v1635 = vsel %vm1618, 1, 0
    %vm1636 = vcmp.eq.s32.totalorder %v1635, 1
    %v1637 = vsel %vm1636, %v1634, %v233
    %v1638 = vsel %vm645, %v1505, %v1549
    %v1639 = vsel %vm171, %v1638, %v1593
    %v1640 = vsel %vm648, %v1639, %v1637
    %v1641 = vperm.slane %v1640, 0
    %v1642 = vsub.f32 %v233, %v1641
    %v1643 = vsub.f32 %v236, %v1641
    %v1644 = vmul.f32 %v1642, %v1642
    %v1645 = vmul.f32 %v1643, %v1643
    %v1646 = vsel %vm242, %v1644, 0.0
    %1647 = vadd.xlane.f32.xlu0 %v1646
    %v1648 = vpop.xlane.xlu0 %1647
    %v1649 = vsel %vm242, %v1645, 0.0
    %1650 = vadd.xlane.f32.xlu0 %v1649
    %v1651 = vpop.xlane.xlu0 %1650
    %vm1652 = vcmp.lt.f32.partialorder %v1648, inf
    %vm1653 = vcmp.lt.f32.partialorder %v1651, inf
    %v1654 = vsel %vm1652, %v1648, inf
    %v1655 = vsel %vm1653, %v1651, inf
    %v1656 = vperm.slane %v1640, 1
    %v1657 = vsub.f32 %v233, %v1656
    %v1658 = vsub.f32 %v236, %v1656
    %v1659 = vmul.f32 %v1657, %v1657
    %v1660 = vmul.f32 %v1658, %v1658
    %v1661 = vsel %vm242, %v1659, 0.0
    %1662 = vadd.xlane.f32.xlu0 %v1661
    %v1663 = vpop.xlane.xlu0 %1662
    %v1664 = vsel %vm242, %v1660, 0.0
    %1665 = vadd.xlane.f32.xlu0 %v1664
    %v1666 = vpop.xlane.xlu0 %1665
    %vm1667 = vcmp.lt.f32.partialorder %v1663, %v1654
    %vm1668 = vcmp.lt.f32.partialorder %v1666, %v1655
    %v1669 = vsel %vm1667, %v1663, %v1654
    %v1670 = vsel %vm1668, %v1666, %v1655
    %v1671 = vsel %vm1667, 1, 0
    %v1672 = vsel %vm1668, 1, 0
    %v1673 = vperm.slane %v1640, 2
    %v1674 = vsub.f32 %v233, %v1673
    %v1675 = vsub.f32 %v236, %v1673
    %v1676 = vmul.f32 %v1674, %v1674
    %v1677 = vmul.f32 %v1675, %v1675
    %v1678 = vsel %vm242, %v1676, 0.0
    %1679 = vadd.xlane.f32.xlu0 %v1678
    %v1680 = vpop.xlane.xlu0 %1679
    %v1681 = vsel %vm242, %v1677, 0.0
    %1682 = vadd.xlane.f32.xlu0 %v1681
    %v1683 = vpop.xlane.xlu0 %1682
    %vm1684 = vcmp.lt.f32.partialorder %v1680, %v1669
    %vm1685 = vcmp.lt.f32.partialorder %v1683, %v1670
    %v1686 = vsel %vm1684, %v1680, %v1669
    %v1687 = vsel %vm1685, %v1683, %v1670
    %v1688 = vsel %vm1684, 2, %v1671
    %v1689 = vsel %vm1685, 2, %v1672
    %v1690 = vperm.slane %v1640, 3
    %v1691 = vsub.f32 %v233, %v1690
    %v1692 = vsub.f32 %v236, %v1690
    %v1693 = vmul.f32 %v1691, %v1691
    %v1694 = vmul.f32 %v1692, %v1692
    %v1695 = vsel %vm242, %v1693, 0.0
    %1696 = vadd.xlane.f32.xlu0 %v1695
    %v1697 = vpop.xlane.xlu0 %1696
    %v1698 = vsel %vm242, %v1694, 0.0
    %1699 = vadd.xlane.f32.xlu0 %v1698
    %v1700 = vpop.xlane.xlu0 %1699
    %vm1701 = vcmp.lt.f32.partialorder %v1697, %v1686
    %vm1702 = vcmp.lt.f32.partialorder %v1700, %v1687
    %v1703 = vsel %vm1701, 3, %v1688
    %v1704 = vsel %vm1702, 3, %v1689
    %vm1705 = vcmp.eq.s32.totalorder %v1703, 0
    %vm1706 = vcmp.eq.s32.totalorder %v1704, 0
    %v1707 = vsel %vm1705, 1, 0
    %v1708 = vsel %vm1706, 1, 0
    %v1709 = vcvt.s32.f32 %v1707
    %v1710 = vcvt.s32.f32 %v1708
    %v1711 = vadd.f32 %v1709, %v1710
    %v1712 = vrot.slane %v1711, 4
    %v1713 = vadd.f32 %v1711, %v1712
    %v1714 = vrot.slane %v1713, 2
    %v1715 = vadd.f32 %v1713, %v1714
    %v1716 = vrot.slane %v1715, 1
    %v1717 = vadd.f32 %v1715, %v1716
    %v1718 = vmul.f32 %v1709, %v233
    %v1719 = vmul.f32 %v1710, %v236
    %v1720 = vsel %vm242, %v1718, 0.0
    %v1721 = vsel %vm242, %v1719, 0.0
    %v1722 = vadd.f32 %v1720, %v1721
    %v1723 = vrot.slane %v1722, 4
    %v1724 = vadd.f32 %v1722, %v1723
    %v1725 = vrot.slane %v1724, 2
    %v1726 = vadd.f32 %v1724, %v1725
    %v1727 = vrot.slane %v1726, 1
    %v1728 = vadd.f32 %v1726, %v1727
    %vm1729 = vcmp.gt.f32.partialorder %v1717, 0.0
    %v1730 = vmax.f32 %v1717, 1.0
    %v1731 = vrcp.pop %v1730
    %v1732 = vmul.f32 %v1730, %v1731
    %v1733 = vsub.f32 1.0, %v1732
    %v1734 = vmul.f32 %v1731, %v1733
    %v1735 = vadd.f32 %v1731, %v1734
    %vm1736 = vweird.f32 %v1730
    %vm1737 = vweird.f32 %v1731
    %vm1738 = vmor %vm1736, %vm1737
    %v1739 = vsel %vm1738, %v1731, %v1735
    %v1740 = vand.u32 2147483647, %v1730
    %vm1741 = vcmp.eq.f32.partialorder %v1740, 8.507059e+37
    %v1742 = vand.u32 %v1730, 2147483648
    %v1743 = vor.u32 1.1754944e-38, %v1742
    %v1744 = vsel %vm1741, %v1743, %v1739
    %v1745 = vmul.f32 %v1728, %v1744
    %v1746 = vsel %vm1729, 1, 0
    %vm1747 = vcmp.eq.s32.totalorder %v1746, 1
    %v1748 = vsel %vm1747, %v1745, %v1640
    %vm1749 = vcmp.eq.s32.totalorder %v1703, 1
    %vm1750 = vcmp.eq.s32.totalorder %v1704, 1
    %v1751 = vsel %vm1749, 1, 0
    %v1752 = vsel %vm1750, 1, 0
    %v1753 = vcvt.s32.f32 %v1751
    %v1754 = vcvt.s32.f32 %v1752
    %v1755 = vadd.f32 %v1753, %v1754
    %v1756 = vrot.slane %v1755, 4
    %v1757 = vadd.f32 %v1755, %v1756
    %v1758 = vrot.slane %v1757, 2
    %v1759 = vadd.f32 %v1757, %v1758
    %v1760 = vrot.slane %v1759, 1
    %v1761 = vadd.f32 %v1759, %v1760
    %v1762 = vmul.f32 %v1753, %v233
    %v1763 = vmul.f32 %v1754, %v236
    %v1764 = vsel %vm242, %v1762, 0.0
    %v1765 = vsel %vm242, %v1763, 0.0
    %v1766 = vadd.f32 %v1764, %v1765
    %v1767 = vrot.slane %v1766, 4
    %v1768 = vadd.f32 %v1766, %v1767
    %v1769 = vrot.slane %v1768, 2
    %v1770 = vadd.f32 %v1768, %v1769
    %v1771 = vrot.slane %v1770, 1
    %v1772 = vadd.f32 %v1770, %v1771
    %vm1773 = vcmp.gt.f32.partialorder %v1761, 0.0
    %v1774 = vmax.f32 %v1761, 1.0
    %v1775 = vrcp.pop %v1774
    %v1776 = vmul.f32 %v1774, %v1775
    %v1777 = vsub.f32 1.0, %v1776
    %v1778 = vmul.f32 %v1775, %v1777
    %v1779 = vadd.f32 %v1775, %v1778
    %vm1780 = vweird.f32 %v1774
    %vm1781 = vweird.f32 %v1775
    %vm1782 = vmor %vm1780, %vm1781
    %v1783 = vsel %vm1782, %v1775, %v1779
    %v1784 = vand.u32 2147483647, %v1774
    %vm1785 = vcmp.eq.f32.partialorder %v1784, 8.507059e+37
    %v1786 = vand.u32 %v1774, 2147483648
    %v1787 = vor.u32 1.1754944e-38, %v1786
    %v1788 = vsel %vm1785, %v1787, %v1783
    %v1789 = vmul.f32 %v1772, %v1788
    %v1790 = vsel %vm1773, 1, 0
    %vm1791 = vcmp.eq.s32.totalorder %v1790, 1
    %v1792 = vsel %vm1791, %v1789, %v1640
    %vm1793 = vcmp.eq.s32.totalorder %v1703, 2
    %vm1794 = vcmp.eq.s32.totalorder %v1704, 2
    %v1795 = vsel %vm1793, 1, 0
    %v1796 = vsel %vm1794, 1, 0
    %v1797 = vcvt.s32.f32 %v1795
    %v1798 = vcvt.s32.f32 %v1796
    %v1799 = vadd.f32 %v1797, %v1798
    %v1800 = vrot.slane %v1799, 4
    %v1801 = vadd.f32 %v1799, %v1800
    %v1802 = vrot.slane %v1801, 2
    %v1803 = vadd.f32 %v1801, %v1802
    %v1804 = vrot.slane %v1803, 1
    %v1805 = vadd.f32 %v1803, %v1804
    %v1806 = vmul.f32 %v1797, %v233
    %v1807 = vmul.f32 %v1798, %v236
    %v1808 = vsel %vm242, %v1806, 0.0
    %v1809 = vsel %vm242, %v1807, 0.0
    %v1810 = vadd.f32 %v1808, %v1809
    %v1811 = vrot.slane %v1810, 4
    %v1812 = vadd.f32 %v1810, %v1811
    %v1813 = vrot.slane %v1812, 2
    %v1814 = vadd.f32 %v1812, %v1813
    %v1815 = vrot.slane %v1814, 1
    %v1816 = vadd.f32 %v1814, %v1815
    %vm1817 = vcmp.gt.f32.partialorder %v1805, 0.0
    %v1818 = vmax.f32 %v1805, 1.0
    %v1819 = vrcp.pop %v1818
    %v1820 = vmul.f32 %v1818, %v1819
    %v1821 = vsub.f32 1.0, %v1820
    %v1822 = vmul.f32 %v1819, %v1821
    %v1823 = vadd.f32 %v1819, %v1822
    %vm1824 = vweird.f32 %v1818
    %vm1825 = vweird.f32 %v1819
    %vm1826 = vmor %vm1824, %vm1825
    %v1827 = vsel %vm1826, %v1819, %v1823
    %v1828 = vand.u32 2147483647, %v1818
    %vm1829 = vcmp.eq.f32.partialorder %v1828, 8.507059e+37
    %v1830 = vand.u32 %v1818, 2147483648
    %v1831 = vor.u32 1.1754944e-38, %v1830
    %v1832 = vsel %vm1829, %v1831, %v1827
    %v1833 = vmul.f32 %v1816, %v1832
    %v1834 = vsel %vm1817, 1, 0
    %vm1835 = vcmp.eq.s32.totalorder %v1834, 1
    %v1836 = vsel %vm1835, %v1833, %v1640
    %vm1837 = vcmp.eq.s32.totalorder %v1703, 3
    %vm1838 = vcmp.eq.s32.totalorder %v1704, 3
    %v1839 = vsel %vm1837, 1, 0
    %v1840 = vsel %vm1838, 1, 0
    %v1841 = vcvt.s32.f32 %v1839
    %v1842 = vcvt.s32.f32 %v1840
    %v1843 = vadd.f32 %v1841, %v1842
    %v1844 = vrot.slane %v1843, 4
    %v1845 = vadd.f32 %v1843, %v1844
    %v1846 = vrot.slane %v1845, 2
    %v1847 = vadd.f32 %v1845, %v1846
    %v1848 = vrot.slane %v1847, 1
    %v1849 = vadd.f32 %v1847, %v1848
    %v1850 = vmul.f32 %v1841, %v233
    %v1851 = vmul.f32 %v1842, %v236
    %v1852 = vsel %vm242, %v1850, 0.0
    %v1853 = vsel %vm242, %v1851, 0.0
    %v1854 = vadd.f32 %v1852, %v1853
    %v1855 = vrot.slane %v1854, 4
    %v1856 = vadd.f32 %v1854, %v1855
    %v1857 = vrot.slane %v1856, 2
    %v1858 = vadd.f32 %v1856, %v1857
    %v1859 = vrot.slane %v1858, 1
    %v1860 = vadd.f32 %v1858, %v1859
    %vm1861 = vcmp.gt.f32.partialorder %v1849, 0.0
    %v1862 = vmax.f32 %v1849, 1.0
    %v1863 = vrcp.pop %v1862
    %v1864 = vmul.f32 %v1862, %v1863
    %v1865 = vsub.f32 1.0, %v1864
    %v1866 = vmul.f32 %v1863, %v1865
    %v1867 = vadd.f32 %v1863, %v1866
    %vm1868 = vweird.f32 %v1862
    %vm1869 = vweird.f32 %v1863
    %vm1870 = vmor %vm1868, %vm1869
    %v1871 = vsel %vm1870, %v1863, %v1867
    %v1872 = vand.u32 2147483647, %v1862
    %vm1873 = vcmp.eq.f32.partialorder %v1872, 8.507059e+37
    %v1874 = vand.u32 %v1862, 2147483648
    %v1875 = vor.u32 1.1754944e-38, %v1874
    %v1876 = vsel %vm1873, %v1875, %v1871
    %v1877 = vmul.f32 %v1860, %v1876
    %v1878 = vsel %vm1861, 1, 0
    %vm1879 = vcmp.eq.s32.totalorder %v1878, 1
    %v1880 = vsel %vm1879, %v1877, %v1640
    %v1881 = vsel %vm645, %v1748, %v1792
    %v1882 = vsel %vm171, %v1881, %v1836
    %v1883 = vsel %vm648, %v1882, %v1880
    %v1884 = vperm.slane %v1883, 0
    %v1885 = vsub.f32 %v233, %v1884
    %v1886 = vsub.f32 %v236, %v1884
    %v1887 = vmul.f32 %v1885, %v1885
    %v1888 = vmul.f32 %v1886, %v1886
    %v1889 = vsel %vm242, %v1887, 0.0
    %1890 = vadd.xlane.f32.xlu0 %v1889
    %v1891 = vpop.xlane.xlu0 %1890
    %v1892 = vsel %vm242, %v1888, 0.0
    %1893 = vadd.xlane.f32.xlu0 %v1892
    %v1894 = vpop.xlane.xlu0 %1893
    %vm1895 = vcmp.lt.f32.partialorder %v1891, inf
    %vm1896 = vcmp.lt.f32.partialorder %v1894, inf
    %v1897 = vsel %vm1895, %v1891, inf
    %v1898 = vsel %vm1896, %v1894, inf
    %v1899 = vperm.slane %v1883, 1
    %v1900 = vsub.f32 %v233, %v1899
    %v1901 = vsub.f32 %v236, %v1899
    %v1902 = vmul.f32 %v1900, %v1900
    %v1903 = vmul.f32 %v1901, %v1901
    %v1904 = vsel %vm242, %v1902, 0.0
    %1905 = vadd.xlane.f32.xlu0 %v1904
    %v1906 = vpop.xlane.xlu0 %1905
    %v1907 = vsel %vm242, %v1903, 0.0
    %1908 = vadd.xlane.f32.xlu0 %v1907
    %v1909 = vpop.xlane.xlu0 %1908
    %vm1910 = vcmp.lt.f32.partialorder %v1906, %v1897
    %vm1911 = vcmp.lt.f32.partialorder %v1909, %v1898
    %v1912 = vsel %vm1910, %v1906, %v1897
    %v1913 = vsel %vm1911, %v1909, %v1898
    %v1914 = vsel %vm1910, 1, 0
    %v1915 = vsel %vm1911, 1, 0
    %v1916 = vperm.slane %v1883, 2
    %v1917 = vsub.f32 %v233, %v1916
    %v1918 = vsub.f32 %v236, %v1916
    %v1919 = vmul.f32 %v1917, %v1917
    %v1920 = vmul.f32 %v1918, %v1918
    %v1921 = vsel %vm242, %v1919, 0.0
    %1922 = vadd.xlane.f32.xlu0 %v1921
    %v1923 = vpop.xlane.xlu0 %1922
    %v1924 = vsel %vm242, %v1920, 0.0
    %1925 = vadd.xlane.f32.xlu0 %v1924
    %v1926 = vpop.xlane.xlu0 %1925
    %vm1927 = vcmp.lt.f32.partialorder %v1923, %v1912
    %vm1928 = vcmp.lt.f32.partialorder %v1926, %v1913
    %v1929 = vsel %vm1927, %v1923, %v1912
    %v1930 = vsel %vm1928, %v1926, %v1913
    %v1931 = vsel %vm1927, 2, %v1914
    %v1932 = vsel %vm1928, 2, %v1915
    %v1933 = vperm.slane %v1883, 3
    %v1934 = vsub.f32 %v233, %v1933
    %v1935 = vsub.f32 %v236, %v1933
    %v1936 = vmul.f32 %v1934, %v1934
    %v1937 = vmul.f32 %v1935, %v1935
    %v1938 = vsel %vm242, %v1936, 0.0
    %1939 = vadd.xlane.f32.xlu0 %v1938
    %v1940 = vpop.xlane.xlu0 %1939
    %v1941 = vsel %vm242, %v1937, 0.0
    %1942 = vadd.xlane.f32.xlu0 %v1941
    %v1943 = vpop.xlane.xlu0 %1942
    %vm1944 = vcmp.lt.f32.partialorder %v1940, %v1929
    %vm1945 = vcmp.lt.f32.partialorder %v1943, %v1930
    %v1946 = vsel %vm1944, 3, %v1931
    %v1947 = vsel %vm1945, 3, %v1932
    %vm1948 = vcmp.eq.s32.totalorder %v1946, 0
    %vm1949 = vcmp.eq.s32.totalorder %v1947, 0
    %v1950 = vsel %vm1948, 1, 0
    %v1951 = vsel %vm1949, 1, 0
    %v1952 = vcvt.s32.f32 %v1950
    %v1953 = vcvt.s32.f32 %v1951
    %v1954 = vadd.f32 %v1952, %v1953
    %v1955 = vrot.slane %v1954, 4
    %v1956 = vadd.f32 %v1954, %v1955
    %v1957 = vrot.slane %v1956, 2
    %v1958 = vadd.f32 %v1956, %v1957
    %v1959 = vrot.slane %v1958, 1
    %v1960 = vadd.f32 %v1958, %v1959
    %v1961 = vmul.f32 %v1952, %v233
    %v1962 = vmul.f32 %v1953, %v236
    %v1963 = vsel %vm242, %v1961, 0.0
    %v1964 = vsel %vm242, %v1962, 0.0
    %v1965 = vadd.f32 %v1963, %v1964
    %v1966 = vrot.slane %v1965, 4
    %v1967 = vadd.f32 %v1965, %v1966
    %v1968 = vrot.slane %v1967, 2
    %v1969 = vadd.f32 %v1967, %v1968
    %v1970 = vrot.slane %v1969, 1
    %v1971 = vadd.f32 %v1969, %v1970
    %vm1972 = vcmp.gt.f32.partialorder %v1960, 0.0
    %v1973 = vmax.f32 %v1960, 1.0
    %v1974 = vrcp.pop %v1973
    %v1975 = vmul.f32 %v1973, %v1974
    %v1976 = vsub.f32 1.0, %v1975
    %v1977 = vmul.f32 %v1974, %v1976
    %v1978 = vadd.f32 %v1974, %v1977
    %vm1979 = vweird.f32 %v1973
    %vm1980 = vweird.f32 %v1974
    %vm1981 = vmor %vm1979, %vm1980
    %v1982 = vsel %vm1981, %v1974, %v1978
    %v1983 = vand.u32 2147483647, %v1973
    %vm1984 = vcmp.eq.f32.partialorder %v1983, 8.507059e+37
    %v1985 = vand.u32 %v1973, 2147483648
    %v1986 = vor.u32 1.1754944e-38, %v1985
    %v1987 = vsel %vm1984, %v1986, %v1982
    %v1988 = vmul.f32 %v1971, %v1987
    %v1989 = vsel %vm1972, 1, 0
    %vm1990 = vcmp.eq.s32.totalorder %v1989, 1
    %v1991 = vsel %vm1990, %v1988, %v1883
    %vm1992 = vcmp.eq.s32.totalorder %v1946, 1
    %vm1993 = vcmp.eq.s32.totalorder %v1947, 1
    %v1994 = vsel %vm1992, 1, 0
    %v1995 = vsel %vm1993, 1, 0
    %v1996 = vcvt.s32.f32 %v1994
    %v1997 = vcvt.s32.f32 %v1995
    %v1998 = vadd.f32 %v1996, %v1997
    %v1999 = vrot.slane %v1998, 4
    %v2000 = vadd.f32 %v1998, %v1999
    %v2001 = vrot.slane %v2000, 2
    %v2002 = vadd.f32 %v2000, %v2001
    %v2003 = vrot.slane %v2002, 1
    %v2004 = vadd.f32 %v2002, %v2003
    %v2005 = vmul.f32 %v1996, %v233
    %v2006 = vmul.f32 %v1997, %v236
    %v2007 = vsel %vm242, %v2005, 0.0
    %v2008 = vsel %vm242, %v2006, 0.0
    %v2009 = vadd.f32 %v2007, %v2008
    %v2010 = vrot.slane %v2009, 4
    %v2011 = vadd.f32 %v2009, %v2010
    %v2012 = vrot.slane %v2011, 2
    %v2013 = vadd.f32 %v2011, %v2012
    %v2014 = vrot.slane %v2013, 1
    %v2015 = vadd.f32 %v2013, %v2014
    %vm2016 = vcmp.gt.f32.partialorder %v2004, 0.0
    %v2017 = vmax.f32 %v2004, 1.0
    %v2018 = vrcp.pop %v2017
    %v2019 = vmul.f32 %v2017, %v2018
    %v2020 = vsub.f32 1.0, %v2019
    %v2021 = vmul.f32 %v2018, %v2020
    %v2022 = vadd.f32 %v2018, %v2021
    %vm2023 = vweird.f32 %v2017
    %vm2024 = vweird.f32 %v2018
    %vm2025 = vmor %vm2023, %vm2024
    %v2026 = vsel %vm2025, %v2018, %v2022
    %v2027 = vand.u32 2147483647, %v2017
    %vm2028 = vcmp.eq.f32.partialorder %v2027, 8.507059e+37
    %v2029 = vand.u32 %v2017, 2147483648
    %v2030 = vor.u32 1.1754944e-38, %v2029
    %v2031 = vsel %vm2028, %v2030, %v2026
    %v2032 = vmul.f32 %v2015, %v2031
    %v2033 = vsel %vm2016, 1, 0
    %vm2034 = vcmp.eq.s32.totalorder %v2033, 1
    %v2035 = vsel %vm2034, %v2032, %v1883
    %vm2036 = vcmp.eq.s32.totalorder %v1946, 2
    %vm2037 = vcmp.eq.s32.totalorder %v1947, 2
    %v2038 = vsel %vm2036, 1, 0
    %v2039 = vsel %vm2037, 1, 0
    %v2040 = vcvt.s32.f32 %v2038
    %v2041 = vcvt.s32.f32 %v2039
    %v2042 = vadd.f32 %v2040, %v2041
    %v2043 = vrot.slane %v2042, 4
    %v2044 = vadd.f32 %v2042, %v2043
    %v2045 = vrot.slane %v2044, 2
    %v2046 = vadd.f32 %v2044, %v2045
    %v2047 = vrot.slane %v2046, 1
    %v2048 = vadd.f32 %v2046, %v2047
    %v2049 = vmul.f32 %v2040, %v233
    %v2050 = vmul.f32 %v2041, %v236
    %v2051 = vsel %vm242, %v2049, 0.0
    %v2052 = vsel %vm242, %v2050, 0.0
    %v2053 = vadd.f32 %v2051, %v2052
    %v2054 = vrot.slane %v2053, 4
    %v2055 = vadd.f32 %v2053, %v2054
    %v2056 = vrot.slane %v2055, 2
    %v2057 = vadd.f32 %v2055, %v2056
    %v2058 = vrot.slane %v2057, 1
    %v2059 = vadd.f32 %v2057, %v2058
    %vm2060 = vcmp.gt.f32.partialorder %v2048, 0.0
    %v2061 = vmax.f32 %v2048, 1.0
    %v2062 = vrcp.pop %v2061
    %v2063 = vmul.f32 %v2061, %v2062
    %v2064 = vsub.f32 1.0, %v2063
    %v2065 = vmul.f32 %v2062, %v2064
    %v2066 = vadd.f32 %v2062, %v2065
    %vm2067 = vweird.f32 %v2061
    %vm2068 = vweird.f32 %v2062
    %vm2069 = vmor %vm2067, %vm2068
    %v2070 = vsel %vm2069, %v2062, %v2066
    %v2071 = vand.u32 2147483647, %v2061
    %vm2072 = vcmp.eq.f32.partialorder %v2071, 8.507059e+37
    %v2073 = vand.u32 %v2061, 2147483648
    %v2074 = vor.u32 1.1754944e-38, %v2073
    %v2075 = vsel %vm2072, %v2074, %v2070
    %v2076 = vmul.f32 %v2059, %v2075
    %v2077 = vsel %vm2060, 1, 0
    %vm2078 = vcmp.eq.s32.totalorder %v2077, 1
    %v2079 = vsel %vm2078, %v2076, %v1883
    %vm2080 = vcmp.eq.s32.totalorder %v1946, 3
    %vm2081 = vcmp.eq.s32.totalorder %v1947, 3
    %v2082 = vsel %vm2080, 1, 0
    %v2083 = vsel %vm2081, 1, 0
    %v2084 = vcvt.s32.f32 %v2082
    %v2085 = vcvt.s32.f32 %v2083
    %v2086 = vadd.f32 %v2084, %v2085
    %v2087 = vrot.slane %v2086, 4
    %v2088 = vadd.f32 %v2086, %v2087
    %v2089 = vrot.slane %v2088, 2
    %v2090 = vadd.f32 %v2088, %v2089
    %v2091 = vrot.slane %v2090, 1
    %v2092 = vadd.f32 %v2090, %v2091
    %v2093 = vmul.f32 %v2084, %v233
    %v2094 = vmul.f32 %v2085, %v236
    %v2095 = vsel %vm242, %v2093, 0.0
    %v2096 = vsel %vm242, %v2094, 0.0
    %v2097 = vadd.f32 %v2095, %v2096
    %v2098 = vrot.slane %v2097, 4
    %v2099 = vadd.f32 %v2097, %v2098
    %v2100 = vrot.slane %v2099, 2
    %v2101 = vadd.f32 %v2099, %v2100
    %v2102 = vrot.slane %v2101, 1
    %v2103 = vadd.f32 %v2101, %v2102
    %vm2104 = vcmp.gt.f32.partialorder %v2092, 0.0
    %v2105 = vmax.f32 %v2092, 1.0
    %v2106 = vrcp.pop %v2105
    %v2107 = vmul.f32 %v2105, %v2106
    %v2108 = vsub.f32 1.0, %v2107
    %v2109 = vmul.f32 %v2106, %v2108
    %v2110 = vadd.f32 %v2106, %v2109
    %vm2111 = vweird.f32 %v2105
    %vm2112 = vweird.f32 %v2106
    %vm2113 = vmor %vm2111, %vm2112
    %v2114 = vsel %vm2113, %v2106, %v2110
    %v2115 = vand.u32 2147483647, %v2105
    %vm2116 = vcmp.eq.f32.partialorder %v2115, 8.507059e+37
    %v2117 = vand.u32 %v2105, 2147483648
    %v2118 = vor.u32 1.1754944e-38, %v2117
    %v2119 = vsel %vm2116, %v2118, %v2114
    %v2120 = vmul.f32 %v2103, %v2119
    %v2121 = vsel %vm2104, 1, 0
    %vm2122 = vcmp.eq.s32.totalorder %v2121, 1
    %v2123 = vsel %vm2122, %v2120, %v1883
    %v2124 = vsel %vm645, %v1991, %v2035
    %v2125 = vsel %vm171, %v2124, %v2079
    %v2126 = vsel %vm648, %v2125, %v2123
    %v2127 = vperm.slane %v2126, 0
    %v2128 = vsub.f32 %v233, %v2127
    %v2129 = vsub.f32 %v236, %v2127
    %v2130 = vmul.f32 %v2128, %v2128
    %v2131 = vmul.f32 %v2129, %v2129
    %v2132 = vsel %vm242, %v2130, 0.0
    %2133 = vadd.xlane.f32.xlu0 %v2132
    %v2134 = vpop.xlane.xlu0 %2133
    %v2135 = vsel %vm242, %v2131, 0.0
    %2136 = vadd.xlane.f32.xlu0 %v2135
    %v2137 = vpop.xlane.xlu0 %2136
    %vm2138 = vcmp.lt.f32.partialorder %v2134, inf
    %vm2139 = vcmp.lt.f32.partialorder %v2137, inf
    %v2140 = vsel %vm2138, %v2134, inf
    %v2141 = vsel %vm2139, %v2137, inf
    %v2142 = vperm.slane %v2126, 1
    %v2143 = vsub.f32 %v233, %v2142
    %v2144 = vsub.f32 %v236, %v2142
    %v2145 = vmul.f32 %v2143, %v2143
    %v2146 = vmul.f32 %v2144, %v2144
    %v2147 = vsel %vm242, %v2145, 0.0
    %2148 = vadd.xlane.f32.xlu0 %v2147
    %v2149 = vpop.xlane.xlu0 %2148
    %v2150 = vsel %vm242, %v2146, 0.0
    %2151 = vadd.xlane.f32.xlu0 %v2150
    %v2152 = vpop.xlane.xlu0 %2151
    %vm2153 = vcmp.lt.f32.partialorder %v2149, %v2140
    %vm2154 = vcmp.lt.f32.partialorder %v2152, %v2141
    %v2155 = vsel %vm2153, %v2149, %v2140
    %v2156 = vsel %vm2154, %v2152, %v2141
    %v2157 = vsel %vm2153, 1, 0
    %v2158 = vsel %vm2154, 1, 0
    %v2159 = vperm.slane %v2126, 2
    %v2160 = vsub.f32 %v233, %v2159
    %v2161 = vsub.f32 %v236, %v2159
    %v2162 = vmul.f32 %v2160, %v2160
    %v2163 = vmul.f32 %v2161, %v2161
    %v2164 = vsel %vm242, %v2162, 0.0
    %2165 = vadd.xlane.f32.xlu0 %v2164
    %v2166 = vpop.xlane.xlu0 %2165
    %v2167 = vsel %vm242, %v2163, 0.0
    %2168 = vadd.xlane.f32.xlu0 %v2167
    %v2169 = vpop.xlane.xlu0 %2168
    %vm2170 = vcmp.lt.f32.partialorder %v2166, %v2155
    %vm2171 = vcmp.lt.f32.partialorder %v2169, %v2156
    %v2172 = vsel %vm2170, %v2166, %v2155
    %v2173 = vsel %vm2171, %v2169, %v2156
    %v2174 = vsel %vm2170, 2, %v2157
    %v2175 = vsel %vm2171, 2, %v2158
    %v2176 = vperm.slane %v2126, 3
    %v2177 = vsub.f32 %v233, %v2176
    %v2178 = vsub.f32 %v236, %v2176
    %v2179 = vmul.f32 %v2177, %v2177
    %v2180 = vmul.f32 %v2178, %v2178
    %v2181 = vsel %vm242, %v2179, 0.0
    %2182 = vadd.xlane.f32.xlu0 %v2181
    %v2183 = vpop.xlane.xlu0 %2182
    %v2184 = vsel %vm242, %v2180, 0.0
    %2185 = vadd.xlane.f32.xlu0 %v2184
    %v2186 = vpop.xlane.xlu0 %2185
    %vm2187 = vcmp.lt.f32.partialorder %v2183, %v2172
    %vm2188 = vcmp.lt.f32.partialorder %v2186, %v2173
    %v2189 = vsel %vm2187, 3, %v2174
    %v2190 = vsel %vm2188, 3, %v2175
    %vm2191 = vcmp.eq.s32.totalorder %v2189, 0
    %vm2192 = vcmp.eq.s32.totalorder %v2190, 0
    %v2193 = vsel %vm2191, 1, 0
    %v2194 = vsel %vm2192, 1, 0
    %v2195 = vcvt.s32.f32 %v2193
    %v2196 = vcvt.s32.f32 %v2194
    %v2197 = vadd.f32 %v2195, %v2196
    %v2198 = vrot.slane %v2197, 4
    %v2199 = vadd.f32 %v2197, %v2198
    %v2200 = vrot.slane %v2199, 2
    %v2201 = vadd.f32 %v2199, %v2200
    %v2202 = vrot.slane %v2201, 1
    %v2203 = vadd.f32 %v2201, %v2202
    %v2204 = vmul.f32 %v2195, %v233
    %v2205 = vmul.f32 %v2196, %v236
    %v2206 = vsel %vm242, %v2204, 0.0
    %v2207 = vsel %vm242, %v2205, 0.0
    %v2208 = vadd.f32 %v2206, %v2207
    %v2209 = vrot.slane %v2208, 4
    %v2210 = vadd.f32 %v2208, %v2209
    %v2211 = vrot.slane %v2210, 2
    %v2212 = vadd.f32 %v2210, %v2211
    %v2213 = vrot.slane %v2212, 1
    %v2214 = vadd.f32 %v2212, %v2213
    %vm2215 = vcmp.gt.f32.partialorder %v2203, 0.0
    %v2216 = vmax.f32 %v2203, 1.0
    %v2217 = vrcp.pop %v2216
    %v2218 = vmul.f32 %v2216, %v2217
    %v2219 = vsub.f32 1.0, %v2218
    %v2220 = vmul.f32 %v2217, %v2219
    %v2221 = vadd.f32 %v2217, %v2220
    %vm2222 = vweird.f32 %v2216
    %vm2223 = vweird.f32 %v2217
    %vm2224 = vmor %vm2222, %vm2223
    %v2225 = vsel %vm2224, %v2217, %v2221
    %v2226 = vand.u32 2147483647, %v2216
    %vm2227 = vcmp.eq.f32.partialorder %v2226, 8.507059e+37
    %v2228 = vand.u32 %v2216, 2147483648
    %v2229 = vor.u32 1.1754944e-38, %v2228
    %v2230 = vsel %vm2227, %v2229, %v2225
    %v2231 = vmul.f32 %v2214, %v2230
    %v2232 = vsel %vm2215, 1, 0
    %vm2233 = vcmp.eq.s32.totalorder %v2232, 1
    %v2234 = vsel %vm2233, %v2231, %v2126
    %vm2235 = vcmp.eq.s32.totalorder %v2189, 1
    %vm2236 = vcmp.eq.s32.totalorder %v2190, 1
    %v2237 = vsel %vm2235, 1, 0
    %v2238 = vsel %vm2236, 1, 0
    %v2239 = vcvt.s32.f32 %v2237
    %v2240 = vcvt.s32.f32 %v2238
    %v2241 = vadd.f32 %v2239, %v2240
    %v2242 = vrot.slane %v2241, 4
    %v2243 = vadd.f32 %v2241, %v2242
    %v2244 = vrot.slane %v2243, 2
    %v2245 = vadd.f32 %v2243, %v2244
    %v2246 = vrot.slane %v2245, 1
    %v2247 = vadd.f32 %v2245, %v2246
    %v2248 = vmul.f32 %v2239, %v233
    %v2249 = vmul.f32 %v2240, %v236
    %v2250 = vsel %vm242, %v2248, 0.0
    %v2251 = vsel %vm242, %v2249, 0.0
    %v2252 = vadd.f32 %v2250, %v2251
    %v2253 = vrot.slane %v2252, 4
    %v2254 = vadd.f32 %v2252, %v2253
    %v2255 = vrot.slane %v2254, 2
    %v2256 = vadd.f32 %v2254, %v2255
    %v2257 = vrot.slane %v2256, 1
    %v2258 = vadd.f32 %v2256, %v2257
    %vm2259 = vcmp.gt.f32.partialorder %v2247, 0.0
    %v2260 = vmax.f32 %v2247, 1.0
    %v2261 = vrcp.pop %v2260
    %v2262 = vmul.f32 %v2260, %v2261
    %v2263 = vsub.f32 1.0, %v2262
    %v2264 = vmul.f32 %v2261, %v2263
    %v2265 = vadd.f32 %v2261, %v2264
    %vm2266 = vweird.f32 %v2260
    %vm2267 = vweird.f32 %v2261
    %vm2268 = vmor %vm2266, %vm2267
    %v2269 = vsel %vm2268, %v2261, %v2265
    %v2270 = vand.u32 2147483647, %v2260
    %vm2271 = vcmp.eq.f32.partialorder %v2270, 8.507059e+37
    %v2272 = vand.u32 %v2260, 2147483648
    %v2273 = vor.u32 1.1754944e-38, %v2272
    %v2274 = vsel %vm2271, %v2273, %v2269
    %v2275 = vmul.f32 %v2258, %v2274
    %v2276 = vsel %vm2259, 1, 0
    %vm2277 = vcmp.eq.s32.totalorder %v2276, 1
    %v2278 = vsel %vm2277, %v2275, %v2126
    %vm2279 = vcmp.eq.s32.totalorder %v2189, 2
    %vm2280 = vcmp.eq.s32.totalorder %v2190, 2
    %v2281 = vsel %vm2279, 1, 0
    %v2282 = vsel %vm2280, 1, 0
    %v2283 = vcvt.s32.f32 %v2281
    %v2284 = vcvt.s32.f32 %v2282
    %v2285 = vadd.f32 %v2283, %v2284
    %v2286 = vrot.slane %v2285, 4
    %v2287 = vadd.f32 %v2285, %v2286
    %v2288 = vrot.slane %v2287, 2
    %v2289 = vadd.f32 %v2287, %v2288
    %v2290 = vrot.slane %v2289, 1
    %v2291 = vadd.f32 %v2289, %v2290
    %v2292 = vmul.f32 %v2283, %v233
    %v2293 = vmul.f32 %v2284, %v236
    %v2294 = vsel %vm242, %v2292, 0.0
    %v2295 = vsel %vm242, %v2293, 0.0
    %v2296 = vadd.f32 %v2294, %v2295
    %v2297 = vrot.slane %v2296, 4
    %v2298 = vadd.f32 %v2296, %v2297
    %v2299 = vrot.slane %v2298, 2
    %v2300 = vadd.f32 %v2298, %v2299
    %v2301 = vrot.slane %v2300, 1
    %v2302 = vadd.f32 %v2300, %v2301
    %vm2303 = vcmp.gt.f32.partialorder %v2291, 0.0
    %v2304 = vmax.f32 %v2291, 1.0
    %v2305 = vrcp.pop %v2304
    %v2306 = vmul.f32 %v2304, %v2305
    %v2307 = vsub.f32 1.0, %v2306
    %v2308 = vmul.f32 %v2305, %v2307
    %v2309 = vadd.f32 %v2305, %v2308
    %vm2310 = vweird.f32 %v2304
    %vm2311 = vweird.f32 %v2305
    %vm2312 = vmor %vm2310, %vm2311
    %v2313 = vsel %vm2312, %v2305, %v2309
    %v2314 = vand.u32 2147483647, %v2304
    %vm2315 = vcmp.eq.f32.partialorder %v2314, 8.507059e+37
    %v2316 = vand.u32 %v2304, 2147483648
    %v2317 = vor.u32 1.1754944e-38, %v2316
    %v2318 = vsel %vm2315, %v2317, %v2313
    %v2319 = vmul.f32 %v2302, %v2318
    %v2320 = vsel %vm2303, 1, 0
    %vm2321 = vcmp.eq.s32.totalorder %v2320, 1
    %v2322 = vsel %vm2321, %v2319, %v2126
    %vm2323 = vcmp.eq.s32.totalorder %v2189, 3
    %vm2324 = vcmp.eq.s32.totalorder %v2190, 3
    %v2325 = vsel %vm2323, 1, 0
    %v2326 = vsel %vm2324, 1, 0
    %v2327 = vcvt.s32.f32 %v2325
    %v2328 = vcvt.s32.f32 %v2326
    %v2329 = vadd.f32 %v2327, %v2328
    %v2330 = vrot.slane %v2329, 4
    %v2331 = vadd.f32 %v2329, %v2330
    %v2332 = vrot.slane %v2331, 2
    %v2333 = vadd.f32 %v2331, %v2332
    %v2334 = vrot.slane %v2333, 1
    %v2335 = vadd.f32 %v2333, %v2334
    %v2336 = vmul.f32 %v2327, %v233
    %v2337 = vmul.f32 %v2328, %v236
    %v2338 = vsel %vm242, %v2336, 0.0
    %v2339 = vsel %vm242, %v2337, 0.0
    %v2340 = vadd.f32 %v2338, %v2339
    %v2341 = vrot.slane %v2340, 4
    %v2342 = vadd.f32 %v2340, %v2341
    %v2343 = vrot.slane %v2342, 2
    %v2344 = vadd.f32 %v2342, %v2343
    %v2345 = vrot.slane %v2344, 1
    %v2346 = vadd.f32 %v2344, %v2345
    %vm2347 = vcmp.gt.f32.partialorder %v2335, 0.0
    %v2348 = vmax.f32 %v2335, 1.0
    %v2349 = vrcp.pop %v2348
    %v2350 = vmul.f32 %v2348, %v2349
    %v2351 = vsub.f32 1.0, %v2350
    %v2352 = vmul.f32 %v2349, %v2351
    %v2353 = vadd.f32 %v2349, %v2352
    %vm2354 = vweird.f32 %v2348
    %vm2355 = vweird.f32 %v2349
    %vm2356 = vmor %vm2354, %vm2355
    %v2357 = vsel %vm2356, %v2349, %v2353
    %v2358 = vand.u32 2147483647, %v2348
    %vm2359 = vcmp.eq.f32.partialorder %v2358, 8.507059e+37
    %v2360 = vand.u32 %v2348, 2147483648
    %v2361 = vor.u32 1.1754944e-38, %v2360
    %v2362 = vsel %vm2359, %v2361, %v2357
    %v2363 = vmul.f32 %v2346, %v2362
    %v2364 = vsel %vm2347, 1, 0
    %vm2365 = vcmp.eq.s32.totalorder %v2364, 1
    %v2366 = vsel %vm2365, %v2363, %v2126
    %v2367 = vsel %vm645, %v2234, %v2278
    %v2368 = vsel %vm171, %v2367, %v2322
    %v2369 = vsel %vm648, %v2368, %v2366
    %v2370 = vperm.slane %v2369, 0
    %v2371 = vsub.f32 %v233, %v2370
    %v2372 = vsub.f32 %v236, %v2370
    %v2373 = vmul.f32 %v2371, %v2371
    %v2374 = vmul.f32 %v2372, %v2372
    %v2375 = vsel %vm242, %v2373, 0.0
    %2376 = vadd.xlane.f32.xlu0 %v2375
    %v2377 = vpop.xlane.xlu0 %2376
    %v2378 = vsel %vm242, %v2374, 0.0
    %2379 = vadd.xlane.f32.xlu0 %v2378
    %v2380 = vpop.xlane.xlu0 %2379
    %vm2381 = vcmp.lt.f32.partialorder %v2377, inf
    %vm2382 = vcmp.lt.f32.partialorder %v2380, inf
    %v2383 = vsel %vm2381, %v2377, inf
    %v2384 = vsel %vm2382, %v2380, inf
    %v2385 = vperm.slane %v2369, 1
    %v2386 = vsub.f32 %v233, %v2385
    %v2387 = vsub.f32 %v236, %v2385
    %v2388 = vmul.f32 %v2386, %v2386
    %v2389 = vmul.f32 %v2387, %v2387
    %v2390 = vsel %vm242, %v2388, 0.0
    %2391 = vadd.xlane.f32.xlu0 %v2390
    %v2392 = vpop.xlane.xlu0 %2391
    %v2393 = vsel %vm242, %v2389, 0.0
    %2394 = vadd.xlane.f32.xlu0 %v2393
    %v2395 = vpop.xlane.xlu0 %2394
    %vm2396 = vcmp.lt.f32.partialorder %v2392, %v2383
    %vm2397 = vcmp.lt.f32.partialorder %v2395, %v2384
    %v2398 = vsel %vm2396, %v2392, %v2383
    %v2399 = vsel %vm2397, %v2395, %v2384
    %v2400 = vsel %vm2396, 1, 0
    %v2401 = vsel %vm2397, 1, 0
    %v2402 = vperm.slane %v2369, 2
    %v2403 = vsub.f32 %v233, %v2402
    %v2404 = vsub.f32 %v236, %v2402
    %v2405 = vmul.f32 %v2403, %v2403
    %v2406 = vmul.f32 %v2404, %v2404
    %v2407 = vsel %vm242, %v2405, 0.0
    %2408 = vadd.xlane.f32.xlu0 %v2407
    %v2409 = vpop.xlane.xlu0 %2408
    %v2410 = vsel %vm242, %v2406, 0.0
    %2411 = vadd.xlane.f32.xlu0 %v2410
    %v2412 = vpop.xlane.xlu0 %2411
    %vm2413 = vcmp.lt.f32.partialorder %v2409, %v2398
    %vm2414 = vcmp.lt.f32.partialorder %v2412, %v2399
    %v2415 = vsel %vm2413, %v2409, %v2398
    %v2416 = vsel %vm2414, %v2412, %v2399
    %v2417 = vsel %vm2413, 2, %v2400
    %v2418 = vsel %vm2414, 2, %v2401
    %v2419 = vperm.slane %v2369, 3
    %v2420 = vsub.f32 %v233, %v2419
    %v2421 = vsub.f32 %v236, %v2419
    %v2422 = vmul.f32 %v2420, %v2420
    %v2423 = vmul.f32 %v2421, %v2421
    %v2424 = vsel %vm242, %v2422, 0.0
    %2425 = vadd.xlane.f32.xlu0 %v2424
    %v2426 = vpop.xlane.xlu0 %2425
    %v2427 = vsel %vm242, %v2423, 0.0
    %2428 = vadd.xlane.f32.xlu0 %v2427
    %v2429 = vpop.xlane.xlu0 %2428
    %vm2430 = vcmp.lt.f32.partialorder %v2426, %v2415
    %vm2431 = vcmp.lt.f32.partialorder %v2429, %v2416
    %v2432 = vsel %vm2430, 3, %v2417
    %v2433 = vsel %vm2431, 3, %v2418
    %vm2434 = vcmp.eq.s32.totalorder %v2432, 0
    %vm2435 = vcmp.eq.s32.totalorder %v2433, 0
    %v2436 = vsel %vm2434, 1, 0
    %v2437 = vsel %vm2435, 1, 0
    %v2438 = vcvt.s32.f32 %v2436
    %v2439 = vcvt.s32.f32 %v2437
    %v2440 = vadd.f32 %v2438, %v2439
    %v2441 = vrot.slane %v2440, 4
    %v2442 = vadd.f32 %v2440, %v2441
    %v2443 = vrot.slane %v2442, 2
    %v2444 = vadd.f32 %v2442, %v2443
    %v2445 = vrot.slane %v2444, 1
    %v2446 = vadd.f32 %v2444, %v2445
    %v2447 = vmul.f32 %v2438, %v233
    %v2448 = vmul.f32 %v2439, %v236
    %v2449 = vsel %vm242, %v2447, 0.0
    %v2450 = vsel %vm242, %v2448, 0.0
    %v2451 = vadd.f32 %v2449, %v2450
    %v2452 = vrot.slane %v2451, 4
    %v2453 = vadd.f32 %v2451, %v2452
    %v2454 = vrot.slane %v2453, 2
    %v2455 = vadd.f32 %v2453, %v2454
    %v2456 = vrot.slane %v2455, 1
    %v2457 = vadd.f32 %v2455, %v2456
    %vm2458 = vcmp.gt.f32.partialorder %v2446, 0.0
    %v2459 = vmax.f32 %v2446, 1.0
    %v2460 = vrcp.pop %v2459
    %v2461 = vmul.f32 %v2459, %v2460
    %v2462 = vsub.f32 1.0, %v2461
    %v2463 = vmul.f32 %v2460, %v2462
    %v2464 = vadd.f32 %v2460, %v2463
    %vm2465 = vweird.f32 %v2459
    %vm2466 = vweird.f32 %v2460
    %vm2467 = vmor %vm2465, %vm2466
    %v2468 = vsel %vm2467, %v2460, %v2464
    %v2469 = vand.u32 2147483647, %v2459
    %vm2470 = vcmp.eq.f32.partialorder %v2469, 8.507059e+37
    %v2471 = vand.u32 %v2459, 2147483648
    %v2472 = vor.u32 1.1754944e-38, %v2471
    %v2473 = vsel %vm2470, %v2472, %v2468
    %v2474 = vmul.f32 %v2457, %v2473
    %v2475 = vsel %vm2458, 1, 0
    %vm2476 = vcmp.eq.s32.totalorder %v2475, 1
    %v2477 = vsel %vm2476, %v2474, %v2369
    %vm2478 = vcmp.eq.s32.totalorder %v2432, 1
    %vm2479 = vcmp.eq.s32.totalorder %v2433, 1
    %v2480 = vsel %vm2478, 1, 0
    %v2481 = vsel %vm2479, 1, 0
    %v2482 = vcvt.s32.f32 %v2480
    %v2483 = vcvt.s32.f32 %v2481
    %v2484 = vadd.f32 %v2482, %v2483
    %v2485 = vrot.slane %v2484, 4
    %v2486 = vadd.f32 %v2484, %v2485
    %v2487 = vrot.slane %v2486, 2
    %v2488 = vadd.f32 %v2486, %v2487
    %v2489 = vrot.slane %v2488, 1
    %v2490 = vadd.f32 %v2488, %v2489
    %v2491 = vmul.f32 %v2482, %v233
    %v2492 = vmul.f32 %v2483, %v236
    %v2493 = vsel %vm242, %v2491, 0.0
    %v2494 = vsel %vm242, %v2492, 0.0
    %v2495 = vadd.f32 %v2493, %v2494
    %v2496 = vrot.slane %v2495, 4
    %v2497 = vadd.f32 %v2495, %v2496
    %v2498 = vrot.slane %v2497, 2
    %v2499 = vadd.f32 %v2497, %v2498
    %v2500 = vrot.slane %v2499, 1
    %v2501 = vadd.f32 %v2499, %v2500
    %vm2502 = vcmp.gt.f32.partialorder %v2490, 0.0
    %v2503 = vmax.f32 %v2490, 1.0
    %v2504 = vrcp.pop %v2503
    %v2505 = vmul.f32 %v2503, %v2504
    %v2506 = vsub.f32 1.0, %v2505
    %v2507 = vmul.f32 %v2504, %v2506
    %v2508 = vadd.f32 %v2504, %v2507
    %vm2509 = vweird.f32 %v2503
    %vm2510 = vweird.f32 %v2504
    %vm2511 = vmor %vm2509, %vm2510
    %v2512 = vsel %vm2511, %v2504, %v2508
    %v2513 = vand.u32 2147483647, %v2503
    %vm2514 = vcmp.eq.f32.partialorder %v2513, 8.507059e+37
    %v2515 = vand.u32 %v2503, 2147483648
    %v2516 = vor.u32 1.1754944e-38, %v2515
    %v2517 = vsel %vm2514, %v2516, %v2512
    %v2518 = vmul.f32 %v2501, %v2517
    %v2519 = vsel %vm2502, 1, 0
    %vm2520 = vcmp.eq.s32.totalorder %v2519, 1
    %v2521 = vsel %vm2520, %v2518, %v2369
    %vm2522 = vcmp.eq.s32.totalorder %v2432, 2
    %vm2523 = vcmp.eq.s32.totalorder %v2433, 2
    %v2524 = vsel %vm2522, 1, 0
    %v2525 = vsel %vm2523, 1, 0
    %v2526 = vcvt.s32.f32 %v2524
    %v2527 = vcvt.s32.f32 %v2525
    %v2528 = vadd.f32 %v2526, %v2527
    %v2529 = vrot.slane %v2528, 4
    %v2530 = vadd.f32 %v2528, %v2529
    %v2531 = vrot.slane %v2530, 2
    %v2532 = vadd.f32 %v2530, %v2531
    %v2533 = vrot.slane %v2532, 1
    %v2534 = vadd.f32 %v2532, %v2533
    %v2535 = vmul.f32 %v2526, %v233
    %v2536 = vmul.f32 %v2527, %v236
    %v2537 = vsel %vm242, %v2535, 0.0
    %v2538 = vsel %vm242, %v2536, 0.0
    %v2539 = vadd.f32 %v2537, %v2538
    %v2540 = vrot.slane %v2539, 4
    %v2541 = vadd.f32 %v2539, %v2540
    %v2542 = vrot.slane %v2541, 2
    %v2543 = vadd.f32 %v2541, %v2542
    %v2544 = vrot.slane %v2543, 1
    %v2545 = vadd.f32 %v2543, %v2544
    %vm2546 = vcmp.gt.f32.partialorder %v2534, 0.0
    %v2547 = vmax.f32 %v2534, 1.0
    %v2548 = vrcp.pop %v2547
    %v2549 = vmul.f32 %v2547, %v2548
    %v2550 = vsub.f32 1.0, %v2549
    %v2551 = vmul.f32 %v2548, %v2550
    %v2552 = vadd.f32 %v2548, %v2551
    %vm2553 = vweird.f32 %v2547
    %vm2554 = vweird.f32 %v2548
    %vm2555 = vmor %vm2553, %vm2554
    %v2556 = vsel %vm2555, %v2548, %v2552
    %v2557 = vand.u32 2147483647, %v2547
    %vm2558 = vcmp.eq.f32.partialorder %v2557, 8.507059e+37
    %v2559 = vand.u32 %v2547, 2147483648
    %v2560 = vor.u32 1.1754944e-38, %v2559
    %v2561 = vsel %vm2558, %v2560, %v2556
    %v2562 = vmul.f32 %v2545, %v2561
    %v2563 = vsel %vm2546, 1, 0
    %vm2564 = vcmp.eq.s32.totalorder %v2563, 1
    %v2565 = vsel %vm2564, %v2562, %v2369
    %vm2566 = vcmp.eq.s32.totalorder %v2432, 3
    %vm2567 = vcmp.eq.s32.totalorder %v2433, 3
    %v2568 = vsel %vm2566, 1, 0
    %v2569 = vsel %vm2567, 1, 0
    %v2570 = vcvt.s32.f32 %v2568
    %v2571 = vcvt.s32.f32 %v2569
    %v2572 = vadd.f32 %v2570, %v2571
    %v2573 = vrot.slane %v2572, 4
    %v2574 = vadd.f32 %v2572, %v2573
    %v2575 = vrot.slane %v2574, 2
    %v2576 = vadd.f32 %v2574, %v2575
    %v2577 = vrot.slane %v2576, 1
    %v2578 = vadd.f32 %v2576, %v2577
    %v2579 = vmul.f32 %v2570, %v233
    %v2580 = vmul.f32 %v2571, %v236
    %v2581 = vsel %vm242, %v2579, 0.0
    %v2582 = vsel %vm242, %v2580, 0.0
    %v2583 = vadd.f32 %v2581, %v2582
    %v2584 = vrot.slane %v2583, 4
    %v2585 = vadd.f32 %v2583, %v2584
    %v2586 = vrot.slane %v2585, 2
    %v2587 = vadd.f32 %v2585, %v2586
    %v2588 = vrot.slane %v2587, 1
    %v2589 = vadd.f32 %v2587, %v2588
    %vm2590 = vcmp.gt.f32.partialorder %v2578, 0.0
    %v2591 = vmax.f32 %v2578, 1.0
    %v2592 = vrcp.pop %v2591
    %v2593 = vmul.f32 %v2591, %v2592
    %v2594 = vsub.f32 1.0, %v2593
    %v2595 = vmul.f32 %v2592, %v2594
    %v2596 = vadd.f32 %v2592, %v2595
    %vm2597 = vweird.f32 %v2591
    %vm2598 = vweird.f32 %v2592
    %vm2599 = vmor %vm2597, %vm2598
    %v2600 = vsel %vm2599, %v2592, %v2596
    %v2601 = vand.u32 2147483647, %v2591
    %vm2602 = vcmp.eq.f32.partialorder %v2601, 8.507059e+37
    %v2603 = vand.u32 %v2591, 2147483648
    %v2604 = vor.u32 1.1754944e-38, %v2603
    %v2605 = vsel %vm2602, %v2604, %v2600
    %v2606 = vmul.f32 %v2589, %v2605
    %v2607 = vsel %vm2590, 1, 0
    %vm2608 = vcmp.eq.s32.totalorder %v2607, 1
    %v2609 = vsel %vm2608, %v2606, %v2369
    %v2610 = vsel %vm645, %v2477, %v2521
    %v2611 = vsel %vm171, %v2610, %v2565
    %v2612 = vsel %vm648, %v2611, %v2609
    %v2613 = vperm.slane %v2612, 0
    %v2614 = vsub.f32 %v233, %v2613
    %v2615 = vsub.f32 %v236, %v2613
    %v2616 = vmul.f32 %v2614, %v2614
    %v2617 = vmul.f32 %v2615, %v2615
    %v2618 = vsel %vm242, %v2616, 0.0
    %2619 = vadd.xlane.f32.xlu0 %v2618
    %v2620 = vpop.xlane.xlu0 %2619
    %v2621 = vsel %vm242, %v2617, 0.0
    %2622 = vadd.xlane.f32.xlu0 %v2621
    %v2623 = vpop.xlane.xlu0 %2622
    %vm2624 = vcmp.lt.f32.partialorder %v2620, inf
    %vm2625 = vcmp.lt.f32.partialorder %v2623, inf
    %v2626 = vsel %vm2624, %v2620, inf
    %v2627 = vsel %vm2625, %v2623, inf
    %v2628 = vperm.slane %v2612, 1
    %v2629 = vsub.f32 %v233, %v2628
    %v2630 = vsub.f32 %v236, %v2628
    %v2631 = vmul.f32 %v2629, %v2629
    %v2632 = vmul.f32 %v2630, %v2630
    %v2633 = vsel %vm242, %v2631, 0.0
    %2634 = vadd.xlane.f32.xlu0 %v2633
    %v2635 = vpop.xlane.xlu0 %2634
    %v2636 = vsel %vm242, %v2632, 0.0
    %2637 = vadd.xlane.f32.xlu0 %v2636
    %v2638 = vpop.xlane.xlu0 %2637
    %vm2639 = vcmp.lt.f32.partialorder %v2635, %v2626
    %vm2640 = vcmp.lt.f32.partialorder %v2638, %v2627
    %v2641 = vsel %vm2639, %v2635, %v2626
    %v2642 = vsel %vm2640, %v2638, %v2627
    %v2643 = vsel %vm2639, 1, 0
    %v2644 = vsel %vm2640, 1, 0
    %v2645 = vperm.slane %v2612, 2
    %v2646 = vsub.f32 %v233, %v2645
    %v2647 = vsub.f32 %v236, %v2645
    %v2648 = vmul.f32 %v2646, %v2646
    %v2649 = vmul.f32 %v2647, %v2647
    %v2650 = vsel %vm242, %v2648, 0.0
    %2651 = vadd.xlane.f32.xlu0 %v2650
    %v2652 = vpop.xlane.xlu0 %2651
    %v2653 = vsel %vm242, %v2649, 0.0
    %2654 = vadd.xlane.f32.xlu0 %v2653
    %v2655 = vpop.xlane.xlu0 %2654
    %vm2656 = vcmp.lt.f32.partialorder %v2652, %v2641
    %vm2657 = vcmp.lt.f32.partialorder %v2655, %v2642
    %v2658 = vsel %vm2656, %v2652, %v2641
    %v2659 = vsel %vm2657, %v2655, %v2642
    %v2660 = vsel %vm2656, 2, %v2643
    %v2661 = vsel %vm2657, 2, %v2644
    %v2662 = vperm.slane %v2612, 3
    %v2663 = vsub.f32 %v233, %v2662
    %v2664 = vsub.f32 %v236, %v2662
    %v2665 = vmul.f32 %v2663, %v2663
    %v2666 = vmul.f32 %v2664, %v2664
    %v2667 = vsel %vm242, %v2665, 0.0
    %2668 = vadd.xlane.f32.xlu0 %v2667
    %v2669 = vpop.xlane.xlu0 %2668
    %v2670 = vsel %vm242, %v2666, 0.0
    %2671 = vadd.xlane.f32.xlu0 %v2670
    %v2672 = vpop.xlane.xlu0 %2671
    %vm2673 = vcmp.lt.f32.partialorder %v2669, %v2658
    %vm2674 = vcmp.lt.f32.partialorder %v2672, %v2659
    %v2675 = vsel %vm2673, %v2669, %v2658
    %v2676 = vsel %vm2674, %v2672, %v2659
    %v2677 = vsel %vm2673, 3, %v2660
    %v2678 = vsel %vm2674, 3, %v2661
    %v2679 = vadd.f32 %v2675, %v2676
    %v2680 = vrot.slane %v2679, 4
    %v2681 = vadd.f32 %v2679, %v2680
    %v2682 = vrot.slane %v2681, 2
    %v2683 = vadd.f32 %v2681, %v2682
    %v2684 = vrot.slane %v2683, 1
    %v2685 = vadd.f32 %v2683, %v2684
    %v2686 = vsub.f32 0.0, %v2685
    %v2687 = vmul.f32 %v2686, %v1441
    %s2688 = scalar_lea.vmem %s15, 4
    %2689 = vst.msk [vmem:[%s2688] sm:$0xf] %vm1443, %v2612
    %vm2690 = vcmask 7168
    %v2691 = vsel %vm2690, %v1425, %v2677
    %v2692 = vsel %vm2690, %v1426, %v2678
    %vm2693 = vcmask 15360
    %2694 = vst.msk [vmem:[%s14] sm:$0xff] %vm2693, %v2691
    %2695 = vst.msk [vmem:[%s14 + $0x8] sm:$0xff] %vm2693, %v2692
    %v2696 = vsel %vm2690, %v1442, %v2687
    %vm2697 = vcmask 8192
    %2698 = vst.msk [vmem:[%s16] sm:$0x1] %vm2697, %v2696
    // Predicated region
    $region50: #{forward.1} parent=1 // pred_check
      _
    $region51: #{forward.1} parent=1 // pred_check_branch
      %2700 = sbr.rel (0) target = $region53
    $region52: #{forward.1} parent=1 // pred_region
      %2702 = vsyncadd [#allocation3], 0
      %s2703 = sshll.u32 [#allocation2], 4
      %s2704 = int_to_ptr.vmem [resolvable:$true] %s2703
      %s2705 = sshll.u32 %s12, 4
      %s2706 = int_to_ptr.hbm [resolvable:$true] %s2705
      %2711 = dma.vmem_to_hbm [thread:$0]  %s2704, 256, %s2706, [#allocation3], 128, 128, 8
    $region53: #{forward.1} parent=1 // pred_fallthru
      _
    // Predicated region
    $region54: #{forward.1} parent=1 // pred_check
      _
    $region55: #{forward.1} parent=1 // pred_check_branch
      %2713 = sbr.rel (0) target = $region57
    $region56: #{forward.1} parent=1 // pred_region
      _
    $region57: #{forward.1} parent=1 // pred_fallthru
      _
    // Predicated region
    $region58: #{forward.1} parent=1 // pred_check
      _
    $region59: #{forward.1} parent=1 // pred_check_branch
      %2715 = sbr.rel (0) target = $region61
    $region60: #{forward.1} parent=1 // pred_region
      _
    $region61: #{forward.1} parent=1 // pred_fallthru
      _
    // Predicated region
    $region62: #{forward.1} parent=1 // pred_check
      _
    $region63: #{forward.1} parent=1 // pred_check_branch
      %2717 = sbr.rel (0) target = $region65
    $region64: #{forward.1} parent=1 // pred_region
      _
    $region65: #{forward.1} parent=1 // pred_fallthru
      _
    // Predicated region
    $region66: #{forward.1} parent=1 // pred_check
      _
    $region67: #{forward.1} parent=1 // pred_check_branch
      %2719 = sbr.rel (0) target = $region69
    $region68: #{forward.1} parent=1 // pred_region
      _
    $region69: #{forward.1} parent=1 // pred_fallthru
      _
    // Predicated region
    $region70: #{forward.1} parent=1 // pred_check
      _
    $region71: #{forward.1} parent=1 // pred_check_branch
      %2721 = sbr.rel (0) target = $region73
    $region72: #{forward.1} parent=1 // pred_region
      %2723 = dma.done [#allocation3], 256
    $region73: #{forward.1} parent=1 // pred_fallthru
      _
    // Predicated region
    $region74: #{forward.1} parent=1 // pred_check
      _
    $region75: #{forward.1} parent=1 // pred_check_branch
      %2725 = sbr.rel (0) target = $region77
    $region76: #{forward.1} parent=1 // pred_region
      _
    $region77: #{forward.1} parent=1 // pred_fallthru
      _
    // Predicated region
    $region78: #{forward.1} parent=1 // pred_check
      _
    $region79: #{forward.1} parent=1 // pred_check_branch
      %2727 = sbr.rel (0) target = $region81
    $region80: #{forward.1} parent=1 // pred_region
      _
    $region81: #{forward.1} parent=1 // pred_fallthru
      _
    // Predicated region
    $region82: #{forward.1} parent=1 // pred_check
      _
    $region83: #{forward.1} parent=1 // pred_check_branch
      %2729 = sbr.rel (0) target = $region85
    $region84: #{forward.1} parent=1 // pred_region
      _
    $region85: #{forward.1} parent=1 // pred_fallthru
      _
    // Predicated region
    $region86: #{forward.1} parent=1 // pred_check
      _
    $region87: #{forward.1} parent=1 // pred_check_branch
      %2731 = sbr.rel (0) target = $region89
    $region88: #{forward.1} parent=1 // pred_region
      _
    $region89: #{forward.1} parent=1 // pred_fallthru
      _
    %2732 = vsyncpa [#allocation3], 1

</llo_original>
